<compile_context>
chip_gen: v6e
topology: v6e:2x2x1
jax: 0.10.0
libtpu: 0.0.40
codegen_flags: <defaults>
</compile_context>

<pallas_src>
import functools
import math

import jax
import jax.numpy as jnp
from jax.experimental import pallas as pl
from jax.experimental.pallas import tpu as pltpu


_LN_EPS = 1e-12
_NEG_INF = 1e9          # magnitude of the additive key-padding mask
_CLS_PAD = 128          # lane-dense classifier output width (real labels sliced out)
_CLS_ROWS = 8           # sublane-aligned row count fed to pooler/classifier (CLS = row 0)


# -----------------------------------------------------------------------------
# Fused forward kernel: one grid step == one sequence of the batch.
# -----------------------------------------------------------------------------

def _layer_norm(x, g, b, eps):
    mu = jnp.mean(x, axis=-1, keepdims=True)
    xc = x - mu
    var = jnp.mean(xc * xc, axis=-1, keepdims=True)
    return xc * jax.lax.rsqrt(var + eps) * g + b


def _gelu_tanh(x):
    # tanh approximation -> EUP slot (erf polynomial would saturate the VALU).
    c = math.sqrt(2.0 / math.pi)
    return 0.5 * x * (1.0 + jnp.tanh(c * (x + 0.044715 * x * x * x)))


def _fused_forward_kernel(emb_ref, keep_ref, wqkv_ref, bqkv_ref, wo_ref,
                          w1_ref, w2_ref, lvec_ref, pool_w_ref, cls_w_ref,
                          tvec_ref, out_ref, *, eps):
    f32 = jnp.float32
    bf16 = jnp.bfloat16

    S = emb_ref.shape[1]
    H = emb_ref.shape[2]
    n_layers = wqkv_ref.shape[0]
    n_heads = wqkv_ref.shape[2]
    FF = w1_ref.shape[2]

    # Packed "tail" vectors: emb-LN gamma/beta, pooler bias, classifier bias.
    tv = tvec_ref[...]                                   # (8, 128) f32
    emb_g, emb_b = tv[0, :H], tv[1, :H]
    pool_b, cls_b = tv[2, :H], tv[3, :]

    # Embedding LayerNorm (non-residual path), f32.
    x = _layer_norm(emb_ref[0].astype(f32), emb_g, emb_b, eps)          # (S, H)

    # Additive key-padding mask built in-kernel from the (1, S) keep vector.
    # (A fully padded sequence degrades to uniform attention; only the CLS row
    #  is read downstream, so this is harmless.)
    keep = keep_ref[0]                                                  # (1, S)
    add_mask = (keep - 1.0) * _NEG_INF                                  # (1, S)

    for l in range(n_layers):                                           # static unroll
        lv = lvec_ref[l]                                                # (8, 128) f32
        bo, ln1g, ln1b = lv[0, :H], lv[1, :H], lv[2, :H]
        b1, b2, ln2g, ln2b = lv[3, :FF], lv[4, :H], lv[5, :H], lv[6, :H]

        xb = x.astype(bf16)                                             # MXU operand

        attn = None
        for h in range(n_heads):                                        # static unroll
            # Head-major weight blocks: whole-block reads, no lane slicing.
            q = jnp.dot(xb, wqkv_ref[l, 0, h, :, :],
                        preferred_element_type=f32) + bqkv_ref[l, 0, h, :, :]
            k = jnp.dot(xb, wqkv_ref[l, 1, h, :, :],
                        preferred_element_type=f32) + bqkv_ref[l, 1, h, :, :]
            v = jnp.dot(xb, wqkv_ref[l, 2, h, :, :],
                        preferred_element_type=f32) + bqkv_ref[l, 2, h, :, :]
            # q @ k^T contracting last dims — no explicit K transpose.
            s = jax.lax.dot_general(q.astype(bf16), k.astype(bf16),
                                    (((1,), (1,)), ((), ())),
                                    preferred_element_type=f32)          # (S, S)
            # Softmax entirely in f32 (mask / max / exp / normalize).
            s = s + add_mask
            s = s - jnp.max(s, axis=-1, keepdims=True)
            p = jnp.exp(s)
            p = p * pl.reciprocal(jnp.sum(p, axis=-1, keepdims=True), approx=True)
            ctx = jnp.dot(p.astype(bf16), v.astype(bf16),
                          preferred_element_type=f32)                    # (S, Dh)
            # sum_h ctx_h @ wo_rows_h == concat(ctx_h) @ wo  -> no concatenate.
            part = jnp.dot(ctx.astype(bf16), wo_ref[l, h, :, :],
                           preferred_element_type=f32)                   # (S, H)
            attn = part if attn is None else attn + part
        attn = attn + bo

        x = _layer_norm(attn + x, ln1g, ln1b, eps)

        ff = jnp.dot(x.astype(bf16), w1_ref[l], preferred_element_type=f32) + b1
        ff = _gelu_tanh(ff)                                              # f32, EUP tanh
        ff = jnp.dot(ff.astype(bf16), w2_ref[l], preferred_element_type=f32) + b2
        x = _layer_norm(ff + x, ln2g, ln2b, eps)

    # Pooler + classifier on the first 8 rows only (CLS is row 0); lane-dense
    # (8, 128) output slab -> unmasked stores.  Wrapper slices CLS row/labels.
    xc = x[:_CLS_ROWS, :].astype(bf16)
    pooled = jnp.tanh(jnp.dot(xc, pool_w_ref[...], preferred_element_type=f32)
                      + pool_b)
    logits = jnp.dot(pooled.astype(bf16), cls_w_ref[...],
                     preferred_element_type=f32) + cls_b
    out_ref[0] = logits.astype(out_ref.dtype)


# -----------------------------------------------------------------------------
# Parameter construction / packing
# -----------------------------------------------------------------------------

def init_params(key, *, vocab=100, max_pos=32, hidden=32, n_heads=2,
                inter=64, n_layers=2, num_labels=2):
    def nrm(k, shape, scale=0.02):
        return scale * jax.random.normal(k, shape, jnp.float32)

    keys = jax.random.split(key, 5 + 6 * n_layers)
    it = iter(range(len(keys)))
    p = {
        "word_emb": nrm(keys[next(it)], (vocab, hidden)),
        "pos_emb": nrm(keys[next(it)], (max_pos, hidden)),
        "type_emb": nrm(keys[next(it)], (2, hidden)),
        "emb_ln_g": jnp.ones((hidden,), jnp.float32),
        "emb_ln_b": jnp.zeros((hidden,), jnp.float32),
        "pool_w": nrm(keys[next(it)], (hidden, hidden)),
        "pool_b": jnp.zeros((hidden,), jnp.float32),
        "cls_w": nrm(keys[next(it)], (hidden, num_labels)),
        "cls_b": jnp.zeros((num_labels,), jnp.float32),
        "layers": [],
    }
    for _ in range(n_layers):
        lp = {
            "wq": nrm(keys[next(it)], (hidden, hidden)),
            "bq": jnp.zeros((hidden,), jnp.float32),
            "wk": nrm(keys[next(it)], (hidden, hidden)),
            "bk": jnp.zeros((hidden,), jnp.float32),
            "wv": nrm(keys[next(it)], (hidden, hidden)),
            "bv": jnp.zeros((hidden,), jnp.float32),
            "wo": nrm(keys[next(it)], (hidden, hidden)),
            "bo": jnp.zeros((hidden,), jnp.float32),
            "ln1_g": jnp.ones((hidden,), jnp.float32),
            "ln1_b": jnp.zeros((hidden,), jnp.float32),
            "w1": nrm(keys[next(it)], (hidden, inter)),
            "b1": jnp.zeros((inter,), jnp.float32),
            "w2": nrm(keys[next(it)], (inter, hidden)),
            "b2": jnp.zeros((hidden,), jnp.float32),
            "ln2_g": jnp.ones((hidden,), jnp.float32),
            "ln2_b": jnp.zeros((hidden,), jnp.float32),
        }
        p["layers"].append(lp)
    return p


def pack_params(params, n_heads):
    """Head-major, layer-stacked, bf16 weight slabs + lane-padded f32 vector slabs."""
    H = params["word_emb"].shape[1]
    Dh = H // n_heads
    scale = 1.0 / math.sqrt(Dh)
    num_labels = params["cls_w"].shape[1]
    FF = params["layers"][0]["w1"].shape[1]
    Wv = max(128, ((max(H, FF) + 127) // 128) * 128)     # lane-padded slab width
    bf16 = jnp.bfloat16

    def heads_w(w):     # (H, H) -> (nH, H, Dh): head-major columns
        return w.reshape(H, n_heads, Dh).transpose(1, 0, 2)

    def heads_b(b):     # (H,) -> (nH, 1, Dh)
        return b.reshape(n_heads, 1, Dh)

    wqkv, bqkv, wo, w1, w2, lvec = [], [], [], [], [], []
    for lp in params["layers"]:
        # 1/sqrt(Dh) folded into the Q weights/bias.
        wqkv.append(jnp.stack([heads_w(lp["wq"] * scale),
                               heads_w(lp["wk"]),
                               heads_w(lp["wv"])], axis=0))          # (3, nH, H, Dh)
        bqkv.append(jnp.stack([heads_b(lp["bq"] * scale),
                               heads_b(lp["bk"]),
                               heads_b(lp["bv"])], axis=0))          # (3, nH, 1, Dh)
        wo.append(lp["wo"].reshape(n_heads, Dh, H))                  # (nH, Dh, H)
        w1.append(lp["w1"])
        w2.append(lp["w2"])
        rows = jnp.zeros((8, Wv), jnp.float32)
        rows = rows.at[0, :H].set(lp["bo"])
        rows = rows.at[1, :H].set(lp["ln1_g"])
        rows = rows.at[2, :H].set(lp["ln1_b"])
        rows = rows.at[3, :FF].set(lp["b1"])
        rows = rows.at[4, :H].set(lp["b2"])
        rows = rows.at[5, :H].set(lp["ln2_g"])
        rows = rows.at[6, :H].set(lp["ln2_b"])
        lvec.append(rows)

    tvec = jnp.zeros((8, _CLS_PAD), jnp.float32)
    tvec = tvec.at[0, :H].set(params["emb_ln_g"])
    tvec = tvec.at[1, :H].set(params["emb_ln_b"])
    tvec = tvec.at[2, :H].set(params["pool_b"])
    tvec = tvec.at[3, :num_labels].set(params["cls_b"])

    cls_w = jnp.zeros((H, _CLS_PAD), jnp.float32).at[:, :num_labels].set(
        params["cls_w"])

    return {
        "wqkv": jnp.stack(wqkv).astype(bf16),       # (L, 3, nH, H, Dh)
        "bqkv": jnp.stack(bqkv),                    # (L, 3, nH, 1, Dh) f32
        "wo": jnp.stack(wo).astype(bf16),           # (L, nH, Dh, H)
        "w1": jnp.stack(w1).astype(bf16),           # (L, H, FF)
        "w2": jnp.stack(w2).astype(bf16),           # (L, FF, H)
        "lvec": jnp.stack(lvec),                    # (L, 8, Wv) f32
        "tvec": tvec,                               # (8, 128) f32
        "pool_w": params["pool_w"].astype(bf16),    # (H, H)
        "cls_w": cls_w.astype(bf16),                # (H, 128)
        "num_labels": num_labels,
    }


# -----------------------------------------------------------------------------
# Forward pass (equivalent of SequenceClassifierVyas.forward -> logits)
# -----------------------------------------------------------------------------

def forward(params, input_ids, attention_mask=None, *, n_heads=2):
    B, S = input_ids.shape
    H = params["word_emb"].shape[1]
    assert S >= _CLS_ROWS, "sequence length must cover one sublane tile (>= 8)"
    packed = pack_params(params, n_heads)
    num_labels = packed["num_labels"]

    if attention_mask is None:
        attention_mask = jnp.ones((B, S), jnp.float32)

    # --- glue: embedding gather + pos/type add (toy tables; DMA-gather at real
    # vocab sizes) ---
    emb = (params["word_emb"][input_ids]
           + params["pos_emb"][:S][None, :, :]
           + params["type_emb"][0][None, None, :]).astype(jnp.float32)   # (B, S, H)
    keep = attention_mask.astype(jnp.float32).reshape(B, 1, S)           # 1=keep

    def resident(arr):
        nd = arr.ndim
        if nd == 2:
            return pl.BlockSpec(arr.shape, lambda b: (0, 0))
        if nd == 3:
            return pl.BlockSpec(arr.shape, lambda b: (0, 0, 0))
        if nd == 4:
            return pl.BlockSpec(arr.shape, lambda b: (0, 0, 0, 0))
        return pl.BlockSpec(arr.shape, lambda b: (0, 0, 0, 0, 0))

    out = pl.pallas_call(
        functools.partial(_fused_forward_kernel, eps=_LN_EPS),
        out_shape=jax.ShapeDtypeStruct((B, _CLS_ROWS, _CLS_PAD), jnp.float32),
        grid=(B,),
        in_specs=[
            pl.BlockSpec((1, S, H), lambda b: (b, 0, 0)),     # per-sequence embeddings
            pl.BlockSpec((1, 1, S), lambda b: (b, 0, 0)),     # per-sequence key-keep
            resident(packed["wqkv"]),
            resident(packed["bqkv"]),
            resident(packed["wo"]),
            resident(packed["w1"]),
            resident(packed["w2"]),
            resident(packed["lvec"]),
            resident(packed["pool_w"]),
            resident(packed["cls_w"]),
            resident(packed["tvec"]),
        ],
        out_specs=pl.BlockSpec((1, _CLS_ROWS, _CLS_PAD), lambda b: (b, 0, 0)),
        compiler_params=pltpu.CompilerParams(
            dimension_semantics=("parallel",)),               # v7x: 2 TCs split batches
    )(emb, keep,
      packed["wqkv"], packed["bqkv"], packed["wo"],
      packed["w1"], packed["w2"], packed["lvec"],
      packed["pool_w"], packed["cls_w"], packed["tvec"])

    # CLS row (token 0) and the real label columns.
    logits = out[:, 0, :num_labels]
    return logits


# TODO(synk): the `predict()` method (HF tokenizer on raw sentences) and
# pretrained-checkpoint loading have no Pallas/JAX tensor equivalent; only the
# tensor forward pass is implemented.

if __name__ == "__main__":
    B, S = 2, 8
    VOCAB, HIDDEN, N_HEADS, INTER, N_LAYERS, NUM_LABELS = 100, 32, 2, 64, 2, 2

    key = jax.random.PRNGKey(0)
    k_ids, k_params = jax.random.split(key)
    input_ids = jax.random.randint(k_ids, (B, S), 0, VOCAB, dtype=jnp.int32)
    attention_mask = jnp.ones((B, S), jnp.float32).at[1, 6:].set(0.0)  # pad tail of seq 1

    params = init_params(k_params, vocab=VOCAB, max_pos=32, hidden=HIDDEN,
                         n_heads=N_HEADS, inter=INTER, n_layers=N_LAYERS,
                         num_labels=NUM_LABELS)

    logits = forward(params, input_ids, attention_mask, n_heads=N_HEADS)
    jax.block_until_ready(logits)
    assert logits.shape == (B, NUM_LABELS)
    assert bool(jnp.all(jnp.isfinite(logits)))
    print("KERNEL_OK")
</pallas_src>

<mosaic_0001>
module attributes {stable_mosaic.version = 11 : i64} {
  func.func @_fused_forward_kernel(%arg0: i32, %arg1: memref<1x8x32xf32, #tpu.memory_space<vmem>>, %arg2: memref<1x1x8xf32, #tpu.memory_space<vmem>>, %arg3: memref<2x3x2x32x16xbf16, #tpu.memory_space<vmem>>, %arg4: memref<2x3x2x1x16xf32, #tpu.memory_space<vmem>>, %arg5: memref<2x2x16x32xbf16, #tpu.memory_space<vmem>>, %arg6: memref<2x32x64xbf16, #tpu.memory_space<vmem>>, %arg7: memref<2x64x32xbf16, #tpu.memory_space<vmem>>, %arg8: memref<2x8x128xf32, #tpu.memory_space<vmem>>, %arg9: memref<32x32xbf16, #tpu.memory_space<vmem>>, %arg10: memref<32x128xbf16, #tpu.memory_space<vmem>>, %arg11: memref<8x128xf32, #tpu.memory_space<vmem>>, %arg12: memref<1x8x128xf32, #tpu.memory_space<vmem>>) attributes {dimension_semantics = [#tpu.dimension_semantics<parallel>], iteration_bounds = array<i64: 2>, scalar_prefetch = 0 : i64, scratch_operands = 0 : i64, tpu.core_type = #tpu.core_type<tc>, window_params = [{transform_indices = @transform_0, window_bounds = array<i64: 1, 8, 32>}, {transform_indices = @transform_1, window_bounds = array<i64: 1, 1, 8>}, {pipeline_mode = #tpu.pipeline_mode<synchronous>, transform_indices = @transform_2, window_bounds = array<i64: 2, 3, 2, 32, 16>}, {pipeline_mode = #tpu.pipeline_mode<synchronous>, transform_indices = @transform_3, window_bounds = array<i64: 2, 3, 2, 1, 16>}, {pipeline_mode = #tpu.pipeline_mode<synchronous>, transform_indices = @transform_4, window_bounds = array<i64: 2, 2, 16, 32>}, {pipeline_mode = #tpu.pipeline_mode<synchronous>, transform_indices = @transform_5, window_bounds = array<i64: 2, 32, 64>}, {pipeline_mode = #tpu.pipeline_mode<synchronous>, transform_indices = @transform_6, window_bounds = array<i64: 2, 64, 32>}, {pipeline_mode = #tpu.pipeline_mode<synchronous>, transform_indices = @transform_7, window_bounds = array<i64: 2, 8, 128>}, {pipeline_mode = #tpu.pipeline_mode<synchronous>, transform_indices = @transform_8, window_bounds = array<i64: 32, 32>}, {pipeline_mode = #tpu.pipeline_mode<synchronous>, transform_indices = @transform_9, window_bounds = array<i64: 32, 128>}, {pipeline_mode = #tpu.pipeline_mode<synchronous>, transform_indices = @transform_10, window_bounds = array<i64: 8, 128>}, {transform_indices = @transform_11, window_bounds = array<i64: 1, 8, 128>}]} {
    %c0 = arith.constant 0 : index
    %c0_0 = arith.constant 0 : index
    %0 = vector.load %arg11[%c0, %c0_0] : memref<8x128xf32, #tpu.memory_space<vmem>>, vector<8x128xf32>
    %1 = vector.extract_strided_slice %0 {offsets = [0, 0], sizes = [1, 32], strides = [1, 1]} : vector<8x128xf32> to vector<1x32xf32>
    %2 = vector.shape_cast %1 : vector<1x32xf32> to vector<32xf32>
    %3 = vector.extract_strided_slice %0 {offsets = [1, 0], sizes = [1, 32], strides = [1, 1]} : vector<8x128xf32> to vector<1x32xf32>
    %4 = vector.shape_cast %3 : vector<1x32xf32> to vector<32xf32>
    %5 = vector.extract_strided_slice %0 {offsets = [2, 0], sizes = [1, 32], strides = [1, 1]} : vector<8x128xf32> to vector<1x32xf32>
    %6 = vector.shape_cast %5 : vector<1x32xf32> to vector<32xf32>
    %7 = vector.extract_strided_slice %0 {offsets = [3, 0], sizes = [1, 128], strides = [1, 1]} : vector<8x128xf32> to vector<1x128xf32>
    %8 = vector.shape_cast %7 : vector<1x128xf32> to vector<128xf32>
    %c0_1 = arith.constant 0 : index
    %c0_2 = arith.constant 0 : index
    %c0_3 = arith.constant 0 : index
    %9 = vector.load %arg1[%c0_1, %c0_2, %c0_3] : memref<1x8x32xf32, #tpu.memory_space<vmem>>, vector<1x8x32xf32>
    %10 = vector.shape_cast %9 : vector<1x8x32xf32> to vector<8x32xf32>
    %cst = arith.constant dense<0.000000e+00> : vector<8xf32>
    %11 = vector.multi_reduction <add>, %10, %cst [1] : vector<8x32xf32> to vector<8xf32>
    %12 = vector.shape_cast %11 : vector<8xf32> to vector<8x1xf32>
    %cst_4 = arith.constant 3.200000e+01 : f32
    %13 = vector.broadcast %cst_4 : f32 to vector<8x1xf32>
    %14 = arith.divf %12, %13 : vector<8x1xf32>
    %15 = vector.broadcast %14 : vector<8x1xf32> to vector<8x32xf32>
    %16 = arith.subf %10, %15 : vector<8x32xf32>
    %17 = arith.mulf %16, %16 : vector<8x32xf32>
    %cst_5 = arith.constant dense<0.000000e+00> : vector<8xf32>
    %18 = vector.multi_reduction <add>, %17, %cst_5 [1] : vector<8x32xf32> to vector<8xf32>
    %19 = vector.shape_cast %18 : vector<8xf32> to vector<8x1xf32>
    %cst_6 = arith.constant 3.200000e+01 : f32
    %20 = vector.broadcast %cst_6 : f32 to vector<8x1xf32>
    %21 = arith.divf %19, %20 : vector<8x1xf32>
    %cst_7 = arith.constant 9.99999996E-13 : f32
    %22 = vector.broadcast %cst_7 : f32 to vector<8x1xf32>
    %23 = arith.addf %21, %22 : vector<8x1xf32>
    %24 = math.rsqrt %23 : vector<8x1xf32>
    %25 = vector.broadcast %24 : vector<8x1xf32> to vector<8x32xf32>
    %26 = arith.mulf %16, %25 : vector<8x32xf32>
    %27 = vector.shape_cast %2 : vector<32xf32> to vector<1x32xf32>
    %28 = vector.broadcast %27 : vector<1x32xf32> to vector<8x32xf32>
    %29 = arith.mulf %26, %28 : vector<8x32xf32>
    %30 = vector.shape_cast %4 : vector<32xf32> to vector<1x32xf32>
    %31 = vector.broadcast %30 : vector<1x32xf32> to vector<8x32xf32>
    %32 = arith.addf %29, %31 : vector<8x32xf32>
    %c0_8 = arith.constant 0 : index
    %c0_9 = arith.constant 0 : index
    %c0_10 = arith.constant 0 : index
    %33 = vector.load %arg2[%c0_8, %c0_9, %c0_10] : memref<1x1x8xf32, #tpu.memory_space<vmem>>, vector<1x1x8xf32>
    %34 = vector.shape_cast %33 : vector<1x1x8xf32> to vector<1x8xf32>
    %cst_11 = arith.constant 1.000000e+00 : f32
    %35 = vector.broadcast %cst_11 : f32 to vector<1x8xf32>
    %36 = arith.subf %34, %35 : vector<1x8xf32>
    %cst_12 = arith.constant 1.000000e+09 : f32
    %37 = vector.broadcast %cst_12 : f32 to vector<1x8xf32>
    %38 = arith.mulf %36, %37 : vector<1x8xf32>
    %c0_13 = arith.constant 0 : index
    %c0_14 = arith.constant 0 : index
    %c0_15 = arith.constant 0 : index
    %39 = vector.load %arg8[%c0_13, %c0_14, %c0_15] : memref<2x8x128xf32, #tpu.memory_space<vmem>>, vector<1x8x128xf32>
    %40 = vector.shape_cast %39 : vector<1x8x128xf32> to vector<8x128xf32>
    %41 = vector.extract_strided_slice %40 {offsets = [0, 0], sizes = [1, 32], strides = [1, 1]} : vector<8x128xf32> to vector<1x32xf32>
    %42 = vector.shape_cast %41 : vector<1x32xf32> to vector<32xf32>
    %43 = vector.extract_strided_slice %40 {offsets = [1, 0], sizes = [1, 32], strides = [1, 1]} : vector<8x128xf32> to vector<1x32xf32>
    %44 = vector.shape_cast %43 : vector<1x32xf32> to vector<32xf32>
    %45 = vector.extract_strided_slice %40 {offsets = [2, 0], sizes = [1, 32], strides = [1, 1]} : vector<8x128xf32> to vector<1x32xf32>
    %46 = vector.shape_cast %45 : vector<1x32xf32> to vector<32xf32>
    %47 = vector.extract_strided_slice %40 {offsets = [3, 0], sizes = [1, 64], strides = [1, 1]} : vector<8x128xf32> to vector<1x64xf32>
    %48 = vector.shape_cast %47 : vector<1x64xf32> to vector<64xf32>
    %49 = vector.extract_strided_slice %40 {offsets = [4, 0], sizes = [1, 32], strides = [1, 1]} : vector<8x128xf32> to vector<1x32xf32>
    %50 = vector.shape_cast %49 : vector<1x32xf32> to vector<32xf32>
    %51 = vector.extract_strided_slice %40 {offsets = [5, 0], sizes = [1, 32], strides = [1, 1]} : vector<8x128xf32> to vector<1x32xf32>
    %52 = vector.shape_cast %51 : vector<1x32xf32> to vector<32xf32>
    %53 = vector.extract_strided_slice %40 {offsets = [6, 0], sizes = [1, 32], strides = [1, 1]} : vector<8x128xf32> to vector<1x32xf32>
    %54 = vector.shape_cast %53 : vector<1x32xf32> to vector<32xf32>
    %55 = arith.truncf %32 : vector<8x32xf32> to vector<8x32xbf16>
    %c0_16 = arith.constant 0 : index
    %c0_17 = arith.constant 0 : index
    %c0_18 = arith.constant 0 : index
    %c0_19 = arith.constant 0 : index
    %c0_20 = arith.constant 0 : index
    %56 = vector.load %arg3[%c0_16, %c0_17, %c0_18, %c0_19, %c0_20] : memref<2x3x2x32x16xbf16, #tpu.memory_space<vmem>>, vector<1x1x1x32x16xbf16>
    %57 = vector.shape_cast %56 : vector<1x1x1x32x16xbf16> to vector<32x16xbf16>
    %cst_21 = arith.constant dense<0.000000e+00> : vector<8x16xf32>
    %58 = tpu.matmul %55, %57, %cst_21 {dimension_numbers = #tpu.dot_dimension_numbers<[1], [0], [0], [1], [0, 0, 1, 1], [], []>} : vector<8x32xbf16>, vector<32x16xbf16>, vector<8x16xf32> -> vector<8x16xf32>
    %c0_22 = arith.constant 0 : index
    %c0_23 = arith.constant 0 : index
    %c0_24 = arith.constant 0 : index
    %c0_25 = arith.constant 0 : index
    %c0_26 = arith.constant 0 : index
    %59 = vector.load %arg4[%c0_22, %c0_23, %c0_24, %c0_25, %c0_26] : memref<2x3x2x1x16xf32, #tpu.memory_space<vmem>>, vector<1x1x1x1x16xf32>
    %60 = vector.shape_cast %59 : vector<1x1x1x1x16xf32> to vector<1x16xf32>
    %61 = vector.broadcast %60 : vector<1x16xf32> to vector<8x16xf32>
    %62 = arith.addf %58, %61 : vector<8x16xf32>
    %c0_27 = arith.constant 0 : index
    %c1 = arith.constant 1 : index
    %c0_28 = arith.constant 0 : index
    %c0_29 = arith.constant 0 : index
    %c0_30 = arith.constant 0 : index
    %63 = vector.load %arg3[%c0_27, %c1, %c0_28, %c0_29, %c0_30] : memref<2x3x2x32x16xbf16, #tpu.memory_space<vmem>>, vector<1x1x1x32x16xbf16>
    %64 = vector.shape_cast %63 : vector<1x1x1x32x16xbf16> to vector<32x16xbf16>
    %cst_31 = arith.constant dense<0.000000e+00> : vector<8x16xf32>
    %65 = tpu.matmul %55, %64, %cst_31 {dimension_numbers = #tpu.dot_dimension_numbers<[1], [0], [0], [1], [0, 0, 1, 1], [], []>} : vector<8x32xbf16>, vector<32x16xbf16>, vector<8x16xf32> -> vector<8x16xf32>
    %c0_32 = arith.constant 0 : index
    %c1_33 = arith.constant 1 : index
    %c0_34 = arith.constant 0 : index
    %c0_35 = arith.constant 0 : index
    %c0_36 = arith.constant 0 : index
    %66 = vector.load %arg4[%c0_32, %c1_33, %c0_34, %c0_35, %c0_36] : memref<2x3x2x1x16xf32, #tpu.memory_space<vmem>>, vector<1x1x1x1x16xf32>
    %67 = vector.shape_cast %66 : vector<1x1x1x1x16xf32> to vector<1x16xf32>
    %68 = vector.broadcast %67 : vector<1x16xf32> to vector<8x16xf32>
    %69 = arith.addf %65, %68 : vector<8x16xf32>
    %c0_37 = arith.constant 0 : index
    %c2 = arith.constant 2 : index
    %c0_38 = arith.constant 0 : index
    %c0_39 = arith.constant 0 : index
    %c0_40 = arith.constant 0 : index
    %70 = vector.load %arg3[%c0_37, %c2, %c0_38, %c0_39, %c0_40] : memref<2x3x2x32x16xbf16, #tpu.memory_space<vmem>>, vector<1x1x1x32x16xbf16>
    %71 = vector.shape_cast %70 : vector<1x1x1x32x16xbf16> to vector<32x16xbf16>
    %cst_41 = arith.constant dense<0.000000e+00> : vector<8x16xf32>
    %72 = tpu.matmul %55, %71, %cst_41 {dimension_numbers = #tpu.dot_dimension_numbers<[1], [0], [0], [1], [0, 0, 1, 1], [], []>} : vector<8x32xbf16>, vector<32x16xbf16>, vector<8x16xf32> -> vector<8x16xf32>
    %c0_42 = arith.constant 0 : index
    %c2_43 = arith.constant 2 : index
    %c0_44 = arith.constant 0 : index
    %c0_45 = arith.constant 0 : index
    %c0_46 = arith.constant 0 : index
    %73 = vector.load %arg4[%c0_42, %c2_43, %c0_44, %c0_45, %c0_46] : memref<2x3x2x1x16xf32, #tpu.memory_space<vmem>>, vector<1x1x1x1x16xf32>
    %74 = vector.shape_cast %73 : vector<1x1x1x1x16xf32> to vector<1x16xf32>
    %75 = vector.broadcast %74 : vector<1x16xf32> to vector<8x16xf32>
    %76 = arith.addf %72, %75 : vector<8x16xf32>
    %77 = arith.truncf %62 : vector<8x16xf32> to vector<8x16xbf16>
    %78 = arith.truncf %69 : vector<8x16xf32> to vector<8x16xbf16>
    %cst_47 = arith.constant dense<0.000000e+00> : vector<8x8xf32>
    %79 = tpu.matmul %77, %78, %cst_47 {dimension_numbers = #tpu.dot_dimension_numbers<[1], [1], [0], [0], [0, 0, 1, 0], [], []>} : vector<8x16xbf16>, vector<8x16xbf16>, vector<8x8xf32> -> vector<8x8xf32>
    %80 = vector.broadcast %38 : vector<1x8xf32> to vector<8x8xf32>
    %81 = arith.addf %79, %80 : vector<8x8xf32>
    %cst_48 = arith.constant dense<0xFF800000> : vector<8xf32>
    %82 = vector.multi_reduction <maximumf>, %81, %cst_48 [1] : vector<8x8xf32> to vector<8xf32>
    %83 = vector.shape_cast %82 : vector<8xf32> to vector<8x1xf32>
    %84 = vector.broadcast %83 : vector<8x1xf32> to vector<8x8xf32>
    %85 = arith.subf %81, %84 : vector<8x8xf32>
    %86 = math.exp %85 : vector<8x8xf32>
    %cst_49 = arith.constant dense<0.000000e+00> : vector<8xf32>
    %87 = vector.multi_reduction <add>, %86, %cst_49 [1] : vector<8x8xf32> to vector<8xf32>
    %88 = vector.shape_cast %87 : vector<8xf32> to vector<8x1xf32>
    %89 = tpu.reciprocal %88 {approx = true} : vector<8x1xf32> -> vector<8x1xf32>
    %90 = vector.broadcast %89 : vector<8x1xf32> to vector<8x8xf32>
    %91 = arith.mulf %86, %90 : vector<8x8xf32>
    %92 = arith.truncf %91 : vector<8x8xf32> to vector<8x8xbf16>
    %93 = arith.truncf %76 : vector<8x16xf32> to vector<8x16xbf16>
    %cst_50 = arith.constant dense<0.000000e+00> : vector<8x16xf32>
    %94 = tpu.matmul %92, %93, %cst_50 {dimension_numbers = #tpu.dot_dimension_numbers<[1], [0], [0], [1], [0, 0, 1, 1], [], []>} : vector<8x8xbf16>, vector<8x16xbf16>, vector<8x16xf32> -> vector<8x16xf32>
    %95 = arith.truncf %94 : vector<8x16xf32> to vector<8x16xbf16>
    %c0_51 = arith.constant 0 : index
    %c0_52 = arith.constant 0 : index
    %c0_53 = arith.constant 0 : index
    %c0_54 = arith.constant 0 : index
    %96 = vector.load %arg5[%c0_51, %c0_52, %c0_53, %c0_54] : memref<2x2x16x32xbf16, #tpu.memory_space<vmem>>, vector<1x1x16x32xbf16>
    %97 = vector.shape_cast %96 : vector<1x1x16x32xbf16> to vector<16x32xbf16>
    %cst_55 = arith.constant dense<0.000000e+00> : vector<8x32xf32>
    %98 = tpu.matmul %95, %97, %cst_55 {dimension_numbers = #tpu.dot_dimension_numbers<[1], [0], [0], [1], [0, 0, 1, 1], [], []>} : vector<8x16xbf16>, vector<16x32xbf16>, vector<8x32xf32> -> vector<8x32xf32>
    %c0_56 = arith.constant 0 : index
    %c0_57 = arith.constant 0 : index
    %c1_58 = arith.constant 1 : index
    %c0_59 = arith.constant 0 : index
    %c0_60 = arith.constant 0 : index
    %99 = vector.load %arg3[%c0_56, %c0_57, %c1_58, %c0_59, %c0_60] : memref<2x3x2x32x16xbf16, #tpu.memory_space<vmem>>, vector<1x1x1x32x16xbf16>
    %100 = vector.shape_cast %99 : vector<1x1x1x32x16xbf16> to vector<32x16xbf16>
    %cst_61 = arith.constant dense<0.000000e+00> : vector<8x16xf32>
    %101 = tpu.matmul %55, %100, %cst_61 {dimension_numbers = #tpu.dot_dimension_numbers<[1], [0], [0], [1], [0, 0, 1, 1], [], []>} : vector<8x32xbf16>, vector<32x16xbf16>, vector<8x16xf32> -> vector<8x16xf32>
    %c0_62 = arith.constant 0 : index
    %c0_63 = arith.constant 0 : index
    %c1_64 = arith.constant 1 : index
    %c0_65 = arith.constant 0 : index
    %c0_66 = arith.constant 0 : index
    %102 = vector.load %arg4[%c0_62, %c0_63, %c1_64, %c0_65, %c0_66] : memref<2x3x2x1x16xf32, #tpu.memory_space<vmem>>, vector<1x1x1x1x16xf32>
    %103 = vector.shape_cast %102 : vector<1x1x1x1x16xf32> to vector<1x16xf32>
    %104 = vector.broadcast %103 : vector<1x16xf32> to vector<8x16xf32>
    %105 = arith.addf %101, %104 : vector<8x16xf32>
    %c0_67 = arith.constant 0 : index
    %c1_68 = arith.constant 1 : index
    %c1_69 = arith.constant 1 : index
    %c0_70 = arith.constant 0 : index
    %c0_71 = arith.constant 0 : index
    %106 = vector.load %arg3[%c0_67, %c1_68, %c1_69, %c0_70, %c0_71] : memref<2x3x2x32x16xbf16, #tpu.memory_space<vmem>>, vector<1x1x1x32x16xbf16>
    %107 = vector.shape_cast %106 : vector<1x1x1x32x16xbf16> to vector<32x16xbf16>
    %cst_72 = arith.constant dense<0.000000e+00> : vector<8x16xf32>
    %108 = tpu.matmul %55, %107, %cst_72 {dimension_numbers = #tpu.dot_dimension_numbers<[1], [0], [0], [1], [0, 0, 1, 1], [], []>} : vector<8x32xbf16>, vector<32x16xbf16>, vector<8x16xf32> -> vector<8x16xf32>
    %c0_73 = arith.constant 0 : index
    %c1_74 = arith.constant 1 : index
    %c1_75 = arith.constant 1 : index
    %c0_76 = arith.constant 0 : index
    %c0_77 = arith.constant 0 : index
    %109 = vector.load %arg4[%c0_73, %c1_74, %c1_75, %c0_76, %c0_77] : memref<2x3x2x1x16xf32, #tpu.memory_space<vmem>>, vector<1x1x1x1x16xf32>
    %110 = vector.shape_cast %109 : vector<1x1x1x1x16xf32> to vector<1x16xf32>
    %111 = vector.broadcast %110 : vector<1x16xf32> to vector<8x16xf32>
    %112 = arith.addf %108, %111 : vector<8x16xf32>
    %c0_78 = arith.constant 0 : index
    %c2_79 = arith.constant 2 : index
    %c1_80 = arith.constant 1 : index
    %c0_81 = arith.constant 0 : index
    %c0_82 = arith.constant 0 : index
    %113 = vector.load %arg3[%c0_78, %c2_79, %c1_80, %c0_81, %c0_82] : memref<2x3x2x32x16xbf16, #tpu.memory_space<vmem>>, vector<1x1x1x32x16xbf16>
    %114 = vector.shape_cast %113 : vector<1x1x1x32x16xbf16> to vector<32x16xbf16>
    %cst_83 = arith.constant dense<0.000000e+00> : vector<8x16xf32>
    %115 = tpu.matmul %55, %114, %cst_83 {dimension_numbers = #tpu.dot_dimension_numbers<[1], [0], [0], [1], [0, 0, 1, 1], [], []>} : vector<8x32xbf16>, vector<32x16xbf16>, vector<8x16xf32> -> vector<8x16xf32>
    %c0_84 = arith.constant 0 : index
    %c2_85 = arith.constant 2 : index
    %c1_86 = arith.constant 1 : index
    %c0_87 = arith.constant 0 : index
    %c0_88 = arith.constant 0 : index
    %116 = vector.load %arg4[%c0_84, %c2_85, %c1_86, %c0_87, %c0_88] : memref<2x3x2x1x16xf32, #tpu.memory_space<vmem>>, vector<1x1x1x1x16xf32>
    %117 = vector.shape_cast %116 : vector<1x1x1x1x16xf32> to vector<1x16xf32>
    %118 = vector.broadcast %117 : vector<1x16xf32> to vector<8x16xf32>
    %119 = arith.addf %115, %118 : vector<8x16xf32>
    %120 = arith.truncf %105 : vector<8x16xf32> to vector<8x16xbf16>
    %121 = arith.truncf %112 : vector<8x16xf32> to vector<8x16xbf16>
    %cst_89 = arith.constant dense<0.000000e+00> : vector<8x8xf32>
    %122 = tpu.matmul %120, %121, %cst_89 {dimension_numbers = #tpu.dot_dimension_numbers<[1], [1], [0], [0], [0, 0, 1, 0], [], []>} : vector<8x16xbf16>, vector<8x16xbf16>, vector<8x8xf32> -> vector<8x8xf32>
    %123 = vector.broadcast %38 : vector<1x8xf32> to vector<8x8xf32>
    %124 = arith.addf %122, %123 : vector<8x8xf32>
    %cst_90 = arith.constant dense<0xFF800000> : vector<8xf32>
    %125 = vector.multi_reduction <maximumf>, %124, %cst_90 [1] : vector<8x8xf32> to vector<8xf32>
    %126 = vector.shape_cast %125 : vector<8xf32> to vector<8x1xf32>
    %127 = vector.broadcast %126 : vector<8x1xf32> to vector<8x8xf32>
    %128 = arith.subf %124, %127 : vector<8x8xf32>
    %129 = math.exp %128 : vector<8x8xf32>
    %cst_91 = arith.constant dense<0.000000e+00> : vector<8xf32>
    %130 = vector.multi_reduction <add>, %129, %cst_91 [1] : vector<8x8xf32> to vector<8xf32>
    %131 = vector.shape_cast %130 : vector<8xf32> to vector<8x1xf32>
    %132 = tpu.reciprocal %131 {approx = true} : vector<8x1xf32> -> vector<8x1xf32>
    %133 = vector.broadcast %132 : vector<8x1xf32> to vector<8x8xf32>
    %134 = arith.mulf %129, %133 : vector<8x8xf32>
    %135 = arith.truncf %134 : vector<8x8xf32> to vector<8x8xbf16>
    %136 = arith.truncf %119 : vector<8x16xf32> to vector<8x16xbf16>
    %cst_92 = arith.constant dense<0.000000e+00> : vector<8x16xf32>
    %137 = tpu.matmul %135, %136, %cst_92 {dimension_numbers = #tpu.dot_dimension_numbers<[1], [0], [0], [1], [0, 0, 1, 1], [], []>} : vector<8x8xbf16>, vector<8x16xbf16>, vector<8x16xf32> -> vector<8x16xf32>
    %138 = arith.truncf %137 : vector<8x16xf32> to vector<8x16xbf16>
    %c0_93 = arith.constant 0 : index
    %c1_94 = arith.constant 1 : index
    %c0_95 = arith.constant 0 : index
    %c0_96 = arith.constant 0 : index
    %139 = vector.load %arg5[%c0_93, %c1_94, %c0_95, %c0_96] : memref<2x2x16x32xbf16, #tpu.memory_space<vmem>>, vector<1x1x16x32xbf16>
    %140 = vector.shape_cast %139 : vector<1x1x16x32xbf16> to vector<16x32xbf16>
    %cst_97 = arith.constant dense<0.000000e+00> : vector<8x32xf32>
    %141 = tpu.matmul %138, %140, %cst_97 {dimension_numbers = #tpu.dot_dimension_numbers<[1], [0], [0], [1], [0, 0, 1, 1], [], []>} : vector<8x16xbf16>, vector<16x32xbf16>, vector<8x32xf32> -> vector<8x32xf32>
    %142 = arith.addf %98, %141 : vector<8x32xf32>
    %143 = vector.shape_cast %42 : vector<32xf32> to vector<1x32xf32>
    %144 = vector.broadcast %143 : vector<1x32xf32> to vector<8x32xf32>
    %145 = arith.addf %142, %144 : vector<8x32xf32>
    %146 = arith.addf %145, %32 : vector<8x32xf32>
    %cst_98 = arith.constant dense<0.000000e+00> : vector<8xf32>
    %147 = vector.multi_reduction <add>, %146, %cst_98 [1] : vector<8x32xf32> to vector<8xf32>
    %148 = vector.shape_cast %147 : vector<8xf32> to vector<8x1xf32>
    %cst_99 = arith.constant 3.200000e+01 : f32
    %149 = vector.broadcast %cst_99 : f32 to vector<8x1xf32>
    %150 = arith.divf %148, %149 : vector<8x1xf32>
    %151 = vector.broadcast %150 : vector<8x1xf32> to vector<8x32xf32>
    %152 = arith.subf %146, %151 : vector<8x32xf32>
    %153 = arith.mulf %152, %152 : vector<8x32xf32>
    %cst_100 = arith.constant dense<0.000000e+00> : vector<8xf32>
    %154 = vector.multi_reduction <add>, %153, %cst_100 [1] : vector<8x32xf32> to vector<8xf32>
    %155 = vector.shape_cast %154 : vector<8xf32> to vector<8x1xf32>
    %cst_101 = arith.constant 3.200000e+01 : f32
    %156 = vector.broadcast %cst_101 : f32 to vector<8x1xf32>
    %157 = arith.divf %155, %156 : vector<8x1xf32>
    %cst_102 = arith.constant 9.99999996E-13 : f32
    %158 = vector.broadcast %cst_102 : f32 to vector<8x1xf32>
    %159 = arith.addf %157, %158 : vector<8x1xf32>
    %160 = math.rsqrt %159 : vector<8x1xf32>
    %161 = vector.broadcast %160 : vector<8x1xf32> to vector<8x32xf32>
    %162 = arith.mulf %152, %161 : vector<8x32xf32>
    %163 = vector.shape_cast %44 : vector<32xf32> to vector<1x32xf32>
    %164 = vector.broadcast %163 : vector<1x32xf32> to vector<8x32xf32>
    %165 = arith.mulf %162, %164 : vector<8x32xf32>
    %166 = vector.shape_cast %46 : vector<32xf32> to vector<1x32xf32>
    %167 = vector.broadcast %166 : vector<1x32xf32> to vector<8x32xf32>
    %168 = arith.addf %165, %167 : vector<8x32xf32>
    %169 = arith.truncf %168 : vector<8x32xf32> to vector<8x32xbf16>
    %c0_103 = arith.constant 0 : index
    %c0_104 = arith.constant 0 : index
    %c0_105 = arith.constant 0 : index
    %170 = vector.load %arg6[%c0_103, %c0_104, %c0_105] : memref<2x32x64xbf16, #tpu.memory_space<vmem>>, vector<1x32x64xbf16>
    %171 = vector.shape_cast %170 : vector<1x32x64xbf16> to vector<32x64xbf16>
    %cst_106 = arith.constant dense<0.000000e+00> : vector<8x64xf32>
    %172 = tpu.matmul %169, %171, %cst_106 {dimension_numbers = #tpu.dot_dimension_numbers<[1], [0], [0], [1], [0, 0, 1, 1], [], []>} : vector<8x32xbf16>, vector<32x64xbf16>, vector<8x64xf32> -> vector<8x64xf32>
    %173 = vector.shape_cast %48 : vector<64xf32> to vector<1x64xf32>
    %174 = vector.broadcast %173 : vector<1x64xf32> to vector<8x64xf32>
    %175 = arith.addf %172, %174 : vector<8x64xf32>
    %cst_107 = arith.constant 5.000000e-01 : f32
    %176 = vector.broadcast %cst_107 : f32 to vector<8x64xf32>
    %177 = arith.mulf %176, %175 : vector<8x64xf32>
    %cst_108 = arith.constant 4.471500e-02 : f32
    %178 = vector.broadcast %cst_108 : f32 to vector<8x64xf32>
    %179 = arith.mulf %178, %175 : vector<8x64xf32>
    %180 = arith.mulf %179, %175 : vector<8x64xf32>
    %181 = arith.mulf %180, %175 : vector<8x64xf32>
    %182 = arith.addf %175, %181 : vector<8x64xf32>
    %cst_109 = arith.constant 0.797884583 : f32
    %183 = vector.broadcast %cst_109 : f32 to vector<8x64xf32>
    %184 = arith.mulf %183, %182 : vector<8x64xf32>
    %185 = math.tanh %184 : vector<8x64xf32>
    %cst_110 = arith.constant 1.000000e+00 : f32
    %186 = vector.broadcast %cst_110 : f32 to vector<8x64xf32>
    %187 = arith.addf %186, %185 : vector<8x64xf32>
    %188 = arith.mulf %177, %187 : vector<8x64xf32>
    %189 = arith.truncf %188 : vector<8x64xf32> to vector<8x64xbf16>
    %c0_111 = arith.constant 0 : index
    %c0_112 = arith.constant 0 : index
    %c0_113 = arith.constant 0 : index
    %190 = vector.load %arg7[%c0_111, %c0_112, %c0_113] : memref<2x64x32xbf16, #tpu.memory_space<vmem>>, vector<1x64x32xbf16>
    %191 = vector.shape_cast %190 : vector<1x64x32xbf16> to vector<64x32xbf16>
    %cst_114 = arith.constant dense<0.000000e+00> : vector<8x32xf32>
    %192 = tpu.matmul %189, %191, %cst_114 {dimension_numbers = #tpu.dot_dimension_numbers<[1], [0], [0], [1], [0, 0, 1, 1], [], []>} : vector<8x64xbf16>, vector<64x32xbf16>, vector<8x32xf32> -> vector<8x32xf32>
    %193 = vector.shape_cast %50 : vector<32xf32> to vector<1x32xf32>
    %194 = vector.broadcast %193 : vector<1x32xf32> to vector<8x32xf32>
    %195 = arith.addf %192, %194 : vector<8x32xf32>
    %196 = arith.addf %195, %168 : vector<8x32xf32>
    %cst_115 = arith.constant dense<0.000000e+00> : vector<8xf32>
    %197 = vector.multi_reduction <add>, %196, %cst_115 [1] : vector<8x32xf32> to vector<8xf32>
    %198 = vector.shape_cast %197 : vector<8xf32> to vector<8x1xf32>
    %cst_116 = arith.constant 3.200000e+01 : f32
    %199 = vector.broadcast %cst_116 : f32 to vector<8x1xf32>
    %200 = arith.divf %198, %199 : vector<8x1xf32>
    %201 = vector.broadcast %200 : vector<8x1xf32> to vector<8x32xf32>
    %202 = arith.subf %196, %201 : vector<8x32xf32>
    %203 = arith.mulf %202, %202 : vector<8x32xf32>
    %cst_117 = arith.constant dense<0.000000e+00> : vector<8xf32>
    %204 = vector.multi_reduction <add>, %203, %cst_117 [1] : vector<8x32xf32> to vector<8xf32>
    %205 = vector.shape_cast %204 : vector<8xf32> to vector<8x1xf32>
    %cst_118 = arith.constant 3.200000e+01 : f32
    %206 = vector.broadcast %cst_118 : f32 to vector<8x1xf32>
    %207 = arith.divf %205, %206 : vector<8x1xf32>
    %cst_119 = arith.constant 9.99999996E-13 : f32
    %208 = vector.broadcast %cst_119 : f32 to vector<8x1xf32>
    %209 = arith.addf %207, %208 : vector<8x1xf32>
    %210 = math.rsqrt %209 : vector<8x1xf32>
    %211 = vector.broadcast %210 : vector<8x1xf32> to vector<8x32xf32>
    %212 = arith.mulf %202, %211 : vector<8x32xf32>
    %213 = vector.shape_cast %52 : vector<32xf32> to vector<1x32xf32>
    %214 = vector.broadcast %213 : vector<1x32xf32> to vector<8x32xf32>
    %215 = arith.mulf %212, %214 : vector<8x32xf32>
    %216 = vector.shape_cast %54 : vector<32xf32> to vector<1x32xf32>
    %217 = vector.broadcast %216 : vector<1x32xf32> to vector<8x32xf32>
    %218 = arith.addf %215, %217 : vector<8x32xf32>
    %c1_120 = arith.constant 1 : index
    %c0_121 = arith.constant 0 : index
    %c0_122 = arith.constant 0 : index
    %219 = vector.load %arg8[%c1_120, %c0_121, %c0_122] : memref<2x8x128xf32, #tpu.memory_space<vmem>>, vector<1x8x128xf32>
    %220 = vector.shape_cast %219 : vector<1x8x128xf32> to vector<8x128xf32>
    %221 = vector.extract_strided_slice %220 {offsets = [0, 0], sizes = [1, 32], strides = [1, 1]} : vector<8x128xf32> to vector<1x32xf32>
    %222 = vector.shape_cast %221 : vector<1x32xf32> to vector<32xf32>
    %223 = vector.extract_strided_slice %220 {offsets = [1, 0], sizes = [1, 32], strides = [1, 1]} : vector<8x128xf32> to vector<1x32xf32>
    %224 = vector.shape_cast %223 : vector<1x32xf32> to vector<32xf32>
    %225 = vector.extract_strided_slice %220 {offsets = [2, 0], sizes = [1, 32], strides = [1, 1]} : vector<8x128xf32> to vector<1x32xf32>
    %226 = vector.shape_cast %225 : vector<1x32xf32> to vector<32xf32>
    %227 = vector.extract_strided_slice %220 {offsets = [3, 0], sizes = [1, 64], strides = [1, 1]} : vector<8x128xf32> to vector<1x64xf32>
    %228 = vector.shape_cast %227 : vector<1x64xf32> to vector<64xf32>
    %229 = vector.extract_strided_slice %220 {offsets = [4, 0], sizes = [1, 32], strides = [1, 1]} : vector<8x128xf32> to vector<1x32xf32>
    %230 = vector.shape_cast %229 : vector<1x32xf32> to vector<32xf32>
    %231 = vector.extract_strided_slice %220 {offsets = [5, 0], sizes = [1, 32], strides = [1, 1]} : vector<8x128xf32> to vector<1x32xf32>
    %232 = vector.shape_cast %231 : vector<1x32xf32> to vector<32xf32>
    %233 = vector.extract_strided_slice %220 {offsets = [6, 0], sizes = [1, 32], strides = [1, 1]} : vector<8x128xf32> to vector<1x32xf32>
    %234 = vector.shape_cast %233 : vector<1x32xf32> to vector<32xf32>
    %235 = arith.truncf %218 : vector<8x32xf32> to vector<8x32xbf16>
    %c1_123 = arith.constant 1 : index
    %c0_124 = arith.constant 0 : index
    %c0_125 = arith.constant 0 : index
    %c0_126 = arith.constant 0 : index
    %c0_127 = arith.constant 0 : index
    %236 = vector.load %arg3[%c1_123, %c0_124, %c0_125, %c0_126, %c0_127] : memref<2x3x2x32x16xbf16, #tpu.memory_space<vmem>>, vector<1x1x1x32x16xbf16>
    %237 = vector.shape_cast %236 : vector<1x1x1x32x16xbf16> to vector<32x16xbf16>
    %cst_128 = arith.constant dense<0.000000e+00> : vector<8x16xf32>
    %238 = tpu.matmul %235, %237, %cst_128 {dimension_numbers = #tpu.dot_dimension_numbers<[1], [0], [0], [1], [0, 0, 1, 1], [], []>} : vector<8x32xbf16>, vector<32x16xbf16>, vector<8x16xf32> -> vector<8x16xf32>
    %c1_129 = arith.constant 1 : index
    %c0_130 = arith.constant 0 : index
    %c0_131 = arith.constant 0 : index
    %c0_132 = arith.constant 0 : index
    %c0_133 = arith.constant 0 : index
    %239 = vector.load %arg4[%c1_129, %c0_130, %c0_131, %c0_132, %c0_133] : memref<2x3x2x1x16xf32, #tpu.memory_space<vmem>>, vector<1x1x1x1x16xf32>
    %240 = vector.shape_cast %239 : vector<1x1x1x1x16xf32> to vector<1x16xf32>
    %241 = vector.broadcast %240 : vector<1x16xf32> to vector<8x16xf32>
    %242 = arith.addf %238, %241 : vector<8x16xf32>
    %c1_134 = arith.constant 1 : index
    %c1_135 = arith.constant 1 : index
    %c0_136 = arith.constant 0 : index
    %c0_137 = arith.constant 0 : index
    %c0_138 = arith.constant 0 : index
    %243 = vector.load %arg3[%c1_134, %c1_135, %c0_136, %c0_137, %c0_138] : memref<2x3x2x32x16xbf16, #tpu.memory_space<vmem>>, vector<1x1x1x32x16xbf16>
    %244 = vector.shape_cast %243 : vector<1x1x1x32x16xbf16> to vector<32x16xbf16>
    %cst_139 = arith.constant dense<0.000000e+00> : vector<8x16xf32>
    %245 = tpu.matmul %235, %244, %cst_139 {dimension_numbers = #tpu.dot_dimension_numbers<[1], [0], [0], [1], [0, 0, 1, 1], [], []>} : vector<8x32xbf16>, vector<32x16xbf16>, vector<8x16xf32> -> vector<8x16xf32>
    %c1_140 = arith.constant 1 : index
    %c1_141 = arith.constant 1 : index
    %c0_142 = arith.constant 0 : index
    %c0_143 = arith.constant 0 : index
    %c0_144 = arith.constant 0 : index
    %246 = vector.load %arg4[%c1_140, %c1_141, %c0_142, %c0_143, %c0_144] : memref<2x3x2x1x16xf32, #tpu.memory_space<vmem>>, vector<1x1x1x1x16xf32>
    %247 = vector.shape_cast %246 : vector<1x1x1x1x16xf32> to vector<1x16xf32>
    %248 = vector.broadcast %247 : vector<1x16xf32> to vector<8x16xf32>
    %249 = arith.addf %245, %248 : vector<8x16xf32>
    %c1_145 = arith.constant 1 : index
    %c2_146 = arith.constant 2 : index
    %c0_147 = arith.constant 0 : index
    %c0_148 = arith.constant 0 : index
    %c0_149 = arith.constant 0 : index
    %250 = vector.load %arg3[%c1_145, %c2_146, %c0_147, %c0_148, %c0_149] : memref<2x3x2x32x16xbf16, #tpu.memory_space<vmem>>, vector<1x1x1x32x16xbf16>
    %251 = vector.shape_cast %250 : vector<1x1x1x32x16xbf16> to vector<32x16xbf16>
    %cst_150 = arith.constant dense<0.000000e+00> : vector<8x16xf32>
    %252 = tpu.matmul %235, %251, %cst_150 {dimension_numbers = #tpu.dot_dimension_numbers<[1], [0], [0], [1], [0, 0, 1, 1], [], []>} : vector<8x32xbf16>, vector<32x16xbf16>, vector<8x16xf32> -> vector<8x16xf32>
    %c1_151 = arith.constant 1 : index
    %c2_152 = arith.constant 2 : index
    %c0_153 = arith.constant 0 : index
    %c0_154 = arith.constant 0 : index
    %c0_155 = arith.constant 0 : index
    %253 = vector.load %arg4[%c1_151, %c2_152, %c0_153, %c0_154, %c0_155] : memref<2x3x2x1x16xf32, #tpu.memory_space<vmem>>, vector<1x1x1x1x16xf32>
    %254 = vector.shape_cast %253 : vector<1x1x1x1x16xf32> to vector<1x16xf32>
    %255 = vector.broadcast %254 : vector<1x16xf32> to vector<8x16xf32>
    %256 = arith.addf %252, %255 : vector<8x16xf32>
    %257 = arith.truncf %242 : vector<8x16xf32> to vector<8x16xbf16>
    %258 = arith.truncf %249 : vector<8x16xf32> to vector<8x16xbf16>
    %cst_156 = arith.constant dense<0.000000e+00> : vector<8x8xf32>
    %259 = tpu.matmul %257, %258, %cst_156 {dimension_numbers = #tpu.dot_dimension_numbers<[1], [1], [0], [0], [0, 0, 1, 0], [], []>} : vector<8x16xbf16>, vector<8x16xbf16>, vector<8x8xf32> -> vector<8x8xf32>
    %260 = vector.broadcast %38 : vector<1x8xf32> to vector<8x8xf32>
    %261 = arith.addf %259, %260 : vector<8x8xf32>
    %cst_157 = arith.constant dense<0xFF800000> : vector<8xf32>
    %262 = vector.multi_reduction <maximumf>, %261, %cst_157 [1] : vector<8x8xf32> to vector<8xf32>
    %263 = vector.shape_cast %262 : vector<8xf32> to vector<8x1xf32>
    %264 = vector.broadcast %263 : vector<8x1xf32> to vector<8x8xf32>
    %265 = arith.subf %261, %264 : vector<8x8xf32>
    %266 = math.exp %265 : vector<8x8xf32>
    %cst_158 = arith.constant dense<0.000000e+00> : vector<8xf32>
    %267 = vector.multi_reduction <add>, %266, %cst_158 [1] : vector<8x8xf32> to vector<8xf32>
    %268 = vector.shape_cast %267 : vector<8xf32> to vector<8x1xf32>
    %269 = tpu.reciprocal %268 {approx = true} : vector<8x1xf32> -> vector<8x1xf32>
    %270 = vector.broadcast %269 : vector<8x1xf32> to vector<8x8xf32>
    %271 = arith.mulf %266, %270 : vector<8x8xf32>
    %272 = arith.truncf %271 : vector<8x8xf32> to vector<8x8xbf16>
    %273 = arith.truncf %256 : vector<8x16xf32> to vector<8x16xbf16>
    %cst_159 = arith.constant dense<0.000000e+00> : vector<8x16xf32>
    %274 = tpu.matmul %272, %273, %cst_159 {dimension_numbers = #tpu.dot_dimension_numbers<[1], [0], [0], [1], [0, 0, 1, 1], [], []>} : vector<8x8xbf16>, vector<8x16xbf16>, vector<8x16xf32> -> vector<8x16xf32>
    %275 = arith.truncf %274 : vector<8x16xf32> to vector<8x16xbf16>
    %c1_160 = arith.constant 1 : index
    %c0_161 = arith.constant 0 : index
    %c0_162 = arith.constant 0 : index
    %c0_163 = arith.constant 0 : index
    %276 = vector.load %arg5[%c1_160, %c0_161, %c0_162, %c0_163] : memref<2x2x16x32xbf16, #tpu.memory_space<vmem>>, vector<1x1x16x32xbf16>
    %277 = vector.shape_cast %276 : vector<1x1x16x32xbf16> to vector<16x32xbf16>
    %cst_164 = arith.constant dense<0.000000e+00> : vector<8x32xf32>
    %278 = tpu.matmul %275, %277, %cst_164 {dimension_numbers = #tpu.dot_dimension_numbers<[1], [0], [0], [1], [0, 0, 1, 1], [], []>} : vector<8x16xbf16>, vector<16x32xbf16>, vector<8x32xf32> -> vector<8x32xf32>
    %c1_165 = arith.constant 1 : index
    %c0_166 = arith.constant 0 : index
    %c1_167 = arith.constant 1 : index
    %c0_168 = arith.constant 0 : index
    %c0_169 = arith.constant 0 : index
    %279 = vector.load %arg3[%c1_165, %c0_166, %c1_167, %c0_168, %c0_169] : memref<2x3x2x32x16xbf16, #tpu.memory_space<vmem>>, vector<1x1x1x32x16xbf16>
    %280 = vector.shape_cast %279 : vector<1x1x1x32x16xbf16> to vector<32x16xbf16>
    %cst_170 = arith.constant dense<0.000000e+00> : vector<8x16xf32>
    %281 = tpu.matmul %235, %280, %cst_170 {dimension_numbers = #tpu.dot_dimension_numbers<[1], [0], [0], [1], [0, 0, 1, 1], [], []>} : vector<8x32xbf16>, vector<32x16xbf16>, vector<8x16xf32> -> vector<8x16xf32>
    %c1_171 = arith.constant 1 : index
    %c0_172 = arith.constant 0 : index
    %c1_173 = arith.constant 1 : index
    %c0_174 = arith.constant 0 : index
    %c0_175 = arith.constant 0 : index
    %282 = vector.load %arg4[%c1_171, %c0_172, %c1_173, %c0_174, %c0_175] : memref<2x3x2x1x16xf32, #tpu.memory_space<vmem>>, vector<1x1x1x1x16xf32>
    %283 = vector.shape_cast %282 : vector<1x1x1x1x16xf32> to vector<1x16xf32>
    %284 = vector.broadcast %283 : vector<1x16xf32> to vector<8x16xf32>
    %285 = arith.addf %281, %284 : vector<8x16xf32>
    %c1_176 = arith.constant 1 : index
    %c1_177 = arith.constant 1 : index
    %c1_178 = arith.constant 1 : index
    %c0_179 = arith.constant 0 : index
    %c0_180 = arith.constant 0 : index
    %286 = vector.load %arg3[%c1_176, %c1_177, %c1_178, %c0_179, %c0_180] : memref<2x3x2x32x16xbf16, #tpu.memory_space<vmem>>, vector<1x1x1x32x16xbf16>
    %287 = vector.shape_cast %286 : vector<1x1x1x32x16xbf16> to vector<32x16xbf16>
    %cst_181 = arith.constant dense<0.000000e+00> : vector<8x16xf32>
    %288 = tpu.matmul %235, %287, %cst_181 {dimension_numbers = #tpu.dot_dimension_numbers<[1], [0], [0], [1], [0, 0, 1, 1], [], []>} : vector<8x32xbf16>, vector<32x16xbf16>, vector<8x16xf32> -> vector<8x16xf32>
    %c1_182 = arith.constant 1 : index
    %c1_183 = arith.constant 1 : index
    %c1_184 = arith.constant 1 : index
    %c0_185 = arith.constant 0 : index
    %c0_186 = arith.constant 0 : index
    %289 = vector.load %arg4[%c1_182, %c1_183, %c1_184, %c0_185, %c0_186] : memref<2x3x2x1x16xf32, #tpu.memory_space<vmem>>, vector<1x1x1x1x16xf32>
    %290 = vector.shape_cast %289 : vector<1x1x1x1x16xf32> to vector<1x16xf32>
    %291 = vector.broadcast %290 : vector<1x16xf32> to vector<8x16xf32>
    %292 = arith.addf %288, %291 : vector<8x16xf32>
    %c1_187 = arith.constant 1 : index
    %c2_188 = arith.constant 2 : index
    %c1_189 = arith.constant 1 : index
    %c0_190 = arith.constant 0 : index
    %c0_191 = arith.constant 0 : index
    %293 = vector.load %arg3[%c1_187, %c2_188, %c1_189, %c0_190, %c0_191] : memref<2x3x2x32x16xbf16, #tpu.memory_space<vmem>>, vector<1x1x1x32x16xbf16>
    %294 = vector.shape_cast %293 : vector<1x1x1x32x16xbf16> to vector<32x16xbf16>
    %cst_192 = arith.constant dense<0.000000e+00> : vector<8x16xf32>
    %295 = tpu.matmul %235, %294, %cst_192 {dimension_numbers = #tpu.dot_dimension_numbers<[1], [0], [0], [1], [0, 0, 1, 1], [], []>} : vector<8x32xbf16>, vector<32x16xbf16>, vector<8x16xf32> -> vector<8x16xf32>
    %c1_193 = arith.constant 1 : index
    %c2_194 = arith.constant 2 : index
    %c1_195 = arith.constant 1 : index
    %c0_196 = arith.constant 0 : index
    %c0_197 = arith.constant 0 : index
    %296 = vector.load %arg4[%c1_193, %c2_194, %c1_195, %c0_196, %c0_197] : memref<2x3x2x1x16xf32, #tpu.memory_space<vmem>>, vector<1x1x1x1x16xf32>
    %297 = vector.shape_cast %296 : vector<1x1x1x1x16xf32> to vector<1x16xf32>
    %298 = vector.broadcast %297 : vector<1x16xf32> to vector<8x16xf32>
    %299 = arith.addf %295, %298 : vector<8x16xf32>
    %300 = arith.truncf %285 : vector<8x16xf32> to vector<8x16xbf16>
    %301 = arith.truncf %292 : vector<8x16xf32> to vector<8x16xbf16>
    %cst_198 = arith.constant dense<0.000000e+00> : vector<8x8xf32>
    %302 = tpu.matmul %300, %301, %cst_198 {dimension_numbers = #tpu.dot_dimension_numbers<[1], [1], [0], [0], [0, 0, 1, 0], [], []>} : vector<8x16xbf16>, vector<8x16xbf16>, vector<8x8xf32> -> vector<8x8xf32>
    %303 = vector.broadcast %38 : vector<1x8xf32> to vector<8x8xf32>
    %304 = arith.addf %302, %303 : vector<8x8xf32>
    %cst_199 = arith.constant dense<0xFF800000> : vector<8xf32>
    %305 = vector.multi_reduction <maximumf>, %304, %cst_199 [1] : vector<8x8xf32> to vector<8xf32>
    %306 = vector.shape_cast %305 : vector<8xf32> to vector<8x1xf32>
    %307 = vector.broadcast %306 : vector<8x1xf32> to vector<8x8xf32>
    %308 = arith.subf %304, %307 : vector<8x8xf32>
    %309 = math.exp %308 : vector<8x8xf32>
    %cst_200 = arith.constant dense<0.000000e+00> : vector<8xf32>
    %310 = vector.multi_reduction <add>, %309, %cst_200 [1] : vector<8x8xf32> to vector<8xf32>
    %311 = vector.shape_cast %310 : vector<8xf32> to vector<8x1xf32>
    %312 = tpu.reciprocal %311 {approx = true} : vector<8x1xf32> -> vector<8x1xf32>
    %313 = vector.broadcast %312 : vector<8x1xf32> to vector<8x8xf32>
    %314 = arith.mulf %309, %313 : vector<8x8xf32>
    %315 = arith.truncf %314 : vector<8x8xf32> to vector<8x8xbf16>
    %316 = arith.truncf %299 : vector<8x16xf32> to vector<8x16xbf16>
    %cst_201 = arith.constant dense<0.000000e+00> : vector<8x16xf32>
    %317 = tpu.matmul %315, %316, %cst_201 {dimension_numbers = #tpu.dot_dimension_numbers<[1], [0], [0], [1], [0, 0, 1, 1], [], []>} : vector<8x8xbf16>, vector<8x16xbf16>, vector<8x16xf32> -> vector<8x16xf32>
    %318 = arith.truncf %317 : vector<8x16xf32> to vector<8x16xbf16>
    %c1_202 = arith.constant 1 : index
    %c1_203 = arith.constant 1 : index
    %c0_204 = arith.constant 0 : index
    %c0_205 = arith.constant 0 : index
    %319 = vector.load %arg5[%c1_202, %c1_203, %c0_204, %c0_205] : memref<2x2x16x32xbf16, #tpu.memory_space<vmem>>, vector<1x1x16x32xbf16>
    %320 = vector.shape_cast %319 : vector<1x1x16x32xbf16> to vector<16x32xbf16>
    %cst_206 = arith.constant dense<0.000000e+00> : vector<8x32xf32>
    %321 = tpu.matmul %318, %320, %cst_206 {dimension_numbers = #tpu.dot_dimension_numbers<[1], [0], [0], [1], [0, 0, 1, 1], [], []>} : vector<8x16xbf16>, vector<16x32xbf16>, vector<8x32xf32> -> vector<8x32xf32>
    %322 = arith.addf %278, %321 : vector<8x32xf32>
    %323 = vector.shape_cast %222 : vector<32xf32> to vector<1x32xf32>
    %324 = vector.broadcast %323 : vector<1x32xf32> to vector<8x32xf32>
    %325 = arith.addf %322, %324 : vector<8x32xf32>
    %326 = arith.addf %325, %218 : vector<8x32xf32>
    %cst_207 = arith.constant dense<0.000000e+00> : vector<8xf32>
    %327 = vector.multi_reduction <add>, %326, %cst_207 [1] : vector<8x32xf32> to vector<8xf32>
    %328 = vector.shape_cast %327 : vector<8xf32> to vector<8x1xf32>
    %cst_208 = arith.constant 3.200000e+01 : f32
    %329 = vector.broadcast %cst_208 : f32 to vector<8x1xf32>
    %330 = arith.divf %328, %329 : vector<8x1xf32>
    %331 = vector.broadcast %330 : vector<8x1xf32> to vector<8x32xf32>
    %332 = arith.subf %326, %331 : vector<8x32xf32>
    %333 = arith.mulf %332, %332 : vector<8x32xf32>
    %cst_209 = arith.constant dense<0.000000e+00> : vector<8xf32>
    %334 = vector.multi_reduction <add>, %333, %cst_209 [1] : vector<8x32xf32> to vector<8xf32>
    %335 = vector.shape_cast %334 : vector<8xf32> to vector<8x1xf32>
    %cst_210 = arith.constant 3.200000e+01 : f32
    %336 = vector.broadcast %cst_210 : f32 to vector<8x1xf32>
    %337 = arith.divf %335, %336 : vector<8x1xf32>
    %cst_211 = arith.constant 9.99999996E-13 : f32
    %338 = vector.broadcast %cst_211 : f32 to vector<8x1xf32>
    %339 = arith.addf %337, %338 : vector<8x1xf32>
    %340 = math.rsqrt %339 : vector<8x1xf32>
    %341 = vector.broadcast %340 : vector<8x1xf32> to vector<8x32xf32>
    %342 = arith.mulf %332, %341 : vector<8x32xf32>
    %343 = vector.shape_cast %224 : vector<32xf32> to vector<1x32xf32>
    %344 = vector.broadcast %343 : vector<1x32xf32> to vector<8x32xf32>
    %345 = arith.mulf %342, %344 : vector<8x32xf32>
    %346 = vector.shape_cast %226 : vector<32xf32> to vector<1x32xf32>
    %347 = vector.broadcast %346 : vector<1x32xf32> to vector<8x32xf32>
    %348 = arith.addf %345, %347 : vector<8x32xf32>
    %349 = arith.truncf %348 : vector<8x32xf32> to vector<8x32xbf16>
    %c1_212 = arith.constant 1 : index
    %c0_213 = arith.constant 0 : index
    %c0_214 = arith.constant 0 : index
    %350 = vector.load %arg6[%c1_212, %c0_213, %c0_214] : memref<2x32x64xbf16, #tpu.memory_space<vmem>>, vector<1x32x64xbf16>
    %351 = vector.shape_cast %350 : vector<1x32x64xbf16> to vector<32x64xbf16>
    %cst_215 = arith.constant dense<0.000000e+00> : vector<8x64xf32>
    %352 = tpu.matmul %349, %351, %cst_215 {dimension_numbers = #tpu.dot_dimension_numbers<[1], [0], [0], [1], [0, 0, 1, 1], [], []>} : vector<8x32xbf16>, vector<32x64xbf16>, vector<8x64xf32> -> vector<8x64xf32>
    %353 = vector.shape_cast %228 : vector<64xf32> to vector<1x64xf32>
    %354 = vector.broadcast %353 : vector<1x64xf32> to vector<8x64xf32>
    %355 = arith.addf %352, %354 : vector<8x64xf32>
    %cst_216 = arith.constant 5.000000e-01 : f32
    %356 = vector.broadcast %cst_216 : f32 to vector<8x64xf32>
    %357 = arith.mulf %356, %355 : vector<8x64xf32>
    %cst_217 = arith.constant 4.471500e-02 : f32
    %358 = vector.broadcast %cst_217 : f32 to vector<8x64xf32>
    %359 = arith.mulf %358, %355 : vector<8x64xf32>
    %360 = arith.mulf %359, %355 : vector<8x64xf32>
    %361 = arith.mulf %360, %355 : vector<8x64xf32>
    %362 = arith.addf %355, %361 : vector<8x64xf32>
    %cst_218 = arith.constant 0.797884583 : f32
    %363 = vector.broadcast %cst_218 : f32 to vector<8x64xf32>
    %364 = arith.mulf %363, %362 : vector<8x64xf32>
    %365 = math.tanh %364 : vector<8x64xf32>
    %cst_219 = arith.constant 1.000000e+00 : f32
    %366 = vector.broadcast %cst_219 : f32 to vector<8x64xf32>
    %367 = arith.addf %366, %365 : vector<8x64xf32>
    %368 = arith.mulf %357, %367 : vector<8x64xf32>
    %369 = arith.truncf %368 : vector<8x64xf32> to vector<8x64xbf16>
    %c1_220 = arith.constant 1 : index
    %c0_221 = arith.constant 0 : index
    %c0_222 = arith.constant 0 : index
    %370 = vector.load %arg7[%c1_220, %c0_221, %c0_222] : memref<2x64x32xbf16, #tpu.memory_space<vmem>>, vector<1x64x32xbf16>
    %371 = vector.shape_cast %370 : vector<1x64x32xbf16> to vector<64x32xbf16>
    %cst_223 = arith.constant dense<0.000000e+00> : vector<8x32xf32>
    %372 = tpu.matmul %369, %371, %cst_223 {dimension_numbers = #tpu.dot_dimension_numbers<[1], [0], [0], [1], [0, 0, 1, 1], [], []>} : vector<8x64xbf16>, vector<64x32xbf16>, vector<8x32xf32> -> vector<8x32xf32>
    %373 = vector.shape_cast %230 : vector<32xf32> to vector<1x32xf32>
    %374 = vector.broadcast %373 : vector<1x32xf32> to vector<8x32xf32>
    %375 = arith.addf %372, %374 : vector<8x32xf32>
    %376 = arith.addf %375, %348 : vector<8x32xf32>
    %cst_224 = arith.constant dense<0.000000e+00> : vector<8xf32>
    %377 = vector.multi_reduction <add>, %376, %cst_224 [1] : vector<8x32xf32> to vector<8xf32>
    %378 = vector.shape_cast %377 : vector<8xf32> to vector<8x1xf32>
    %cst_225 = arith.constant 3.200000e+01 : f32
    %379 = vector.broadcast %cst_225 : f32 to vector<8x1xf32>
    %380 = arith.divf %378, %379 : vector<8x1xf32>
    %381 = vector.broadcast %380 : vector<8x1xf32> to vector<8x32xf32>
    %382 = arith.subf %376, %381 : vector<8x32xf32>
    %383 = arith.mulf %382, %382 : vector<8x32xf32>
    %cst_226 = arith.constant dense<0.000000e+00> : vector<8xf32>
    %384 = vector.multi_reduction <add>, %383, %cst_226 [1] : vector<8x32xf32> to vector<8xf32>
    %385 = vector.shape_cast %384 : vector<8xf32> to vector<8x1xf32>
    %cst_227 = arith.constant 3.200000e+01 : f32
    %386 = vector.broadcast %cst_227 : f32 to vector<8x1xf32>
    %387 = arith.divf %385, %386 : vector<8x1xf32>
    %cst_228 = arith.constant 9.99999996E-13 : f32
    %388 = vector.broadcast %cst_228 : f32 to vector<8x1xf32>
    %389 = arith.addf %387, %388 : vector<8x1xf32>
    %390 = math.rsqrt %389 : vector<8x1xf32>
    %391 = vector.broadcast %390 : vector<8x1xf32> to vector<8x32xf32>
    %392 = arith.mulf %382, %391 : vector<8x32xf32>
    %393 = vector.shape_cast %232 : vector<32xf32> to vector<1x32xf32>
    %394 = vector.broadcast %393 : vector<1x32xf32> to vector<8x32xf32>
    %395 = arith.mulf %392, %394 : vector<8x32xf32>
    %396 = vector.shape_cast %234 : vector<32xf32> to vector<1x32xf32>
    %397 = vector.broadcast %396 : vector<1x32xf32> to vector<8x32xf32>
    %398 = arith.addf %395, %397 : vector<8x32xf32>
    %399 = arith.truncf %398 : vector<8x32xf32> to vector<8x32xbf16>
    %c0_229 = arith.constant 0 : index
    %c0_230 = arith.constant 0 : index
    %400 = vector.load %arg9[%c0_229, %c0_230] : memref<32x32xbf16, #tpu.memory_space<vmem>>, vector<32x32xbf16>
    %cst_231 = arith.constant dense<0.000000e+00> : vector<8x32xf32>
    %401 = tpu.matmul %399, %400, %cst_231 {dimension_numbers = #tpu.dot_dimension_numbers<[1], [0], [0], [1], [0, 0, 1, 1], [], []>} : vector<8x32xbf16>, vector<32x32xbf16>, vector<8x32xf32> -> vector<8x32xf32>
    %402 = vector.shape_cast %6 : vector<32xf32> to vector<1x32xf32>
    %403 = vector.broadcast %402 : vector<1x32xf32> to vector<8x32xf32>
    %404 = arith.addf %401, %403 : vector<8x32xf32>
    %405 = math.tanh %404 : vector<8x32xf32>
    %406 = arith.truncf %405 : vector<8x32xf32> to vector<8x32xbf16>
    %c0_232 = arith.constant 0 : index
    %c0_233 = arith.constant 0 : index
    %407 = vector.load %arg10[%c0_232, %c0_233] : memref<32x128xbf16, #tpu.memory_space<vmem>>, vector<32x128xbf16>
    %cst_234 = arith.constant dense<0.000000e+00> : vector<8x128xf32>
    %408 = tpu.matmul %406, %407, %cst_234 {dimension_numbers = #tpu.dot_dimension_numbers<[1], [0], [0], [1], [0, 0, 1, 1], [], []>} : vector<8x32xbf16>, vector<32x128xbf16>, vector<8x128xf32> -> vector<8x128xf32>
    %409 = vector.shape_cast %8 : vector<128xf32> to vector<1x128xf32>
    %410 = vector.broadcast %409 : vector<1x128xf32> to vector<8x128xf32>
    %411 = arith.addf %408, %410 : vector<8x128xf32>
    %c0_235 = arith.constant 0 : index
    %c0_236 = arith.constant 0 : index
    %c0_237 = arith.constant 0 : index
    %412 = vector.load %arg12[%c0_235, %c0_236, %c0_237] : memref<1x8x128xf32, #tpu.memory_space<vmem>>, vector<1x8x128xf32>
    %413 = vector.shape_cast %412 : vector<1x8x128xf32> to vector<8x128xf32>
    %414 = vector.shape_cast %411 : vector<8x128xf32> to vector<1x8x128xf32>
    tpu.vector_store %arg12[%c0_235, %c0_236, %c0_237], %414 {strides = array<i32>} : memref<1x8x128xf32, #tpu.memory_space<vmem>>, vector<1x8x128xf32>,
    return
  }
  func.func @transform_0(%arg0: i32) -> (i32, i32, i32) {
    %c0_i32 = arith.constant 0 : i32
    %c0_i32_0 = arith.constant 0 : i32
    %c0_i32_1 = arith.constant 0 : i32
    return %arg0, %c0_i32, %c0_i32_0 : i32, i32, i32
  }
  func.func @transform_1(%arg0: i32) -> (i32, i32, i32) {
    %c0_i32 = arith.constant 0 : i32
    %c0_i32_0 = arith.constant 0 : i32
    %c0_i32_1 = arith.constant 0 : i32
    return %arg0, %c0_i32, %c0_i32_0 : i32, i32, i32
  }
  func.func @transform_2(%arg0: i32) -> (i32, i32, i32, i32, i32) {
    %c0_i32 = arith.constant 0 : i32
    %c0_i32_0 = arith.constant 0 : i32
    %c0_i32_1 = arith.constant 0 : i32
    %c0_i32_2 = arith.constant 0 : i32
    %c0_i32_3 = arith.constant 0 : i32
    %c0_i32_4 = arith.constant 0 : i32
    return %c0_i32, %c0_i32_0, %c0_i32_1, %c0_i32_2, %c0_i32_3 : i32, i32, i32, i32, i32
  }
  func.func @transform_3(%arg0: i32) -> (i32, i32, i32, i32, i32) {
    %c0_i32 = arith.constant 0 : i32
    %c0_i32_0 = arith.constant 0 : i32
    %c0_i32_1 = arith.constant 0 : i32
    %c0_i32_2 = arith.constant 0 : i32
    %c0_i32_3 = arith.constant 0 : i32
    %c0_i32_4 = arith.constant 0 : i32
    return %c0_i32, %c0_i32_0, %c0_i32_1, %c0_i32_2, %c0_i32_3 : i32, i32, i32, i32, i32
  }
  func.func @transform_4(%arg0: i32) -> (i32, i32, i32, i32) {
    %c0_i32 = arith.constant 0 : i32
    %c0_i32_0 = arith.constant 0 : i32
    %c0_i32_1 = arith.constant 0 : i32
    %c0_i32_2 = arith.constant 0 : i32
    %c0_i32_3 = arith.constant 0 : i32
    return %c0_i32, %c0_i32_0, %c0_i32_1, %c0_i32_2 : i32, i32, i32, i32
  }
  func.func @transform_5(%arg0: i32) -> (i32, i32, i32) {
    %c0_i32 = arith.constant 0 : i32
    %c0_i32_0 = arith.constant 0 : i32
    %c0_i32_1 = arith.constant 0 : i32
    %c0_i32_2 = arith.constant 0 : i32
    return %c0_i32, %c0_i32_0, %c0_i32_1 : i32, i32, i32
  }
  func.func @transform_6(%arg0: i32) -> (i32, i32, i32) {
    %c0_i32 = arith.constant 0 : i32
    %c0_i32_0 = arith.constant 0 : i32
    %c0_i32_1 = arith.constant 0 : i32
    %c0_i32_2 = arith.constant 0 : i32
    return %c0_i32, %c0_i32_0, %c0_i32_1 : i32, i32, i32
  }
  func.func @transform_7(%arg0: i32) -> (i32, i32, i32) {
    %c0_i32 = arith.constant 0 : i32
    %c0_i32_0 = arith.constant 0 : i32
    %c0_i32_1 = arith.constant 0 : i32
    %c0_i32_2 = arith.constant 0 : i32
    return %c0_i32, %c0_i32_0, %c0_i32_1 : i32, i32, i32
  }
  func.func @transform_8(%arg0: i32) -> (i32, i32) {
    %c0_i32 = arith.constant 0 : i32
    %c0_i32_0 = arith.constant 0 : i32
    %c0_i32_1 = arith.constant 0 : i32
    return %c0_i32, %c0_i32_0 : i32, i32
  }
  func.func @transform_9(%arg0: i32) -> (i32, i32) {
    %c0_i32 = arith.constant 0 : i32
    %c0_i32_0 = arith.constant 0 : i32
    %c0_i32_1 = arith.constant 0 : i32
    return %c0_i32, %c0_i32_0 : i32, i32
  }
  func.func @transform_10(%arg0: i32) -> (i32, i32) {
    %c0_i32 = arith.constant 0 : i32
    %c0_i32_0 = arith.constant 0 : i32
    %c0_i32_1 = arith.constant 0 : i32
    return %c0_i32, %c0_i32_0 : i32, i32
  }
  func.func @transform_11(%arg0: i32) -> (i32, i32, i32) {
    %c0_i32 = arith.constant 0 : i32
    %c0_i32_0 = arith.constant 0 : i32
    %c0_i32_1 = arith.constant 0 : i32
    return %arg0, %c0_i32, %c0_i32_0 : i32, i32, i32
  }
}

</mosaic_0001>

<llo_original>
// kernel: tpu_custom_call.1
$region0: #{tpu_custom_call.1}
  #allocation0 [shape = 'u32[]', space=smem, size = 0x4, offset = 0x4, fixed_abs, tag = 'smem constant byte address 0x4 - core index']
  #allocation1 [shape = 'u32[144,128]{1,0:T(1,128)}', space=vmem, size = 0x12000, scoped, tag = 'internal scratch']
  %s0 = inlined_call_operand.vmem [shape: f32[2,8,32], index: 0, kind: input, shape index: {}]
  %s1 = inlined_call_operand.vmem [shape: f32[2,1,8], index: 1, kind: input, shape index: {}]
  %s2 = inlined_call_operand.vmem [shape: bf16[2,3,2,32,16], index: 2, kind: input, shape index: {}]
  %s3 = inlined_call_operand.vmem [shape: f32[2,3,2,1,16], index: 3, kind: input, shape index: {}]
  %s4 = inlined_call_operand.vmem [shape: bf16[2,2,16,32], index: 4, kind: input, shape index: {}]
  %s5 = inlined_call_operand.vmem [shape: bf16[2,32,64], index: 5, kind: input, shape index: {}]
  %s6 = inlined_call_operand.vmem [shape: bf16[2,64,32], index: 6, kind: input, shape index: {}]
  %s7 = inlined_call_operand.vmem [shape: f32[2,8,128], index: 7, kind: input, shape index: {}]
  %s8 = inlined_call_operand.vmem [shape: bf16[32,32], index: 8, kind: input, shape index: {}]
  %s9 = inlined_call_operand.vmem [shape: bf16[32,128], index: 9, kind: input, shape index: {}]
  %s10 = inlined_call_operand.vmem [shape: f32[8,128], index: 10, kind: input, shape index: {}]
  %s11 = inlined_call_operand.hbm [shape: f32[2,8,128], index: 11, kind: output, shape index: {}]
  %s12 = sld [smem:[#allocation0]]
  $region77: #{tpu_custom_call.1} parent=0
    _
  %s14 = ssub.s32 1, %s12
  %s15 = scalar_select 0, %s14, %s12
  $region1: #{tpu_custom_call.1} parent=0
    #allocation2 [shape = 'u8[8192]{0}', space=vmem, size = 0x2000, scoped, tag = 'output window, operand 0']
    #allocation3 [shape = 's32[2]{0}', space=sflag, size = 0x8, scoped, tag = 'scoped memory for tpu_custom_call.1']
    %16 = vsyncpa [#allocation3], 0
    %s17 = scalar_lea.sflag [#allocation3], 1
    %18 = vsyncpa %s17, 0
    loop: start=0, step=1, limit=4
    $region2: #{tpu_custom_call.1} parent=1 // loop_pre_header
      _
    $region3: #{tpu_custom_call.1} parent=1 // loop_header
      %s20 = sphi 0, %s24
      %p21 = scmp.ge.s32.totalorder %s20, 4
      %s30 = sphi 0, %s32
      %s33 = sphi 0, %s30
      %s34 = sphi 0, %s33
      %s50 = sphi 0, %s34
      %s56 = sphi 0, %s58
      %s59 = sphi 0, %s56
      %s60 = sphi 0, %s59
      %s76 = sphi 0, %s60
      %s80 = sphi 0, %s80
      %s82 = sphi 0, %s80
      %s83 = sphi 0, %s82
      %s97 = sphi 0, %s83
      %s101 = sphi 0, %s101
      %s103 = sphi 0, %s101
      %s104 = sphi 0, %s103
      %s118 = sphi 0, %s104
      %s122 = sphi 0, %s122
      %s124 = sphi 0, %s122
      %s125 = sphi 0, %s124
      %s139 = sphi 0, %s125
      %s143 = sphi 0, %s143
      %s145 = sphi 0, %s143
      %s146 = sphi 0, %s145
      %s160 = sphi 0, %s146
      %s164 = sphi 0, %s164
      %s166 = sphi 0, %s164
      %s167 = sphi 0, %s166
      %s181 = sphi 0, %s167
      %s185 = sphi 0, %s185
      %s187 = sphi 0, %s185
      %s188 = sphi 0, %s187
      %s202 = sphi 0, %s188
      %s206 = sphi 0, %s206
      %s208 = sphi 0, %s206
      %s209 = sphi 0, %s208
      %s223 = sphi 0, %s209
      %s227 = sphi 0, %s227
      %s229 = sphi 0, %s227
      %s230 = sphi 0, %s229
      %s244 = sphi 0, %s230
      %s248 = sphi 0, %s248
      %s250 = sphi 0, %s248
      %s251 = sphi 0, %s250
      %s265 = sphi 0, %s251
      %s271 = sphi 0, %s273
      %s274 = sphi 0, %s271
      %s275 = sphi 0, %s274
      %s291 = sphi 0, %s275
    $region4: #{tpu_custom_call.1} parent=1 // loop_header_branch
      %23 = sbr.rel (%p21) target = $region8
    $region5: #{tpu_custom_call.1} parent=1 // loop_body
      %s25 = ssub.s32 %s20, 1
      %s26 = ssub.s32 %s20, 2
      %s27 = sadd.s32 %s20, 1
      %s28 = ssub.s32 %s20, %s27
      %p29 = scmp.eq.s32.totalorder %s28, 0
      %s31 = sadd.s32 %s30, 1
      %s32 = scalar_select %p29, %s30, %s31
      %p35 = pneg %p29
      %p36 = scmp.eq.s32.totalorder %s20, 1
      %p37 = por %p35, %p36
      %p38 = scmp.ne.s32.totalorder %s30, %s33
      %p39 = scmp.eq.s32.totalorder %s20, 0
      %p40 = por %p38, %p39
      %p41 = scmp.ne.s32.totalorder %s30, %s33
      %p42 = scmp.eq.s32.totalorder %s25, 1
      %p43 = por %p41, %p42
      %p44 = scmp.ne.s32.totalorder %s33, %s34
      %p45 = scmp.eq.s32.totalorder %s25, 0
      %p46 = por %p44, %p45
      %p47 = scmp.ne.s32.totalorder %s33, %s34
      %p48 = scmp.eq.s32.totalorder %s26, 1
      %p49 = por %p47, %p48
      %p51 = scmp.ne.s32.totalorder %s34, %s50
      %p52 = scmp.eq.s32.totalorder %s26, 0
      %p53 = por %p51, %p52
      %s54 = ssub.s32 %s20, %s27
      %p55 = scmp.eq.s32.totalorder %s54, 0
      %s57 = sadd.s32 %s56, 1
      %s58 = scalar_select %p55, %s56, %s57
      %p61 = pneg %p55
      %p62 = scmp.eq.s32.totalorder %s20, 1
      %p63 = por %p61, %p62
      %p64 = scmp.ne.s32.totalorder %s56, %s59
      %p65 = scmp.eq.s32.totalorder %s20, 0
      %p66 = por %p64, %p65
      %p67 = scmp.ne.s32.totalorder %s56, %s59
      %p68 = scmp.eq.s32.totalorder %s25, 1
      %p69 = por %p67, %p68
      %p70 = scmp.ne.s32.totalorder %s59, %s60
      %p71 = scmp.eq.s32.totalorder %s25, 0
      %p72 = por %p70, %p71
      %p73 = scmp.ne.s32.totalorder %s59, %s60
      %p74 = scmp.eq.s32.totalorder %s26, 1
      %p75 = por %p73, %p74
      %p77 = scmp.ne.s32.totalorder %s60, %s76
      %p78 = scmp.eq.s32.totalorder %s26, 0
      %p79 = por %p77, %p78
      %s81 = sadd.s32 %s80, 1
      %p84 = scmp.eq.s32.totalorder %s20, 1
      %p85 = scmp.ne.s32.totalorder %s80, %s82
      %p86 = scmp.eq.s32.totalorder %s20, 0
      %p87 = por %p85, %p86
      %p88 = scmp.ne.s32.totalorder %s80, %s82
      %p89 = scmp.eq.s32.totalorder %s25, 1
      %p90 = por %p88, %p89
      %p91 = scmp.ne.s32.totalorder %s82, %s83
      %p92 = scmp.eq.s32.totalorder %s25, 0
      %p93 = por %p91, %p92
      %p94 = scmp.ne.s32.totalorder %s82, %s83
      %p95 = scmp.eq.s32.totalorder %s26, 1
      %p96 = por %p94, %p95
      %p98 = scmp.ne.s32.totalorder %s83, %s97
      %p99 = scmp.eq.s32.totalorder %s26, 0
      %p100 = por %p98, %p99
      %s102 = sadd.s32 %s101, 1
      %p105 = scmp.eq.s32.totalorder %s20, 1
      %p106 = scmp.ne.s32.totalorder %s101, %s103
      %p107 = scmp.eq.s32.totalorder %s20, 0
      %p108 = por %p106, %p107
      %p109 = scmp.ne.s32.totalorder %s101, %s103
      %p110 = scmp.eq.s32.totalorder %s25, 1
      %p111 = por %p109, %p110
      %p112 = scmp.ne.s32.totalorder %s103, %s104
      %p113 = scmp.eq.s32.totalorder %s25, 0
      %p114 = por %p112, %p113
      %p115 = scmp.ne.s32.totalorder %s103, %s104
      %p116 = scmp.eq.s32.totalorder %s26, 1
      %p117 = por %p115, %p116
      %p119 = scmp.ne.s32.totalorder %s104, %s118
      %p120 = scmp.eq.s32.totalorder %s26, 0
      %p121 = por %p119, %p120
      %s123 = sadd.s32 %s122, 1
      %p126 = scmp.eq.s32.totalorder %s20, 1
      %p127 = scmp.ne.s32.totalorder %s122, %s124
      %p128 = scmp.eq.s32.totalorder %s20, 0
      %p129 = por %p127, %p128
      %p130 = scmp.ne.s32.totalorder %s122, %s124
      %p131 = scmp.eq.s32.totalorder %s25, 1
      %p132 = por %p130, %p131
      %p133 = scmp.ne.s32.totalorder %s124, %s125
      %p134 = scmp.eq.s32.totalorder %s25, 0
      %p135 = por %p133, %p134
      %p136 = scmp.ne.s32.totalorder %s124, %s125
      %p137 = scmp.eq.s32.totalorder %s26, 1
      %p138 = por %p136, %p137
      %p140 = scmp.ne.s32.totalorder %s125, %s139
      %p141 = scmp.eq.s32.totalorder %s26, 0
      %p142 = por %p140, %p141
      %s144 = sadd.s32 %s143, 1
      %p147 = scmp.eq.s32.totalorder %s20, 1
      %p148 = scmp.ne.s32.totalorder %s143, %s145
      %p149 = scmp.eq.s32.totalorder %s20, 0
      %p150 = por %p148, %p149
      %p151 = scmp.ne.s32.totalorder %s143, %s145
      %p152 = scmp.eq.s32.totalorder %s25, 1
      %p153 = por %p151, %p152
      %p154 = scmp.ne.s32.totalorder %s145, %s146
      %p155 = scmp.eq.s32.totalorder %s25, 0
      %p156 = por %p154, %p155
      %p157 = scmp.ne.s32.totalorder %s145, %s146
      %p158 = scmp.eq.s32.totalorder %s26, 1
      %p159 = por %p157, %p158
      %p161 = scmp.ne.s32.totalorder %s146, %s160
      %p162 = scmp.eq.s32.totalorder %s26, 0
      %p163 = por %p161, %p162
      %s165 = sadd.s32 %s164, 1
      %p168 = scmp.eq.s32.totalorder %s20, 1
      %p169 = scmp.ne.s32.totalorder %s164, %s166
      %p170 = scmp.eq.s32.totalorder %s20, 0
      %p171 = por %p169, %p170
      %p172 = scmp.ne.s32.totalorder %s164, %s166
      %p173 = scmp.eq.s32.totalorder %s25, 1
      %p174 = por %p172, %p173
      %p175 = scmp.ne.s32.totalorder %s166, %s167
      %p176 = scmp.eq.s32.totalorder %s25, 0
      %p177 = por %p175, %p176
      %p178 = scmp.ne.s32.totalorder %s166, %s167
      %p179 = scmp.eq.s32.totalorder %s26, 1
      %p180 = por %p178, %p179
      %p182 = scmp.ne.s32.totalorder %s167, %s181
      %p183 = scmp.eq.s32.totalorder %s26, 0
      %p184 = por %p182, %p183
      %s186 = sadd.s32 %s185, 1
      %p189 = scmp.eq.s32.totalorder %s20, 1
      %p190 = scmp.ne.s32.totalorder %s185, %s187
      %p191 = scmp.eq.s32.totalorder %s20, 0
      %p192 = por %p190, %p191
      %p193 = scmp.ne.s32.totalorder %s185, %s187
      %p194 = scmp.eq.s32.totalorder %s25, 1
      %p195 = por %p193, %p194
      %p196 = scmp.ne.s32.totalorder %s187, %s188
      %p197 = scmp.eq.s32.totalorder %s25, 0
      %p198 = por %p196, %p197
      %p199 = scmp.ne.s32.totalorder %s187, %s188
      %p200 = scmp.eq.s32.totalorder %s26, 1
      %p201 = por %p199, %p200
      %p203 = scmp.ne.s32.totalorder %s188, %s202
      %p204 = scmp.eq.s32.totalorder %s26, 0
      %p205 = por %p203, %p204
      %s207 = sadd.s32 %s206, 1
      %p210 = scmp.eq.s32.totalorder %s20, 1
      %p211 = scmp.ne.s32.totalorder %s206, %s208
      %p212 = scmp.eq.s32.totalorder %s20, 0
      %p213 = por %p211, %p212
      %p214 = scmp.ne.s32.totalorder %s206, %s208
      %p215 = scmp.eq.s32.totalorder %s25, 1
      %p216 = por %p214, %p215
      %p217 = scmp.ne.s32.totalorder %s208, %s209
      %p218 = scmp.eq.s32.totalorder %s25, 0
      %p219 = por %p217, %p218
      %p220 = scmp.ne.s32.totalorder %s208, %s209
      %p221 = scmp.eq.s32.totalorder %s26, 1
      %p222 = por %p220, %p221
      %p224 = scmp.ne.s32.totalorder %s209, %s223
      %p225 = scmp.eq.s32.totalorder %s26, 0
      %p226 = por %p224, %p225
      %s228 = sadd.s32 %s227, 1
      %p231 = scmp.eq.s32.totalorder %s20, 1
      %p232 = scmp.ne.s32.totalorder %s227, %s229
      %p233 = scmp.eq.s32.totalorder %s20, 0
      %p234 = por %p232, %p233
      %p235 = scmp.ne.s32.totalorder %s227, %s229
      %p236 = scmp.eq.s32.totalorder %s25, 1
      %p237 = por %p235, %p236
      %p238 = scmp.ne.s32.totalorder %s229, %s230
      %p239 = scmp.eq.s32.totalorder %s25, 0
      %p240 = por %p238, %p239
      %p241 = scmp.ne.s32.totalorder %s229, %s230
      %p242 = scmp.eq.s32.totalorder %s26, 1
      %p243 = por %p241, %p242
      %p245 = scmp.ne.s32.totalorder %s230, %s244
      %p246 = scmp.eq.s32.totalorder %s26, 0
      %p247 = por %p245, %p246
      %s249 = sadd.s32 %s248, 1
      %p252 = scmp.eq.s32.totalorder %s20, 1
      %p253 = scmp.ne.s32.totalorder %s248, %s250
      %p254 = scmp.eq.s32.totalorder %s20, 0
      %p255 = por %p253, %p254
      %p256 = scmp.ne.s32.totalorder %s248, %s250
      %p257 = scmp.eq.s32.totalorder %s25, 1
      %p258 = por %p256, %p257
      %p259 = scmp.ne.s32.totalorder %s250, %s251
      %p260 = scmp.eq.s32.totalorder %s25, 0
      %p261 = por %p259, %p260
      %p262 = scmp.ne.s32.totalorder %s250, %s251
      %p263 = scmp.eq.s32.totalorder %s26, 1
      %p264 = por %p262, %p263
      %p266 = scmp.ne.s32.totalorder %s251, %s265
      %p267 = scmp.eq.s32.totalorder %s26, 0
      %p268 = por %p266, %p267
      %s269 = ssub.s32 %s20, %s27
      %p270 = scmp.eq.s32.totalorder %s269, 0
      %s272 = sadd.s32 %s271, 1
      %s273 = scalar_select %p270, %s271, %s272
      %p276 = pneg %p270
      %p277 = scmp.eq.s32.totalorder %s20, 1
      %p278 = por %p276, %p277
      %p279 = scmp.ne.s32.totalorder %s271, %s274
      %p280 = scmp.eq.s32.totalorder %s20, 0
      %p281 = por %p279, %p280
      %p282 = scmp.ne.s32.totalorder %s271, %s274
      %p283 = scmp.eq.s32.totalorder %s25, 1
      %p284 = por %p282, %p283
      %p285 = scmp.ne.s32.totalorder %s274, %s275
      %p286 = scmp.eq.s32.totalorder %s25, 0
      %p287 = por %p285, %p286
      %p288 = scmp.ne.s32.totalorder %s274, %s275
      %p289 = scmp.eq.s32.totalorder %s26, 1
      %p290 = por %p288, %p289
      %p292 = scmp.ne.s32.totalorder %s275, %s291
      %p293 = scmp.eq.s32.totalorder %s26, 0
      %p294 = por %p292, %p293
      %p295 = scmp.le.s32.totalorder 1, %s20
      %p296 = scmp.lt.s32.totalorder %s20, 3
      %p297 = pnand %p295, %p296
      %p298 = pneg %p297
      // Predicated region
      $region9: #{tpu_custom_call.1} parent=5 // pred_check
        _
      $region10: #{tpu_custom_call.1} parent=5 // pred_check_branch
        %300 = sbr.rel (%p297) target = $region12
      $region11: #{tpu_custom_call.1} parent=5 // pred_region
        %s301 = ssub.s32 %s20, 1
        // Predicated region
        $region13: #{tpu_custom_call.1} parent=11 // pred_check
          %p302 = pneg %p93
        $region14: #{tpu_custom_call.1} parent=11 // pred_check_branch
          %304 = sbr.rel (%p302) target = $region16
        $region15: #{tpu_custom_call.1} parent=11 // pred_region
          _
        $region16: #{tpu_custom_call.1} parent=11 // pred_fallthru
          _
        // Predicated region
        $region17: #{tpu_custom_call.1} parent=11 // pred_check
          %p305 = pneg %p114
        $region18: #{tpu_custom_call.1} parent=11 // pred_check_branch
          %307 = sbr.rel (%p305) target = $region20
        $region19: #{tpu_custom_call.1} parent=11 // pred_region
          _
        $region20: #{tpu_custom_call.1} parent=11 // pred_fallthru
          _
        // Predicated region
        $region21: #{tpu_custom_call.1} parent=11 // pred_check
          %p308 = pneg %p135
        $region22: #{tpu_custom_call.1} parent=11 // pred_check_branch
          %310 = sbr.rel (%p308) target = $region24
        $region23: #{tpu_custom_call.1} parent=11 // pred_region
          _
        $region24: #{tpu_custom_call.1} parent=11 // pred_fallthru
          _
        // Predicated region
        $region25: #{tpu_custom_call.1} parent=11 // pred_check
          %p311 = pneg %p156
        $region26: #{tpu_custom_call.1} parent=11 // pred_check_branch
          %313 = sbr.rel (%p311) target = $region28
        $region27: #{tpu_custom_call.1} parent=11 // pred_region
          _
        $region28: #{tpu_custom_call.1} parent=11 // pred_fallthru
          _
        // Predicated region
        $region29: #{tpu_custom_call.1} parent=11 // pred_check
          %p314 = pneg %p177
        $region30: #{tpu_custom_call.1} parent=11 // pred_check_branch
          %316 = sbr.rel (%p314) target = $region32
        $region31: #{tpu_custom_call.1} parent=11 // pred_region
          _
        $region32: #{tpu_custom_call.1} parent=11 // pred_fallthru
          _
        // Predicated region
        $region33: #{tpu_custom_call.1} parent=11 // pred_check
          %p317 = pneg %p198
        $region34: #{tpu_custom_call.1} parent=11 // pred_check_branch
          %319 = sbr.rel (%p317) target = $region36
        $region35: #{tpu_custom_call.1} parent=11 // pred_region
          _
        $region36: #{tpu_custom_call.1} parent=11 // pred_fallthru
          _
        // Predicated region
        $region37: #{tpu_custom_call.1} parent=11 // pred_check
          %p320 = pneg %p219
        $region38: #{tpu_custom_call.1} parent=11 // pred_check_branch
          %322 = sbr.rel (%p320) target = $region40
        $region39: #{tpu_custom_call.1} parent=11 // pred_region
          _
        $region40: #{tpu_custom_call.1} parent=11 // pred_fallthru
          _
        // Predicated region
        $region41: #{tpu_custom_call.1} parent=11 // pred_check
          %p323 = pneg %p240
        $region42: #{tpu_custom_call.1} parent=11 // pred_check_branch
          %325 = sbr.rel (%p323) target = $region44
        $region43: #{tpu_custom_call.1} parent=11 // pred_region
          _
        $region44: #{tpu_custom_call.1} parent=11 // pred_fallthru
          _
        // Predicated region
        $region45: #{tpu_custom_call.1} parent=11 // pred_check
          %p326 = pneg %p261
        $region46: #{tpu_custom_call.1} parent=11 // pred_check_branch
          %328 = sbr.rel (%p326) target = $region48
        $region47: #{tpu_custom_call.1} parent=11 // pred_region
          _
        $region48: #{tpu_custom_call.1} parent=11 // pred_fallthru
          _
      $region12: #{tpu_custom_call.1} parent=5 // pred_fallthru
        _
      %p329 = scmp.lt.s32.totalorder %s20, 2
      // Predicated region
      $region49: #{tpu_custom_call.1} parent=5 // pred_check
        %p330 = pneg %p329
      $region50: #{tpu_custom_call.1} parent=5 // pred_check_branch
        %332 = sbr.rel (%p330) target = $region52
      $region51: #{tpu_custom_call.1} parent=5 // pred_region
        // Predicated region
        $region53: #{tpu_custom_call.1} parent=51 // pred_check
          %p333 = pneg %p40
        $region54: #{tpu_custom_call.1} parent=51 // pred_check_branch
          %335 = sbr.rel (%p333) target = $region56
        $region55: #{tpu_custom_call.1} parent=51 // pred_region
          %p336 = scmp.lt.s32.totalorder %s20, 1
          %s337 = scalar_select %p336, %s20, 1
          %s338 = smul.addr %s337, 8
          %s339 = scalar_lea.vmem %s0, %s338
        $region56: #{tpu_custom_call.1} parent=51 // pred_fallthru
          _
        // Predicated region
        $region57: #{tpu_custom_call.1} parent=51 // pred_check
          %p340 = pneg %p66
        $region58: #{tpu_custom_call.1} parent=51 // pred_check_branch
          %342 = sbr.rel (%p340) target = $region60
        $region59: #{tpu_custom_call.1} parent=51 // pred_region
          %p343 = scmp.lt.s32.totalorder %s20, 1
          %s344 = scalar_select %p343, %s20, 1
          %s345 = scalar_lea.vmem %s1, %s344
        $region60: #{tpu_custom_call.1} parent=51 // pred_fallthru
          _
      $region52: #{tpu_custom_call.1} parent=5 // pred_fallthru
        _
      %p346 = scmp.le.s32.totalorder 1, %s20
      %p347 = scmp.lt.s32.totalorder %s20, 3
      %p348 = pnand %p346, %p347
      %p349 = pneg %p348
      // Predicated region
      $region61: #{tpu_custom_call.1} parent=5 // pred_check
        _
      $region62: #{tpu_custom_call.1} parent=5 // pred_check_branch
        %351 = sbr.rel (%p348) target = $region64
      $region63: #{tpu_custom_call.1} parent=5 // pred_region
        %s352 = ssub.s32 %s20, 1
        %p353 = scmp.lt.s32.totalorder %s25, 1
        %s354 = scalar_select %p353, %s25, 1
        %s355 = smul.addr %s354, 8
        %s356 = scalar_lea.vmem %s0, %s355
        %p357 = pneg %p46
        %p358 = pneg %p43
        %p359 = scmp.lt.s32.totalorder %s25, 1
        %s360 = scalar_select %p359, %s25, 1
        %s361 = scalar_lea.vmem %s1, %s360
        %p362 = pneg %p72
        %p363 = pneg %p69
        %p364 = pneg %p93
        %p365 = pneg %p90
        %p366 = pneg %p114
        %p367 = pneg %p111
        %p368 = pneg %p135
        %p369 = pneg %p132
        %p370 = pneg %p156
        %p371 = pneg %p153
        %p372 = pneg %p177
        %p373 = pneg %p174
        %p374 = pneg %p198
        %p375 = pneg %p195
        %p376 = pneg %p219
        %p377 = pneg %p216
        %p378 = pneg %p240
        %p379 = pneg %p237
        %p380 = pneg %p261
        %p381 = pneg %p258
        %p382 = pneg %p287
        %p383 = pneg %p284
        %s384 = sand.u32 %s274, 1
        %s385 = scalar_lea.sflag [#allocation3], %s384
        %s386 = sand.u32 %s274, 1
        %s387 = smul.addr %s386, 8
        %s388 = scalar_lea.vmem [#allocation2], %s387
        %p389 = scmp.lt.s32.totalorder %s25, 1
        %s390 = scalar_select %p389, %s25, 1
        %s391 = smul.addr %s390, 8
        %s392 = scalar_lea.vmem %s0, %s391
        %p393 = scmp.lt.s32.totalorder %s25, 1
        %s394 = scalar_select %p393, %s25, 1
        %s395 = scalar_lea.vmem %s1, %s394
        %v397 = vld [vmem:[%s10] sm:$0xff]
        %v398 = vld [vmem:[%s392] sm:$0xff]
        %vm399 = vcmask 261120
        %v400 = vsel %vm399, %v398, 0.0
        %401 = vadd.xlane.f32.xlu0 %v400
        %v402 = vpop.xlane.xlu0 %401
        %v403 = vrcp.pop 32.0
        %v404 = vmul.f32 %v402, %v403
        %v405 = vsub.f32 %v398, %v404
        %v406 = vmul.f32 %v405, %v405
        %v407 = vsel %vm399, %v406, 0.0
        %408 = vadd.xlane.f32.xlu0 %v407
        %v409 = vpop.xlane.xlu0 %408
        %v410 = vmul.f32 %v409, %v403
        %v411 = vadd.f32 %v410, 1e-12
        %v412 = vrsqrt.pop %v411
        %v413 = vmul.f32 %v405, %v412
        %v414 = vlaneseq
        %v415 = vshrl.u32 %v414, 7
        %v416 = vsub.s32 0, %v415
        %v417 = vrot.slane %v397, %v416
        %v418 = vmul.f32 %v413, %v417
        %v419 = vlaneseq
        %v420 = vshrl.u32 %v419, 7
        %v421 = vsub.s32 1, %v420
        %v422 = vrot.slane %v397, %v421
        %v423 = vadd.f32 %v418, %v422
        %v424 = vld [vmem:[%s395] sm:$0x1]
        %v425 = vsub.f32 %v424, 1.0
        %v426 = vmul.f32 %v425, 1e+09
        %v427 = vld [vmem:[%s7] sm:$0xff]
        %v428 = vpack.c.bf16 %v423, %v423
        %v429 = vld [vmem:[%s2] sm:$0xf]
        %v430 = vld [vmem:[%s2 + $0x4] sm:$0xf]
        %v431 = vld [vmem:[%s2 + $0x8] sm:$0xf]
        %v432 = vld [vmem:[%s2 + $0xc] sm:$0xf]
        %v433 = vld [vmem:[%s3] sm:$0x1]
        %v435 = vlaneseq
        %v436 = vshrl.u32 %v435, 7
        %v437 = vsub.s32 0, %v436
        %v438 = vrot.slane %v433, %v437
        %v444 = vunpack.c.l.b16 %v429
        %v445 = vunpack.c.l.b16 %v430
        %v446 = vunpack.c.l.b16 %v431
        %v447 = vunpack.c.l.b16 %v432
        %v448 = vpack.c.b16 %v445, %v444
        %v449 = vpack.c.b16 %v447, %v446
        %v453 = vsel %vm399, %v428, 0
        %455 = vmatprep.subr.bf16.mxu0 0
        %456 = vmatpush1.bf16.msra.mxu0 0
        %457 = vmatprep.subr.bf16.mxu0 0
        %458 = vmatpush1.bf16.msra.mxu0 0
        %459 = vmatprep.subr.bf16.mxu0 0
        %460 = vmatpush1.bf16.msra.mxu0 0
        %461 = vmatprep.subr.bf16.mxu0 0
        %462 = vmatpush1.bf16.msra.mxu0 0
        %463 = vmatprep.subr.bf16.mxu0 0
        %464 = vmatpush1.bf16.msra.mxu0 0
        %465 = vmatprep.subr.bf16.mxu0 0
        %466 = vmatpush1.bf16.msra.mxu0 0
        %467 = vmatprep.subr.bf16.mxu0 0
        %468 = vmatpush1.bf16.msra.mxu0 %v449
        %469 = vmatprep.subr.bf16.mxu0 0
        %470 = vmatpush1.bf16.msra.mxu0 %v448
        %471 = vmatprep.subr.bf16.mxu0 0
        %472 = vmatpush2.bf16.msra.mxu0 0
        %473 = vmatprep.subr.bf16.mxu0 0
        %474 = vmatpush2.bf16.msra.mxu0 0
        %475 = vmatprep.subr.bf16.mxu0 0
        %476 = vmatpush2.bf16.msra.mxu0 0
        %477 = vmatprep.subr.bf16.mxu0 0
        %478 = vmatpush2.bf16.msra.mxu0 0
        %479 = vmatprep.subr.bf16.mxu0 0
        %480 = vmatpush2.bf16.msra.mxu0 0
        %481 = vmatprep.subr.bf16.mxu0 0
        %482 = vmatpush2.bf16.msra.mxu0 0
        %483 = vmatprep.subr.bf16.mxu0 0
        %484 = vmatpush2.bf16.msra.mxu0 0
        %485 = vmatprep.subr.bf16.mxu0 0
        %486 = vmatpush2.bf16.msra.mxu0 0
        %487 = vmatprep.mubr.bf16.mxu0 0
        %488 = vmatmul.mubr.bf16.gmra.mxu0 %v453
        %v489 = vpop.f32.mrf.mxu0
        %v490 = vadd.f32 %v438, %v489
        %v491 = vpop.f32.mrf.mxu0
        %v492 = vpop.f32.mrf.mxu0
        %v493 = vpop.f32.mrf.mxu0
        %494 = vdwg.mxu0
        %s495 = scalar_lea.vmem %s2, 32
        %v496 = vld [vmem:[%s495] sm:$0xf]
        %v497 = vld [vmem:[%s495 + $0x4] sm:$0xf]
        %v498 = vld [vmem:[%s495 + $0x8] sm:$0xf]
        %v499 = vld [vmem:[%s495 + $0xc] sm:$0xf]
        %s500 = scalar_lea.vmem %s3, 2
        %v501 = vld [vmem:[%s500] sm:$0x1]
        %v503 = vlaneseq
        %v504 = vshrl.u32 %v503, 7
        %v505 = vsub.s32 0, %v504
        %v506 = vrot.slane %v501, %v505
        %v512 = vunpack.c.l.b16 %v496
        %v513 = vunpack.c.l.b16 %v497
        %v514 = vunpack.c.l.b16 %v498
        %v515 = vunpack.c.l.b16 %v499
        %v516 = vpack.c.b16 %v513, %v512
        %v517 = vpack.c.b16 %v515, %v514
        %520 = vmatprep.subr.bf16.mxu0 0
        %521 = vmatpush1.bf16.msra.mxu0 0
        %522 = vmatprep.subr.bf16.mxu0 0
        %523 = vmatpush1.bf16.msra.mxu0 0
        %524 = vmatprep.subr.bf16.mxu0 0
        %525 = vmatpush1.bf16.msra.mxu0 0
        %526 = vmatprep.subr.bf16.mxu0 0
        %527 = vmatpush1.bf16.msra.mxu0 0
        %528 = vmatprep.subr.bf16.mxu0 0
        %529 = vmatpush1.bf16.msra.mxu0 0
        %530 = vmatprep.subr.bf16.mxu0 0
        %531 = vmatpush1.bf16.msra.mxu0 0
        %532 = vmatprep.subr.bf16.mxu0 0
        %533 = vmatpush1.bf16.msra.mxu0 %v517
        %534 = vmatprep.subr.bf16.mxu0 0
        %535 = vmatpush1.bf16.msra.mxu0 %v516
        %536 = vmatprep.subr.bf16.mxu0 0
        %537 = vmatpush2.bf16.msra.mxu0 0
        %538 = vmatprep.subr.bf16.mxu0 0
        %539 = vmatpush2.bf16.msra.mxu0 0
        %540 = vmatprep.subr.bf16.mxu0 0
        %541 = vmatpush2.bf16.msra.mxu0 0
        %542 = vmatprep.subr.bf16.mxu0 0
        %543 = vmatpush2.bf16.msra.mxu0 0
        %544 = vmatprep.subr.bf16.mxu0 0
        %545 = vmatpush2.bf16.msra.mxu0 0
        %546 = vmatprep.subr.bf16.mxu0 0
        %547 = vmatpush2.bf16.msra.mxu0 0
        %548 = vmatprep.subr.bf16.mxu0 0
        %549 = vmatpush2.bf16.msra.mxu0 0
        %550 = vmatprep.subr.bf16.mxu0 0
        %551 = vmatpush2.bf16.msra.mxu0 0
        %552 = vmatprep.mubr.bf16.mxu0 0
        %553 = vmatmul.mubr.bf16.gmra.mxu0 %v453
        %v554 = vpop.f32.mrf.mxu0
        %v555 = vadd.f32 %v506, %v554
        %v556 = vpop.f32.mrf.mxu0
        %v557 = vpop.f32.mrf.mxu0
        %v558 = vpop.f32.mrf.mxu0
        %559 = vdwg.mxu0
        %s560 = scalar_lea.vmem %s2, 64
        %v561 = vld [vmem:[%s560] sm:$0xf]
        %v562 = vld [vmem:[%s560 + $0x4] sm:$0xf]
        %v563 = vld [vmem:[%s560 + $0x8] sm:$0xf]
        %v564 = vld [vmem:[%s560 + $0xc] sm:$0xf]
        %s565 = scalar_lea.vmem %s3, 4
        %v566 = vld [vmem:[%s565] sm:$0x1]
        %v568 = vlaneseq
        %v569 = vshrl.u32 %v568, 7
        %v570 = vsub.s32 0, %v569
        %v571 = vrot.slane %v566, %v570
        %v577 = vunpack.c.l.b16 %v561
        %v578 = vunpack.c.l.b16 %v562
        %v579 = vunpack.c.l.b16 %v563
        %v580 = vunpack.c.l.b16 %v564
        %v581 = vpack.c.b16 %v578, %v577
        %v582 = vpack.c.b16 %v580, %v579
        %585 = vmatprep.subr.bf16.mxu0 0
        %586 = vmatpush1.bf16.msra.mxu0 0
        %587 = vmatprep.subr.bf16.mxu0 0
        %588 = vmatpush1.bf16.msra.mxu0 0
        %589 = vmatprep.subr.bf16.mxu0 0
        %590 = vmatpush1.bf16.msra.mxu0 0
        %591 = vmatprep.subr.bf16.mxu0 0
        %592 = vmatpush1.bf16.msra.mxu0 0
        %593 = vmatprep.subr.bf16.mxu0 0
        %594 = vmatpush1.bf16.msra.mxu0 0
        %595 = vmatprep.subr.bf16.mxu0 0
        %596 = vmatpush1.bf16.msra.mxu0 0
        %597 = vmatprep.subr.bf16.mxu0 0
        %598 = vmatpush1.bf16.msra.mxu0 %v582
        %599 = vmatprep.subr.bf16.mxu0 0
        %600 = vmatpush1.bf16.msra.mxu0 %v581
        %601 = vmatprep.subr.bf16.mxu0 0
        %602 = vmatpush2.bf16.msra.mxu0 0
        %603 = vmatprep.subr.bf16.mxu0 0
        %604 = vmatpush2.bf16.msra.mxu0 0
        %605 = vmatprep.subr.bf16.mxu0 0
        %606 = vmatpush2.bf16.msra.mxu0 0
        %607 = vmatprep.subr.bf16.mxu0 0
        %608 = vmatpush2.bf16.msra.mxu0 0
        %609 = vmatprep.subr.bf16.mxu0 0
        %610 = vmatpush2.bf16.msra.mxu0 0
        %611 = vmatprep.subr.bf16.mxu0 0
        %612 = vmatpush2.bf16.msra.mxu0 0
        %613 = vmatprep.subr.bf16.mxu0 0
        %614 = vmatpush2.bf16.msra.mxu0 0
        %615 = vmatprep.subr.bf16.mxu0 0
        %616 = vmatpush2.bf16.msra.mxu0 0
        %617 = vmatprep.mubr.bf16.mxu0 0
        %618 = vmatmul.mubr.bf16.gmra.mxu0 %v453
        %v619 = vpop.f32.mrf.mxu0
        %v620 = vadd.f32 %v571, %v619
        %v621 = vpop.f32.mrf.mxu0
        %v622 = vpop.f32.mrf.mxu0
        %v623 = vpop.f32.mrf.mxu0
        %624 = vdwg.mxu0
        %v625 = vpack.c.bf16 %v490, %v490
        %v626 = vpack.c.bf16 %v555, %v555
        %v628 = vlaneseq
        %v629 = vshrl.u32 %v628, 7
        %v630 = vsub.s32 0, %v629
        %v631 = vrot.slane %v426, %v630
        %vm633 = vcmask 130048
        %v635 = vsel %vm633, %v625, 0
        %v638 = vsel %vm633, %v626, 0
        %640 = vmatprep.subr.bf16.mxu0 0
        %641 = vmatpush1.bf16.xpose.msra.mxu0 0
        %642 = vmatprep.subr.bf16.mxu0 0
        %643 = vmatpush1.bf16.xpose.msra.mxu0 0
        %644 = vmatprep.subr.bf16.mxu0 0
        %645 = vmatpush1.bf16.xpose.msra.mxu0 0
        %646 = vmatprep.subr.bf16.mxu0 0
        %647 = vmatpush1.bf16.xpose.msra.mxu0 0
        %648 = vmatprep.subr.bf16.mxu0 0
        %649 = vmatpush1.bf16.xpose.msra.mxu0 0
        %650 = vmatprep.subr.bf16.mxu0 0
        %651 = vmatpush1.bf16.xpose.msra.mxu0 0
        %652 = vmatprep.subr.bf16.mxu0 0
        %653 = vmatpush1.bf16.xpose.msra.mxu0 0
        %654 = vmatprep.subr.bf16.mxu0 0
        %655 = vmatpush1.bf16.xpose.msra.mxu0 %v638
        %656 = vmatprep.subr.bf16.mxu0 0
        %657 = vmatpush2.bf16.xpose.msra.mxu0 0
        %658 = vmatprep.subr.bf16.mxu0 0
        %659 = vmatpush2.bf16.xpose.msra.mxu0 0
        %660 = vmatprep.subr.bf16.mxu0 0
        %661 = vmatpush2.bf16.xpose.msra.mxu0 0
        %662 = vmatprep.subr.bf16.mxu0 0
        %663 = vmatpush2.bf16.xpose.msra.mxu0 0
        %664 = vmatprep.subr.bf16.mxu0 0
        %665 = vmatpush2.bf16.xpose.msra.mxu0 0
        %666 = vmatprep.subr.bf16.mxu0 0
        %667 = vmatpush2.bf16.xpose.msra.mxu0 0
        %668 = vmatprep.subr.bf16.mxu0 0
        %669 = vmatpush2.bf16.xpose.msra.mxu0 0
        %670 = vmatprep.subr.bf16.mxu0 0
        %671 = vmatpush2.bf16.xpose.msra.mxu0 0
        %672 = vmatprep.mubr.bf16.mxu0 0
        %673 = vmatmul.mubr.bf16.gmra.mxu0 %v635
        %v674 = vpop.f32.mrf.mxu0
        %v675 = vadd.f32 %v631, %v674
        %v676 = vpop.f32.mrf.mxu0
        %v677 = vpop.f32.mrf.mxu0
        %v678 = vpop.f32.mrf.mxu0
        %679 = vdwg.mxu0
        %vm680 = vcmask 64512
        %v681 = vsel %vm680, %v675, -inf
        %682 = vmax.xlane.f32.xlu0 %v681
        %v683 = vpop.xlane.xlu0 %682
        %v684 = vsub.f32 %v675, %v683
        %v685 = vmul.f32 %v684, 1.442695
        %v686 = vpow.pop %v685
        %v687 = vsel %vm680, %v686, 0.0
        %688 = vadd.xlane.f32.xlu0 %v687
        %v689 = vpop.xlane.xlu0 %688
        %v690 = vrcp.pop %v689
        %v691 = vmul.f32 %v686, %v690
        %v692 = vpack.c.bf16 %v691, %v691
        %v693 = vpack.c.bf16 %v620, %v620
        %v695 = vsel %vm680, %v692, 0
        %vm697 = vcmask 1043456
        %v699 = vsel %vm697, %v693, 0
        %701 = vmatprep.subr.bf16.mxu0 0
        %702 = vmatpush1.bf16.msra.mxu0 0
        %703 = vmatprep.subr.bf16.mxu0 0
        %704 = vmatpush1.bf16.msra.mxu0 0
        %705 = vmatprep.subr.bf16.mxu0 0
        %706 = vmatpush1.bf16.msra.mxu0 0
        %707 = vmatprep.subr.bf16.mxu0 0
        %708 = vmatpush1.bf16.msra.mxu0 0
        %709 = vmatprep.subr.bf16.mxu0 0
        %710 = vmatpush1.bf16.msra.mxu0 0
        %711 = vmatprep.subr.bf16.mxu0 0
        %712 = vmatpush1.bf16.msra.mxu0 0
        %713 = vmatprep.subr.bf16.mxu0 0
        %714 = vmatpush1.bf16.msra.mxu0 0
        %715 = vmatprep.subr.bf16.mxu0 0
        %716 = vmatpush1.bf16.msra.mxu0 %v699
        %717 = vmatprep.subr.bf16.mxu0 0
        %718 = vmatpush2.bf16.msra.mxu0 0
        %719 = vmatprep.subr.bf16.mxu0 0
        %720 = vmatpush2.bf16.msra.mxu0 0
        %721 = vmatprep.subr.bf16.mxu0 0
        %722 = vmatpush2.bf16.msra.mxu0 0
        %723 = vmatprep.subr.bf16.mxu0 0
        %724 = vmatpush2.bf16.msra.mxu0 0
        %725 = vmatprep.subr.bf16.mxu0 0
        %726 = vmatpush2.bf16.msra.mxu0 0
        %727 = vmatprep.subr.bf16.mxu0 0
        %728 = vmatpush2.bf16.msra.mxu0 0
        %729 = vmatprep.subr.bf16.mxu0 0
        %730 = vmatpush2.bf16.msra.mxu0 0
        %731 = vmatprep.subr.bf16.mxu0 0
        %732 = vmatpush2.bf16.msra.mxu0 0
        %733 = vmatprep.mubr.bf16.mxu0 0
        %734 = vmatmul.mubr.bf16.gmra.mxu0 %v695
        %v735 = vpop.f32.mrf.mxu0
        %v736 = vadd.f32 0.0, %v735
        %v737 = vpop.f32.mrf.mxu0
        %v738 = vpop.f32.mrf.mxu0
        %v739 = vpop.f32.mrf.mxu0
        %740 = vdwg.mxu0
        %v741 = vpack.c.bf16 %v736, %v736
        %v742 = vld [vmem:[%s4] sm:$0xf]
        %v743 = vld [vmem:[%s4 + $0x4] sm:$0xf]
        %s744 = scalar_lea.vmem %s2, 16
        %v745 = vld [vmem:[%s744] sm:$0xf]
        %v746 = vld [vmem:[%s744 + $0x4] sm:$0xf]
        %v747 = vld [vmem:[%s744 + $0x8] sm:$0xf]
        %v748 = vld [vmem:[%s744 + $0xc] sm:$0xf]
        %s749 = scalar_lea.vmem %s3, 1
        %v750 = vld [vmem:[%s749] sm:$0x1]
        %v752 = vlaneseq
        %v753 = vshrl.u32 %v752, 7
        %v754 = vsub.s32 0, %v753
        %v755 = vrot.slane %v750, %v754
        %v761 = vunpack.c.l.b16 %v745
        %v762 = vunpack.c.l.b16 %v746
        %v763 = vunpack.c.l.b16 %v747
        %v764 = vunpack.c.l.b16 %v748
        %v765 = vpack.c.b16 %v762, %v761
        %v766 = vpack.c.b16 %v764, %v763
        %769 = vmatprep.subr.bf16.mxu0 0
        %770 = vmatpush1.bf16.msra.mxu0 0
        %771 = vmatprep.subr.bf16.mxu0 0
        %772 = vmatpush1.bf16.msra.mxu0 0
        %773 = vmatprep.subr.bf16.mxu0 0
        %774 = vmatpush1.bf16.msra.mxu0 0
        %775 = vmatprep.subr.bf16.mxu0 0
        %776 = vmatpush1.bf16.msra.mxu0 0
        %777 = vmatprep.subr.bf16.mxu0 0
        %778 = vmatpush1.bf16.msra.mxu0 0
        %779 = vmatprep.subr.bf16.mxu0 0
        %780 = vmatpush1.bf16.msra.mxu0 0
        %781 = vmatprep.subr.bf16.mxu0 0
        %782 = vmatpush1.bf16.msra.mxu0 %v766
        %783 = vmatprep.subr.bf16.mxu0 0
        %784 = vmatpush1.bf16.msra.mxu0 %v765
        %785 = vmatprep.subr.bf16.mxu0 0
        %786 = vmatpush2.bf16.msra.mxu0 0
        %787 = vmatprep.subr.bf16.mxu0 0
        %788 = vmatpush2.bf16.msra.mxu0 0
        %789 = vmatprep.subr.bf16.mxu0 0
        %790 = vmatpush2.bf16.msra.mxu0 0
        %791 = vmatprep.subr.bf16.mxu0 0
        %792 = vmatpush2.bf16.msra.mxu0 0
        %793 = vmatprep.subr.bf16.mxu0 0
        %794 = vmatpush2.bf16.msra.mxu0 0
        %795 = vmatprep.subr.bf16.mxu0 0
        %796 = vmatpush2.bf16.msra.mxu0 0
        %797 = vmatprep.subr.bf16.mxu0 0
        %798 = vmatpush2.bf16.msra.mxu0 0
        %799 = vmatprep.subr.bf16.mxu0 0
        %800 = vmatpush2.bf16.msra.mxu0 0
        %801 = vmatprep.mubr.bf16.mxu0 0
        %802 = vmatmul.mubr.bf16.gmra.mxu0 %v453
        %v803 = vpop.f32.mrf.mxu0
        %v804 = vadd.f32 %v755, %v803
        %v805 = vpop.f32.mrf.mxu0
        %v806 = vpop.f32.mrf.mxu0
        %v807 = vpop.f32.mrf.mxu0
        %808 = vdwg.mxu0
        %s809 = scalar_lea.vmem %s2, 48
        %v810 = vld [vmem:[%s809] sm:$0xf]
        %v811 = vld [vmem:[%s809 + $0x4] sm:$0xf]
        %v812 = vld [vmem:[%s809 + $0x8] sm:$0xf]
        %v813 = vld [vmem:[%s809 + $0xc] sm:$0xf]
        %s814 = scalar_lea.vmem %s3, 3
        %v815 = vld [vmem:[%s814] sm:$0x1]
        %v817 = vlaneseq
        %v818 = vshrl.u32 %v817, 7
        %v819 = vsub.s32 0, %v818
        %v820 = vrot.slane %v815, %v819
        %v826 = vunpack.c.l.b16 %v810
        %v827 = vunpack.c.l.b16 %v811
        %v828 = vunpack.c.l.b16 %v812
        %v829 = vunpack.c.l.b16 %v813
        %v830 = vpack.c.b16 %v827, %v826
        %v831 = vpack.c.b16 %v829, %v828
        %834 = vmatprep.subr.bf16.mxu0 0
        %835 = vmatpush1.bf16.msra.mxu0 0
        %836 = vmatprep.subr.bf16.mxu0 0
        %837 = vmatpush1.bf16.msra.mxu0 0
        %838 = vmatprep.subr.bf16.mxu0 0
        %839 = vmatpush1.bf16.msra.mxu0 0
        %840 = vmatprep.subr.bf16.mxu0 0
        %841 = vmatpush1.bf16.msra.mxu0 0
        %842 = vmatprep.subr.bf16.mxu0 0
        %843 = vmatpush1.bf16.msra.mxu0 0
        %844 = vmatprep.subr.bf16.mxu0 0
        %845 = vmatpush1.bf16.msra.mxu0 0
        %846 = vmatprep.subr.bf16.mxu0 0
        %847 = vmatpush1.bf16.msra.mxu0 %v831
        %848 = vmatprep.subr.bf16.mxu0 0
        %849 = vmatpush1.bf16.msra.mxu0 %v830
        %850 = vmatprep.subr.bf16.mxu0 0
        %851 = vmatpush2.bf16.msra.mxu0 0
        %852 = vmatprep.subr.bf16.mxu0 0
        %853 = vmatpush2.bf16.msra.mxu0 0
        %854 = vmatprep.subr.bf16.mxu0 0
        %855 = vmatpush2.bf16.msra.mxu0 0
        %856 = vmatprep.subr.bf16.mxu0 0
        %857 = vmatpush2.bf16.msra.mxu0 0
        %858 = vmatprep.subr.bf16.mxu0 0
        %859 = vmatpush2.bf16.msra.mxu0 0
        %860 = vmatprep.subr.bf16.mxu0 0
        %861 = vmatpush2.bf16.msra.mxu0 0
        %862 = vmatprep.subr.bf16.mxu0 0
        %863 = vmatpush2.bf16.msra.mxu0 0
        %864 = vmatprep.subr.bf16.mxu0 0
        %865 = vmatpush2.bf16.msra.mxu0 0
        %866 = vmatprep.mubr.bf16.mxu0 0
        %867 = vmatmul.mubr.bf16.gmra.mxu0 %v453
        %v868 = vpop.f32.mrf.mxu0
        %v869 = vadd.f32 %v820, %v868
        %v870 = vpop.f32.mrf.mxu0
        %v871 = vpop.f32.mrf.mxu0
        %v872 = vpop.f32.mrf.mxu0
        %873 = vdwg.mxu0
        %s874 = scalar_lea.vmem %s2, 80
        %v875 = vld [vmem:[%s874] sm:$0xf]
        %v876 = vld [vmem:[%s874 + $0x4] sm:$0xf]
        %v877 = vld [vmem:[%s874 + $0x8] sm:$0xf]
        %v878 = vld [vmem:[%s874 + $0xc] sm:$0xf]
        %s879 = scalar_lea.vmem %s3, 5
        %v880 = vld [vmem:[%s879] sm:$0x1]
        %v882 = vlaneseq
        %v883 = vshrl.u32 %v882, 7
        %v884 = vsub.s32 0, %v883
        %v885 = vrot.slane %v880, %v884
        %v891 = vunpack.c.l.b16 %v875
        %v892 = vunpack.c.l.b16 %v876
        %v893 = vunpack.c.l.b16 %v877
        %v894 = vunpack.c.l.b16 %v878
        %v895 = vpack.c.b16 %v892, %v891
        %v896 = vpack.c.b16 %v894, %v893
        %899 = vmatprep.subr.bf16.mxu0 0
        %900 = vmatpush1.bf16.msra.mxu0 0
        %901 = vmatprep.subr.bf16.mxu0 0
        %902 = vmatpush1.bf16.msra.mxu0 0
        %903 = vmatprep.subr.bf16.mxu0 0
        %904 = vmatpush1.bf16.msra.mxu0 0
        %905 = vmatprep.subr.bf16.mxu0 0
        %906 = vmatpush1.bf16.msra.mxu0 0
        %907 = vmatprep.subr.bf16.mxu0 0
        %908 = vmatpush1.bf16.msra.mxu0 0
        %909 = vmatprep.subr.bf16.mxu0 0
        %910 = vmatpush1.bf16.msra.mxu0 0
        %911 = vmatprep.subr.bf16.mxu0 0
        %912 = vmatpush1.bf16.msra.mxu0 %v896
        %913 = vmatprep.subr.bf16.mxu0 0
        %914 = vmatpush1.bf16.msra.mxu0 %v895
        %915 = vmatprep.subr.bf16.mxu0 0
        %916 = vmatpush2.bf16.msra.mxu0 0
        %917 = vmatprep.subr.bf16.mxu0 0
        %918 = vmatpush2.bf16.msra.mxu0 0
        %919 = vmatprep.subr.bf16.mxu0 0
        %920 = vmatpush2.bf16.msra.mxu0 0
        %921 = vmatprep.subr.bf16.mxu0 0
        %922 = vmatpush2.bf16.msra.mxu0 0
        %923 = vmatprep.subr.bf16.mxu0 0
        %924 = vmatpush2.bf16.msra.mxu0 0
        %925 = vmatprep.subr.bf16.mxu0 0
        %926 = vmatpush2.bf16.msra.mxu0 0
        %927 = vmatprep.subr.bf16.mxu0 0
        %928 = vmatpush2.bf16.msra.mxu0 0
        %929 = vmatprep.subr.bf16.mxu0 0
        %930 = vmatpush2.bf16.msra.mxu0 0
        %931 = vmatprep.mubr.bf16.mxu0 0
        %932 = vmatmul.mubr.bf16.gmra.mxu0 %v453
        %v933 = vpop.f32.mrf.mxu0
        %v934 = vadd.f32 %v885, %v933
        %v935 = vpop.f32.mrf.mxu0
        %v936 = vpop.f32.mrf.mxu0
        %v937 = vpop.f32.mrf.mxu0
        %938 = vdwg.mxu0
        %v939 = vpack.c.bf16 %v804, %v804
        %v940 = vpack.c.bf16 %v869, %v869
        %v942 = vsel %vm633, %v939, 0
        %v945 = vsel %vm633, %v940, 0
        %947 = vmatprep.subr.bf16.mxu0 0
        %948 = vmatpush1.bf16.xpose.msra.mxu0 0
        %949 = vmatprep.subr.bf16.mxu0 0
        %950 = vmatpush1.bf16.xpose.msra.mxu0 0
        %951 = vmatprep.subr.bf16.mxu0 0
        %952 = vmatpush1.bf16.xpose.msra.mxu0 0
        %953 = vmatprep.subr.bf16.mxu0 0
        %954 = vmatpush1.bf16.xpose.msra.mxu0 0
        %955 = vmatprep.subr.bf16.mxu0 0
        %956 = vmatpush1.bf16.xpose.msra.mxu0 0
        %957 = vmatprep.subr.bf16.mxu0 0
        %958 = vmatpush1.bf16.xpose.msra.mxu0 0
        %959 = vmatprep.subr.bf16.mxu0 0
        %960 = vmatpush1.bf16.xpose.msra.mxu0 0
        %961 = vmatprep.subr.bf16.mxu0 0
        %962 = vmatpush1.bf16.xpose.msra.mxu0 %v945
        %963 = vmatprep.subr.bf16.mxu0 0
        %964 = vmatpush2.bf16.xpose.msra.mxu0 0
        %965 = vmatprep.subr.bf16.mxu0 0
        %966 = vmatpush2.bf16.xpose.msra.mxu0 0
        %967 = vmatprep.subr.bf16.mxu0 0
        %968 = vmatpush2.bf16.xpose.msra.mxu0 0
        %969 = vmatprep.subr.bf16.mxu0 0
        %970 = vmatpush2.bf16.xpose.msra.mxu0 0
        %971 = vmatprep.subr.bf16.mxu0 0
        %972 = vmatpush2.bf16.xpose.msra.mxu0 0
        %973 = vmatprep.subr.bf16.mxu0 0
        %974 = vmatpush2.bf16.xpose.msra.mxu0 0
        %975 = vmatprep.subr.bf16.mxu0 0
        %976 = vmatpush2.bf16.xpose.msra.mxu0 0
        %977 = vmatprep.subr.bf16.mxu0 0
        %978 = vmatpush2.bf16.xpose.msra.mxu0 0
        %979 = vmatprep.mubr.bf16.mxu0 0
        %980 = vmatmul.mubr.bf16.gmra.mxu0 %v942
        %v981 = vpop.f32.mrf.mxu0
        %v982 = vadd.f32 %v631, %v981
        %v983 = vpop.f32.mrf.mxu0
        %v984 = vpop.f32.mrf.mxu0
        %v985 = vpop.f32.mrf.mxu0
        %986 = vdwg.mxu0
        %v987 = vsel %vm680, %v982, -inf
        %988 = vmax.xlane.f32.xlu0 %v987
        %v989 = vpop.xlane.xlu0 %988
        %v990 = vsub.f32 %v982, %v989
        %v991 = vmul.f32 %v990, 1.442695
        %v992 = vpow.pop %v991
        %v993 = vsel %vm680, %v992, 0.0
        %994 = vadd.xlane.f32.xlu0 %v993
        %v995 = vpop.xlane.xlu0 %994
        %v996 = vrcp.pop %v995
        %v997 = vmul.f32 %v992, %v996
        %v998 = vpack.c.bf16 %v997, %v997
        %v999 = vpack.c.bf16 %v934, %v934
        %v1001 = vsel %vm680, %v998, 0
        %v1004 = vsel %vm697, %v999, 0
        %1006 = vmatprep.subr.bf16.mxu0 0
        %1007 = vmatpush1.bf16.msra.mxu0 0
        %1008 = vmatprep.subr.bf16.mxu0 0
        %1009 = vmatpush1.bf16.msra.mxu0 0
        %1010 = vmatprep.subr.bf16.mxu0 0
        %1011 = vmatpush1.bf16.msra.mxu0 0
        %1012 = vmatprep.subr.bf16.mxu0 0
        %1013 = vmatpush1.bf16.msra.mxu0 0
        %1014 = vmatprep.subr.bf16.mxu0 0
        %1015 = vmatpush1.bf16.msra.mxu0 0
        %1016 = vmatprep.subr.bf16.mxu0 0
        %1017 = vmatpush1.bf16.msra.mxu0 0
        %1018 = vmatprep.subr.bf16.mxu0 0
        %1019 = vmatpush1.bf16.msra.mxu0 0
        %1020 = vmatprep.subr.bf16.mxu0 0
        %1021 = vmatpush1.bf16.msra.mxu0 %v1004
        %1022 = vmatprep.subr.bf16.mxu0 0
        %1023 = vmatpush2.bf16.msra.mxu0 0
        %1024 = vmatprep.subr.bf16.mxu0 0
        %1025 = vmatpush2.bf16.msra.mxu0 0
        %1026 = vmatprep.subr.bf16.mxu0 0
        %1027 = vmatpush2.bf16.msra.mxu0 0
        %1028 = vmatprep.subr.bf16.mxu0 0
        %1029 = vmatpush2.bf16.msra.mxu0 0
        %1030 = vmatprep.subr.bf16.mxu0 0
        %1031 = vmatpush2.bf16.msra.mxu0 0
        %1032 = vmatprep.subr.bf16.mxu0 0
        %1033 = vmatpush2.bf16.msra.mxu0 0
        %1034 = vmatprep.subr.bf16.mxu0 0
        %1035 = vmatpush2.bf16.msra.mxu0 0
        %1036 = vmatprep.subr.bf16.mxu0 0
        %1037 = vmatpush2.bf16.msra.mxu0 0
        %1038 = vmatprep.mubr.bf16.mxu0 0
        %1039 = vmatmul.mubr.bf16.gmra.mxu0 %v1001
        %v1040 = vpop.f32.mrf.mxu0
        %v1041 = vadd.f32 0.0, %v1040
        %v1042 = vpop.f32.mrf.mxu0
        %v1043 = vpop.f32.mrf.mxu0
        %v1044 = vpop.f32.mrf.mxu0
        %1045 = vdwg.mxu0
        %v1046 = vpack.c.bf16 %v1041, %v1041
        %s1047 = scalar_lea.vmem %s4, 8
        %v1048 = vld [vmem:[%s1047] sm:$0xf]
        %v1049 = vld [vmem:[%s1047 + $0x4] sm:$0xf]
        %v1052 = vunpack.c.l.b16 %v1048
        %v1053 = vunpack.c.l.b16 %v1049
        %v1054 = vpack.c.b16 %v1053, %v1052
        %v1057 = vsel %vm633, %v1046, 0
        %1059 = vmatprep.subr.bf16.mxu0 0
        %1060 = vmatpush1.bf16.msra.mxu0 0
        %1061 = vmatprep.subr.bf16.mxu0 0
        %1062 = vmatpush1.bf16.msra.mxu0 0
        %1063 = vmatprep.subr.bf16.mxu0 0
        %1064 = vmatpush1.bf16.msra.mxu0 0
        %1065 = vmatprep.subr.bf16.mxu0 0
        %1066 = vmatpush1.bf16.msra.mxu0 0
        %1067 = vmatprep.subr.bf16.mxu0 0
        %1068 = vmatpush1.bf16.msra.mxu0 0
        %1069 = vmatprep.subr.bf16.mxu0 0
        %1070 = vmatpush1.bf16.msra.mxu0 0
        %1071 = vmatprep.subr.bf16.mxu0 0
        %1072 = vmatpush1.bf16.msra.mxu0 0
        %1073 = vmatprep.subr.bf16.mxu0 0
        %1074 = vmatpush1.bf16.msra.mxu0 %v1054
        %1075 = vmatprep.subr.bf16.mxu0 0
        %1076 = vmatpush2.bf16.msra.mxu0 0
        %1077 = vmatprep.subr.bf16.mxu0 0
        %1078 = vmatpush2.bf16.msra.mxu0 0
        %1079 = vmatprep.subr.bf16.mxu0 0
        %1080 = vmatpush2.bf16.msra.mxu0 0
        %1081 = vmatprep.subr.bf16.mxu0 0
        %1082 = vmatpush2.bf16.msra.mxu0 0
        %1083 = vmatprep.subr.bf16.mxu0 0
        %1084 = vmatpush2.bf16.msra.mxu0 0
        %1085 = vmatprep.subr.bf16.mxu0 0
        %1086 = vmatpush2.bf16.msra.mxu0 0
        %1087 = vmatprep.subr.bf16.mxu0 0
        %1088 = vmatpush2.bf16.msra.mxu0 0
        %1089 = vmatprep.subr.bf16.mxu0 0
        %1090 = vmatpush2.bf16.msra.mxu0 0
        %1091 = vmatprep.mubr.bf16.mxu0 0
        %1092 = vmatmul.mubr.bf16.gmra.mxu0 %v1057
        %v1093 = vpop.f32.mrf.mxu0
        %v1094 = vadd.f32 0.0, %v1093
        %v1095 = vpop.f32.mrf.mxu0
        %v1096 = vpop.f32.mrf.mxu0
        %v1097 = vpop.f32.mrf.mxu0
        %1098 = vdwg.mxu0
        %v1101 = vunpack.c.l.b16 %v742
        %v1102 = vunpack.c.l.b16 %v743
        %v1103 = vpack.c.b16 %v1102, %v1101
        %v1106 = vsel %vm633, %v741, 0
        %1108 = vmatprep.subr.bf16.mxu0 0
        %1109 = vmatpush1.bf16.msra.mxu0 0
        %1110 = vmatprep.subr.bf16.mxu0 0
        %1111 = vmatpush1.bf16.msra.mxu0 0
        %1112 = vmatprep.subr.bf16.mxu0 0
        %1113 = vmatpush1.bf16.msra.mxu0 0
        %1114 = vmatprep.subr.bf16.mxu0 0
        %1115 = vmatpush1.bf16.msra.mxu0 0
        %1116 = vmatprep.subr.bf16.mxu0 0
        %1117 = vmatpush1.bf16.msra.mxu0 0
        %1118 = vmatprep.subr.bf16.mxu0 0
        %1119 = vmatpush1.bf16.msra.mxu0 0
        %1120 = vmatprep.subr.bf16.mxu0 0
        %1121 = vmatpush1.bf16.msra.mxu0 0
        %1122 = vmatprep.subr.bf16.mxu0 0
        %1123 = vmatpush1.bf16.msra.mxu0 %v1103
        %1124 = vmatprep.subr.bf16.mxu0 0
        %1125 = vmatpush2.bf16.msra.mxu0 0
        %1126 = vmatprep.subr.bf16.mxu0 0
        %1127 = vmatpush2.bf16.msra.mxu0 0
        %1128 = vmatprep.subr.bf16.mxu0 0
        %1129 = vmatpush2.bf16.msra.mxu0 0
        %1130 = vmatprep.subr.bf16.mxu0 0
        %1131 = vmatpush2.bf16.msra.mxu0 0
        %1132 = vmatprep.subr.bf16.mxu0 0
        %1133 = vmatpush2.bf16.msra.mxu0 0
        %1134 = vmatprep.subr.bf16.mxu0 0
        %1135 = vmatpush2.bf16.msra.mxu0 0
        %1136 = vmatprep.subr.bf16.mxu0 0
        %1137 = vmatpush2.bf16.msra.mxu0 0
        %1138 = vmatprep.subr.bf16.mxu0 0
        %1139 = vmatpush2.bf16.msra.mxu0 0
        %1140 = vmatprep.mubr.bf16.mxu0 0
        %1141 = vmatmul.mubr.bf16.gmra.mxu0 %v1106
        %v1142 = vpop.f32.mrf.mxu0
        %v1143 = vadd.f32 %v1094, %v1142
        %v1144 = vpop.f32.mrf.mxu0
        %v1145 = vpop.f32.mrf.mxu0
        %v1146 = vpop.f32.mrf.mxu0
        %1147 = vdwg.mxu0
        %v1148 = vlaneseq
        %v1149 = vshrl.u32 %v1148, 7
        %v1150 = vsub.s32 0, %v1149
        %v1151 = vrot.slane %v427, %v1150
        %v1152 = vadd.f32 %v1143, %v1151
        %v1153 = vadd.f32 %v1152, %v423
        %v1154 = vsel %vm399, %v1153, 0.0
        %1155 = vadd.xlane.f32.xlu0 %v1154
        %v1156 = vpop.xlane.xlu0 %1155
        %v1157 = vmul.f32 %v1156, %v403
        %v1158 = vsub.f32 %v1153, %v1157
        %v1159 = vmul.f32 %v1158, %v1158
        %v1160 = vsel %vm399, %v1159, 0.0
        %1161 = vadd.xlane.f32.xlu0 %v1160
        %v1162 = vpop.xlane.xlu0 %1161
        %v1163 = vmul.f32 %v1162, %v403
        %v1164 = vadd.f32 %v1163, 1e-12
        %v1165 = vrsqrt.pop %v1164
        %v1166 = vmul.f32 %v1158, %v1165
        %v1167 = vlaneseq
        %v1168 = vshrl.u32 %v1167, 7
        %v1169 = vsub.s32 1, %v1168
        %v1170 = vrot.slane %v427, %v1169
        %v1171 = vmul.f32 %v1166, %v1170
        %v1172 = vlaneseq
        %v1173 = vshrl.u32 %v1172, 7
        %v1174 = vsub.s32 2, %v1173
        %v1175 = vrot.slane %v427, %v1174
        %v1176 = vadd.f32 %v1171, %v1175
        %v1177 = vpack.c.bf16 %v1176, %v1176
        %v1178 = vld [vmem:[%s5] sm:$0xf]
        %v1179 = vld [vmem:[%s5 + $0x4] sm:$0xf]
        %v1180 = vld [vmem:[%s5 + $0x8] sm:$0xf]
        %v1181 = vld [vmem:[%s5 + $0xc] sm:$0xf]
        %v1182 = vlaneseq
        %v1183 = vshrl.u32 %v1182, 7
        %v1184 = vsub.s32 3, %v1183
        %v1185 = vrot.slane %v427, %v1184
        %v1190 = vunpack.c.l.b16 %v1178
        %v1191 = vunpack.c.l.b16 %v1179
        %v1192 = vunpack.c.l.b16 %v1180
        %v1193 = vunpack.c.l.b16 %v1181
        %v1194 = vpack.c.b16 %v1191, %v1190
        %v1195 = vpack.c.b16 %v1193, %v1192
        %v1199 = vsel %vm399, %v1177, 0
        %1201 = vmatprep.subr.bf16.mxu0 0
        %1202 = vmatpush1.bf16.msra.mxu0 0
        %1203 = vmatprep.subr.bf16.mxu0 0
        %1204 = vmatpush1.bf16.msra.mxu0 0
        %1205 = vmatprep.subr.bf16.mxu0 0
        %1206 = vmatpush1.bf16.msra.mxu0 0
        %1207 = vmatprep.subr.bf16.mxu0 0
        %1208 = vmatpush1.bf16.msra.mxu0 0
        %1209 = vmatprep.subr.bf16.mxu0 0
        %1210 = vmatpush1.bf16.msra.mxu0 0
        %1211 = vmatprep.subr.bf16.mxu0 0
        %1212 = vmatpush1.bf16.msra.mxu0 0
        %1213 = vmatprep.subr.bf16.mxu0 0
        %1214 = vmatpush1.bf16.msra.mxu0 %v1195
        %1215 = vmatprep.subr.bf16.mxu0 0
        %1216 = vmatpush1.bf16.msra.mxu0 %v1194
        %1217 = vmatprep.subr.bf16.mxu0 0
        %1218 = vmatpush2.bf16.msra.mxu0 0
        %1219 = vmatprep.subr.bf16.mxu0 0
        %1220 = vmatpush2.bf16.msra.mxu0 0
        %1221 = vmatprep.subr.bf16.mxu0 0
        %1222 = vmatpush2.bf16.msra.mxu0 0
        %1223 = vmatprep.subr.bf16.mxu0 0
        %1224 = vmatpush2.bf16.msra.mxu0 0
        %1225 = vmatprep.subr.bf16.mxu0 0
        %1226 = vmatpush2.bf16.msra.mxu0 0
        %1227 = vmatprep.subr.bf16.mxu0 0
        %1228 = vmatpush2.bf16.msra.mxu0 0
        %1229 = vmatprep.subr.bf16.mxu0 0
        %1230 = vmatpush2.bf16.msra.mxu0 0
        %1231 = vmatprep.subr.bf16.mxu0 0
        %1232 = vmatpush2.bf16.msra.mxu0 0
        %1233 = vmatprep.mubr.bf16.mxu0 0
        %1234 = vmatmul.mubr.bf16.gmra.mxu0 %v1199
        %v1235 = vpop.f32.mrf.mxu0
        %v1236 = vadd.f32 %v1185, %v1235
        %v1237 = vpop.f32.mrf.mxu0
        %v1238 = vpop.f32.mrf.mxu0
        %v1239 = vpop.f32.mrf.mxu0
        %1240 = vdwg.mxu0
        %v1241 = vmul.f32 %v1236, 0.5
        %v1242 = vmul.f32 %v1236, 0.044715
        %v1243 = vmul.f32 %v1242, %v1236
        %v1244 = vmul.f32 %v1243, %v1236
        %v1245 = vadd.f32 %v1236, %v1244
        %v1246 = vmul.f32 %v1245, 0.7978846
        %v1247 = vtanh.pop %v1246
        %v1248 = vadd.f32 %v1247, 1.0
        %v1249 = vmul.f32 %v1241, %v1248
        %v1250 = vpack.c.bf16 %v1249, %v1249
        %v1251 = vld [vmem:[%s6] sm:$0xf]
        %v1252 = vld [vmem:[%s6 + $0x4] sm:$0xf]
        %v1253 = vld [vmem:[%s6 + $0x8] sm:$0xf]
        %v1254 = vld [vmem:[%s6 + $0xc] sm:$0xf]
        %v1255 = vld [vmem:[%s6 + $0x10] sm:$0xf]
        %v1256 = vld [vmem:[%s6 + $0x14] sm:$0xf]
        %v1257 = vld [vmem:[%s6 + $0x18] sm:$0xf]
        %v1258 = vld [vmem:[%s6 + $0x1c] sm:$0xf]
        %v1259 = vlaneseq
        %v1260 = vshrl.u32 %v1259, 7
        %v1261 = vsub.s32 4, %v1260
        %v1262 = vrot.slane %v427, %v1261
        %v1271 = vunpack.c.l.b16 %v1251
        %v1272 = vunpack.c.l.b16 %v1252
        %v1273 = vunpack.c.l.b16 %v1253
        %v1274 = vunpack.c.l.b16 %v1254
        %v1275 = vunpack.c.l.b16 %v1255
        %v1276 = vunpack.c.l.b16 %v1256
        %v1277 = vunpack.c.l.b16 %v1257
        %v1278 = vunpack.c.l.b16 %v1258
        %v1279 = vpack.c.b16 %v1272, %v1271
        %v1280 = vpack.c.b16 %v1274, %v1273
        %v1281 = vpack.c.b16 %v1276, %v1275
        %v1282 = vpack.c.b16 %v1278, %v1277
        %vm1287 = vcmask 523264
        %v1289 = vsel %vm1287, %v1250, 0
        %1291 = vmatprep.subr.bf16.mxu0 0
        %1292 = vmatpush1.bf16.msra.mxu0 0
        %1293 = vmatprep.subr.bf16.mxu0 0
        %1294 = vmatpush1.bf16.msra.mxu0 0
        %1295 = vmatprep.subr.bf16.mxu0 0
        %1296 = vmatpush1.bf16.msra.mxu0 0
        %1297 = vmatprep.subr.bf16.mxu0 0
        %1298 = vmatpush1.bf16.msra.mxu0 0
        %1299 = vmatprep.subr.bf16.mxu0 0
        %1300 = vmatpush1.bf16.msra.mxu0 %v1282
        %1301 = vmatprep.subr.bf16.mxu0 0
        %1302 = vmatpush1.bf16.msra.mxu0 %v1281
        %1303 = vmatprep.subr.bf16.mxu0 0
        %1304 = vmatpush1.bf16.msra.mxu0 %v1280
        %1305 = vmatprep.subr.bf16.mxu0 0
        %1306 = vmatpush1.bf16.msra.mxu0 %v1279
        %1307 = vmatprep.subr.bf16.mxu0 0
        %1308 = vmatpush2.bf16.msra.mxu0 0
        %1309 = vmatprep.subr.bf16.mxu0 0
        %1310 = vmatpush2.bf16.msra.mxu0 0
        %1311 = vmatprep.subr.bf16.mxu0 0
        %1312 = vmatpush2.bf16.msra.mxu0 0
        %1313 = vmatprep.subr.bf16.mxu0 0
        %1314 = vmatpush2.bf16.msra.mxu0 0
        %1315 = vmatprep.subr.bf16.mxu0 0
        %1316 = vmatpush2.bf16.msra.mxu0 0
        %1317 = vmatprep.subr.bf16.mxu0 0
        %1318 = vmatpush2.bf16.msra.mxu0 0
        %1319 = vmatprep.subr.bf16.mxu0 0
        %1320 = vmatpush2.bf16.msra.mxu0 0
        %1321 = vmatprep.subr.bf16.mxu0 0
        %1322 = vmatpush2.bf16.msra.mxu0 0
        %1323 = vmatprep.mubr.bf16.mxu0 0
        %1324 = vmatmul.mubr.bf16.gmra.mxu0 %v1289
        %v1325 = vpop.f32.mrf.mxu0
        %v1326 = vadd.f32 %v1262, %v1325
        %v1327 = vpop.f32.mrf.mxu0
        %v1328 = vpop.f32.mrf.mxu0
        %v1329 = vpop.f32.mrf.mxu0
        %1330 = vdwg.mxu0
        %v1331 = vadd.f32 %v1326, %v1176
        %v1332 = vsel %vm399, %v1331, 0.0
        %1333 = vadd.xlane.f32.xlu0 %v1332
        %v1334 = vpop.xlane.xlu0 %1333
        %v1335 = vmul.f32 %v1334, %v403
        %v1336 = vsub.f32 %v1331, %v1335
        %v1337 = vmul.f32 %v1336, %v1336
        %v1338 = vsel %vm399, %v1337, 0.0
        %1339 = vadd.xlane.f32.xlu0 %v1338
        %v1340 = vpop.xlane.xlu0 %1339
        %v1341 = vmul.f32 %v1340, %v403
        %v1342 = vadd.f32 %v1341, 1e-12
        %v1343 = vrsqrt.pop %v1342
        %v1344 = vmul.f32 %v1336, %v1343
        %v1345 = vlaneseq
        %v1346 = vshrl.u32 %v1345, 7
        %v1347 = vsub.s32 5, %v1346
        %v1348 = vrot.slane %v427, %v1347
        %v1349 = vmul.f32 %v1344, %v1348
        %v1350 = vlaneseq
        %v1351 = vshrl.u32 %v1350, 7
        %v1352 = vsub.s32 6, %v1351
        %v1353 = vrot.slane %v427, %v1352
        %v1354 = vadd.f32 %v1349, %v1353
        %s1355 = scalar_lea.vmem %s7, 8
        %v1356 = vld [vmem:[%s1355] sm:$0xff]
        %v1357 = vpack.c.bf16 %v1354, %v1354
        %s1358 = scalar_lea.vmem %s2, 96
        %v1359 = vld [vmem:[%s1358] sm:$0xf]
        %v1360 = vld [vmem:[%s1358 + $0x4] sm:$0xf]
        %v1361 = vld [vmem:[%s1358 + $0x8] sm:$0xf]
        %v1362 = vld [vmem:[%s1358 + $0xc] sm:$0xf]
        %s1363 = scalar_lea.vmem %s3, 6
        %v1364 = vld [vmem:[%s1363] sm:$0x1]
        %v1366 = vlaneseq
        %v1367 = vshrl.u32 %v1366, 7
        %v1368 = vsub.s32 0, %v1367
        %v1369 = vrot.slane %v1364, %v1368
        %v1375 = vunpack.c.l.b16 %v1359
        %v1376 = vunpack.c.l.b16 %v1360
        %v1377 = vunpack.c.l.b16 %v1361
        %v1378 = vunpack.c.l.b16 %v1362
        %v1379 = vpack.c.b16 %v1376, %v1375
        %v1380 = vpack.c.b16 %v1378, %v1377
        %v1384 = vsel %vm399, %v1357, 0
        %1386 = vmatprep.subr.bf16.mxu0 0
        %1387 = vmatpush1.bf16.msra.mxu0 0
        %1388 = vmatprep.subr.bf16.mxu0 0
        %1389 = vmatpush1.bf16.msra.mxu0 0
        %1390 = vmatprep.subr.bf16.mxu0 0
        %1391 = vmatpush1.bf16.msra.mxu0 0
        %1392 = vmatprep.subr.bf16.mxu0 0
        %1393 = vmatpush1.bf16.msra.mxu0 0
        %1394 = vmatprep.subr.bf16.mxu0 0
        %1395 = vmatpush1.bf16.msra.mxu0 0
        %1396 = vmatprep.subr.bf16.mxu0 0
        %1397 = vmatpush1.bf16.msra.mxu0 0
        %1398 = vmatprep.subr.bf16.mxu0 0
        %1399 = vmatpush1.bf16.msra.mxu0 %v1380
        %1400 = vmatprep.subr.bf16.mxu0 0
        %1401 = vmatpush1.bf16.msra.mxu0 %v1379
        %1402 = vmatprep.subr.bf16.mxu0 0
        %1403 = vmatpush2.bf16.msra.mxu0 0
        %1404 = vmatprep.subr.bf16.mxu0 0
        %1405 = vmatpush2.bf16.msra.mxu0 0
        %1406 = vmatprep.subr.bf16.mxu0 0
        %1407 = vmatpush2.bf16.msra.mxu0 0
        %1408 = vmatprep.subr.bf16.mxu0 0
        %1409 = vmatpush2.bf16.msra.mxu0 0
        %1410 = vmatprep.subr.bf16.mxu0 0
        %1411 = vmatpush2.bf16.msra.mxu0 0
        %1412 = vmatprep.subr.bf16.mxu0 0
        %1413 = vmatpush2.bf16.msra.mxu0 0
        %1414 = vmatprep.subr.bf16.mxu0 0
        %1415 = vmatpush2.bf16.msra.mxu0 0
        %1416 = vmatprep.subr.bf16.mxu0 0
        %1417 = vmatpush2.bf16.msra.mxu0 0
        %1418 = vmatprep.mubr.bf16.mxu0 0
        %1419 = vmatmul.mubr.bf16.gmra.mxu0 %v1384
        %v1420 = vpop.f32.mrf.mxu0
        %v1421 = vadd.f32 %v1369, %v1420
        %v1422 = vpop.f32.mrf.mxu0
        %v1423 = vpop.f32.mrf.mxu0
        %v1424 = vpop.f32.mrf.mxu0
        %1425 = vdwg.mxu0
        %s1426 = scalar_lea.vmem %s2, 128
        %v1427 = vld [vmem:[%s1426] sm:$0xf]
        %v1428 = vld [vmem:[%s1426 + $0x4] sm:$0xf]
        %v1429 = vld [vmem:[%s1426 + $0x8] sm:$0xf]
        %v1430 = vld [vmem:[%s1426 + $0xc] sm:$0xf]
        %s1431 = scalar_lea.vmem %s3, 8
        %v1432 = vld [vmem:[%s1431] sm:$0x1]
        %v1434 = vlaneseq
        %v1435 = vshrl.u32 %v1434, 7
        %v1436 = vsub.s32 0, %v1435
        %v1437 = vrot.slane %v1432, %v1436
        %v1443 = vunpack.c.l.b16 %v1427
        %v1444 = vunpack.c.l.b16 %v1428
        %v1445 = vunpack.c.l.b16 %v1429
        %v1446 = vunpack.c.l.b16 %v1430
        %v1447 = vpack.c.b16 %v1444, %v1443
        %v1448 = vpack.c.b16 %v1446, %v1445
        %1451 = vmatprep.subr.bf16.mxu0 0
        %1452 = vmatpush1.bf16.msra.mxu0 0
        %1453 = vmatprep.subr.bf16.mxu0 0
        %1454 = vmatpush1.bf16.msra.mxu0 0
        %1455 = vmatprep.subr.bf16.mxu0 0
        %1456 = vmatpush1.bf16.msra.mxu0 0
        %1457 = vmatprep.subr.bf16.mxu0 0
        %1458 = vmatpush1.bf16.msra.mxu0 0
        %1459 = vmatprep.subr.bf16.mxu0 0
        %1460 = vmatpush1.bf16.msra.mxu0 0
        %1461 = vmatprep.subr.bf16.mxu0 0
        %1462 = vmatpush1.bf16.msra.mxu0 0
        %1463 = vmatprep.subr.bf16.mxu0 0
        %1464 = vmatpush1.bf16.msra.mxu0 %v1448
        %1465 = vmatprep.subr.bf16.mxu0 0
        %1466 = vmatpush1.bf16.msra.mxu0 %v1447
        %1467 = vmatprep.subr.bf16.mxu0 0
        %1468 = vmatpush2.bf16.msra.mxu0 0
        %1469 = vmatprep.subr.bf16.mxu0 0
        %1470 = vmatpush2.bf16.msra.mxu0 0
        %1471 = vmatprep.subr.bf16.mxu0 0
        %1472 = vmatpush2.bf16.msra.mxu0 0
        %1473 = vmatprep.subr.bf16.mxu0 0
        %1474 = vmatpush2.bf16.msra.mxu0 0
        %1475 = vmatprep.subr.bf16.mxu0 0
        %1476 = vmatpush2.bf16.msra.mxu0 0
        %1477 = vmatprep.subr.bf16.mxu0 0
        %1478 = vmatpush2.bf16.msra.mxu0 0
        %1479 = vmatprep.subr.bf16.mxu0 0
        %1480 = vmatpush2.bf16.msra.mxu0 0
        %1481 = vmatprep.subr.bf16.mxu0 0
        %1482 = vmatpush2.bf16.msra.mxu0 0
        %1483 = vmatprep.mubr.bf16.mxu0 0
        %1484 = vmatmul.mubr.bf16.gmra.mxu0 %v1384
        %v1485 = vpop.f32.mrf.mxu0
        %v1486 = vadd.f32 %v1437, %v1485
        %v1487 = vpop.f32.mrf.mxu0
        %v1488 = vpop.f32.mrf.mxu0
        %v1489 = vpop.f32.mrf.mxu0
        %1490 = vdwg.mxu0
        %s1491 = scalar_lea.vmem %s2, 160
        %v1492 = vld [vmem:[%s1491] sm:$0xf]
        %v1493 = vld [vmem:[%s1491 + $0x4] sm:$0xf]
        %v1494 = vld [vmem:[%s1491 + $0x8] sm:$0xf]
        %v1495 = vld [vmem:[%s1491 + $0xc] sm:$0xf]
        %s1496 = scalar_lea.vmem %s3, 10
        %v1497 = vld [vmem:[%s1496] sm:$0x1]
        %v1499 = vlaneseq
        %v1500 = vshrl.u32 %v1499, 7
        %v1501 = vsub.s32 0, %v1500
        %v1502 = vrot.slane %v1497, %v1501
        %v1508 = vunpack.c.l.b16 %v1492
        %v1509 = vunpack.c.l.b16 %v1493
        %v1510 = vunpack.c.l.b16 %v1494
        %v1511 = vunpack.c.l.b16 %v1495
        %v1512 = vpack.c.b16 %v1509, %v1508
        %v1513 = vpack.c.b16 %v1511, %v1510
        %1516 = vmatprep.subr.bf16.mxu0 0
        %1517 = vmatpush1.bf16.msra.mxu0 0
        %1518 = vmatprep.subr.bf16.mxu0 0
        %1519 = vmatpush1.bf16.msra.mxu0 0
        %1520 = vmatprep.subr.bf16.mxu0 0
        %1521 = vmatpush1.bf16.msra.mxu0 0
        %1522 = vmatprep.subr.bf16.mxu0 0
        %1523 = vmatpush1.bf16.msra.mxu0 0
        %1524 = vmatprep.subr.bf16.mxu0 0
        %1525 = vmatpush1.bf16.msra.mxu0 0
        %1526 = vmatprep.subr.bf16.mxu0 0
        %1527 = vmatpush1.bf16.msra.mxu0 0
        %1528 = vmatprep.subr.bf16.mxu0 0
        %1529 = vmatpush1.bf16.msra.mxu0 %v1513
        %1530 = vmatprep.subr.bf16.mxu0 0
        %1531 = vmatpush1.bf16.msra.mxu0 %v1512
        %1532 = vmatprep.subr.bf16.mxu0 0
        %1533 = vmatpush2.bf16.msra.mxu0 0
        %1534 = vmatprep.subr.bf16.mxu0 0
        %1535 = vmatpush2.bf16.msra.mxu0 0
        %1536 = vmatprep.subr.bf16.mxu0 0
        %1537 = vmatpush2.bf16.msra.mxu0 0
        %1538 = vmatprep.subr.bf16.mxu0 0
        %1539 = vmatpush2.bf16.msra.mxu0 0
        %1540 = vmatprep.subr.bf16.mxu0 0
        %1541 = vmatpush2.bf16.msra.mxu0 0
        %1542 = vmatprep.subr.bf16.mxu0 0
        %1543 = vmatpush2.bf16.msra.mxu0 0
        %1544 = vmatprep.subr.bf16.mxu0 0
        %1545 = vmatpush2.bf16.msra.mxu0 0
        %1546 = vmatprep.subr.bf16.mxu0 0
        %1547 = vmatpush2.bf16.msra.mxu0 0
        %1548 = vmatprep.mubr.bf16.mxu0 0
        %1549 = vmatmul.mubr.bf16.gmra.mxu0 %v1384
        %v1550 = vpop.f32.mrf.mxu0
        %v1551 = vadd.f32 %v1502, %v1550
        %v1552 = vpop.f32.mrf.mxu0
        %v1553 = vpop.f32.mrf.mxu0
        %v1554 = vpop.f32.mrf.mxu0
        %1555 = vdwg.mxu0
        %v1556 = vpack.c.bf16 %v1421, %v1421
        %v1557 = vpack.c.bf16 %v1486, %v1486
        %v1559 = vsel %vm633, %v1556, 0
        %v1562 = vsel %vm633, %v1557, 0
        %1564 = vmatprep.subr.bf16.mxu0 0
        %1565 = vmatpush1.bf16.xpose.msra.mxu0 0
        %1566 = vmatprep.subr.bf16.mxu0 0
        %1567 = vmatpush1.bf16.xpose.msra.mxu0 0
        %1568 = vmatprep.subr.bf16.mxu0 0
        %1569 = vmatpush1.bf16.xpose.msra.mxu0 0
        %1570 = vmatprep.subr.bf16.mxu0 0
        %1571 = vmatpush1.bf16.xpose.msra.mxu0 0
        %1572 = vmatprep.subr.bf16.mxu0 0
        %1573 = vmatpush1.bf16.xpose.msra.mxu0 0
        %1574 = vmatprep.subr.bf16.mxu0 0
        %1575 = vmatpush1.bf16.xpose.msra.mxu0 0
        %1576 = vmatprep.subr.bf16.mxu0 0
        %1577 = vmatpush1.bf16.xpose.msra.mxu0 0
        %1578 = vmatprep.subr.bf16.mxu0 0
        %1579 = vmatpush1.bf16.xpose.msra.mxu0 %v1562
        %1580 = vmatprep.subr.bf16.mxu0 0
        %1581 = vmatpush2.bf16.xpose.msra.mxu0 0
        %1582 = vmatprep.subr.bf16.mxu0 0
        %1583 = vmatpush2.bf16.xpose.msra.mxu0 0
        %1584 = vmatprep.subr.bf16.mxu0 0
        %1585 = vmatpush2.bf16.xpose.msra.mxu0 0
        %1586 = vmatprep.subr.bf16.mxu0 0
        %1587 = vmatpush2.bf16.xpose.msra.mxu0 0
        %1588 = vmatprep.subr.bf16.mxu0 0
        %1589 = vmatpush2.bf16.xpose.msra.mxu0 0
        %1590 = vmatprep.subr.bf16.mxu0 0
        %1591 = vmatpush2.bf16.xpose.msra.mxu0 0
        %1592 = vmatprep.subr.bf16.mxu0 0
        %1593 = vmatpush2.bf16.xpose.msra.mxu0 0
        %1594 = vmatprep.subr.bf16.mxu0 0
        %1595 = vmatpush2.bf16.xpose.msra.mxu0 0
        %1596 = vmatprep.mubr.bf16.mxu0 0
        %1597 = vmatmul.mubr.bf16.gmra.mxu0 %v1559
        %v1598 = vpop.f32.mrf.mxu0
        %v1599 = vadd.f32 %v631, %v1598
        %v1600 = vpop.f32.mrf.mxu0
        %v1601 = vpop.f32.mrf.mxu0
        %v1602 = vpop.f32.mrf.mxu0
        %1603 = vdwg.mxu0
        %v1604 = vsel %vm680, %v1599, -inf
        %1605 = vmax.xlane.f32.xlu0 %v1604
        %v1606 = vpop.xlane.xlu0 %1605
        %v1607 = vsub.f32 %v1599, %v1606
        %v1608 = vmul.f32 %v1607, 1.442695
        %v1609 = vpow.pop %v1608
        %v1610 = vsel %vm680, %v1609, 0.0
        %1611 = vadd.xlane.f32.xlu0 %v1610
        %v1612 = vpop.xlane.xlu0 %1611
        %v1613 = vrcp.pop %v1612
        %v1614 = vmul.f32 %v1609, %v1613
        %v1615 = vpack.c.bf16 %v1614, %v1614
        %v1616 = vpack.c.bf16 %v1551, %v1551
        %v1618 = vsel %vm680, %v1615, 0
        %v1621 = vsel %vm697, %v1616, 0
        %1623 = vmatprep.subr.bf16.mxu0 0
        %1624 = vmatpush1.bf16.msra.mxu0 0
        %1625 = vmatprep.subr.bf16.mxu0 0
        %1626 = vmatpush1.bf16.msra.mxu0 0
        %1627 = vmatprep.subr.bf16.mxu0 0
        %1628 = vmatpush1.bf16.msra.mxu0 0
        %1629 = vmatprep.subr.bf16.mxu0 0
        %1630 = vmatpush1.bf16.msra.mxu0 0
        %1631 = vmatprep.subr.bf16.mxu0 0
        %1632 = vmatpush1.bf16.msra.mxu0 0
        %1633 = vmatprep.subr.bf16.mxu0 0
        %1634 = vmatpush1.bf16.msra.mxu0 0
        %1635 = vmatprep.subr.bf16.mxu0 0
        %1636 = vmatpush1.bf16.msra.mxu0 0
        %1637 = vmatprep.subr.bf16.mxu0 0
        %1638 = vmatpush1.bf16.msra.mxu0 %v1621
        %1639 = vmatprep.subr.bf16.mxu0 0
        %1640 = vmatpush2.bf16.msra.mxu0 0
        %1641 = vmatprep.subr.bf16.mxu0 0
        %1642 = vmatpush2.bf16.msra.mxu0 0
        %1643 = vmatprep.subr.bf16.mxu0 0
        %1644 = vmatpush2.bf16.msra.mxu0 0
        %1645 = vmatprep.subr.bf16.mxu0 0
        %1646 = vmatpush2.bf16.msra.mxu0 0
        %1647 = vmatprep.subr.bf16.mxu0 0
        %1648 = vmatpush2.bf16.msra.mxu0 0
        %1649 = vmatprep.subr.bf16.mxu0 0
        %1650 = vmatpush2.bf16.msra.mxu0 0
        %1651 = vmatprep.subr.bf16.mxu0 0
        %1652 = vmatpush2.bf16.msra.mxu0 0
        %1653 = vmatprep.subr.bf16.mxu0 0
        %1654 = vmatpush2.bf16.msra.mxu0 0
        %1655 = vmatprep.mubr.bf16.mxu0 0
        %1656 = vmatmul.mubr.bf16.gmra.mxu0 %v1618
        %v1657 = vpop.f32.mrf.mxu0
        %v1658 = vadd.f32 0.0, %v1657
        %v1659 = vpop.f32.mrf.mxu0
        %v1660 = vpop.f32.mrf.mxu0
        %v1661 = vpop.f32.mrf.mxu0
        %1662 = vdwg.mxu0
        %v1663 = vpack.c.bf16 %v1658, %v1658
        %s1664 = scalar_lea.vmem %s4, 16
        %v1665 = vld [vmem:[%s1664] sm:$0xf]
        %v1666 = vld [vmem:[%s1664 + $0x4] sm:$0xf]
        %s1667 = scalar_lea.vmem %s2, 112
        %v1668 = vld [vmem:[%s1667] sm:$0xf]
        %v1669 = vld [vmem:[%s1667 + $0x4] sm:$0xf]
        %v1670 = vld [vmem:[%s1667 + $0x8] sm:$0xf]
        %v1671 = vld [vmem:[%s1667 + $0xc] sm:$0xf]
        %s1672 = scalar_lea.vmem %s3, 7
        %v1673 = vld [vmem:[%s1672] sm:$0x1]
        %v1675 = vlaneseq
        %v1676 = vshrl.u32 %v1675, 7
        %v1677 = vsub.s32 0, %v1676
        %v1678 = vrot.slane %v1673, %v1677
        %v1684 = vunpack.c.l.b16 %v1668
        %v1685 = vunpack.c.l.b16 %v1669
        %v1686 = vunpack.c.l.b16 %v1670
        %v1687 = vunpack.c.l.b16 %v1671
        %v1688 = vpack.c.b16 %v1685, %v1684
        %v1689 = vpack.c.b16 %v1687, %v1686
        %1692 = vmatprep.subr.bf16.mxu0 0
        %1693 = vmatpush1.bf16.msra.mxu0 0
        %1694 = vmatprep.subr.bf16.mxu0 0
        %1695 = vmatpush1.bf16.msra.mxu0 0
        %1696 = vmatprep.subr.bf16.mxu0 0
        %1697 = vmatpush1.bf16.msra.mxu0 0
        %1698 = vmatprep.subr.bf16.mxu0 0
        %1699 = vmatpush1.bf16.msra.mxu0 0
        %1700 = vmatprep.subr.bf16.mxu0 0
        %1701 = vmatpush1.bf16.msra.mxu0 0
        %1702 = vmatprep.subr.bf16.mxu0 0
        %1703 = vmatpush1.bf16.msra.mxu0 0
        %1704 = vmatprep.subr.bf16.mxu0 0
        %1705 = vmatpush1.bf16.msra.mxu0 %v1689
        %1706 = vmatprep.subr.bf16.mxu0 0
        %1707 = vmatpush1.bf16.msra.mxu0 %v1688
        %1708 = vmatprep.subr.bf16.mxu0 0
        %1709 = vmatpush2.bf16.msra.mxu0 0
        %1710 = vmatprep.subr.bf16.mxu0 0
        %1711 = vmatpush2.bf16.msra.mxu0 0
        %1712 = vmatprep.subr.bf16.mxu0 0
        %1713 = vmatpush2.bf16.msra.mxu0 0
        %1714 = vmatprep.subr.bf16.mxu0 0
        %1715 = vmatpush2.bf16.msra.mxu0 0
        %1716 = vmatprep.subr.bf16.mxu0 0
        %1717 = vmatpush2.bf16.msra.mxu0 0
        %1718 = vmatprep.subr.bf16.mxu0 0
        %1719 = vmatpush2.bf16.msra.mxu0 0
        %1720 = vmatprep.subr.bf16.mxu0 0
        %1721 = vmatpush2.bf16.msra.mxu0 0
        %1722 = vmatprep.subr.bf16.mxu0 0
        %1723 = vmatpush2.bf16.msra.mxu0 0
        %1724 = vmatprep.mubr.bf16.mxu0 0
        %1725 = vmatmul.mubr.bf16.gmra.mxu0 %v1384
        %v1726 = vpop.f32.mrf.mxu0
        %v1727 = vadd.f32 %v1678, %v1726
        %v1728 = vpop.f32.mrf.mxu0
        %v1729 = vpop.f32.mrf.mxu0
        %v1730 = vpop.f32.mrf.mxu0
        %1731 = vdwg.mxu0
        %s1732 = scalar_lea.vmem %s2, 144
        %v1733 = vld [vmem:[%s1732] sm:$0xf]
        %v1734 = vld [vmem:[%s1732 + $0x4] sm:$0xf]
        %v1735 = vld [vmem:[%s1732 + $0x8] sm:$0xf]
        %v1736 = vld [vmem:[%s1732 + $0xc] sm:$0xf]
        %s1737 = scalar_lea.vmem %s3, 9
        %v1738 = vld [vmem:[%s1737] sm:$0x1]
        %v1740 = vlaneseq
        %v1741 = vshrl.u32 %v1740, 7
        %v1742 = vsub.s32 0, %v1741
        %v1743 = vrot.slane %v1738, %v1742
        %v1749 = vunpack.c.l.b16 %v1733
        %v1750 = vunpack.c.l.b16 %v1734
        %v1751 = vunpack.c.l.b16 %v1735
        %v1752 = vunpack.c.l.b16 %v1736
        %v1753 = vpack.c.b16 %v1750, %v1749
        %v1754 = vpack.c.b16 %v1752, %v1751
        %1757 = vmatprep.subr.bf16.mxu0 0
        %1758 = vmatpush1.bf16.msra.mxu0 0
        %1759 = vmatprep.subr.bf16.mxu0 0
        %1760 = vmatpush1.bf16.msra.mxu0 0
        %1761 = vmatprep.subr.bf16.mxu0 0
        %1762 = vmatpush1.bf16.msra.mxu0 0
        %1763 = vmatprep.subr.bf16.mxu0 0
        %1764 = vmatpush1.bf16.msra.mxu0 0
        %1765 = vmatprep.subr.bf16.mxu0 0
        %1766 = vmatpush1.bf16.msra.mxu0 0
        %1767 = vmatprep.subr.bf16.mxu0 0
        %1768 = vmatpush1.bf16.msra.mxu0 0
        %1769 = vmatprep.subr.bf16.mxu0 0
        %1770 = vmatpush1.bf16.msra.mxu0 %v1754
        %1771 = vmatprep.subr.bf16.mxu0 0
        %1772 = vmatpush1.bf16.msra.mxu0 %v1753
        %1773 = vmatprep.subr.bf16.mxu0 0
        %1774 = vmatpush2.bf16.msra.mxu0 0
        %1775 = vmatprep.subr.bf16.mxu0 0
        %1776 = vmatpush2.bf16.msra.mxu0 0
        %1777 = vmatprep.subr.bf16.mxu0 0
        %1778 = vmatpush2.bf16.msra.mxu0 0
        %1779 = vmatprep.subr.bf16.mxu0 0
        %1780 = vmatpush2.bf16.msra.mxu0 0
        %1781 = vmatprep.subr.bf16.mxu0 0
        %1782 = vmatpush2.bf16.msra.mxu0 0
        %1783 = vmatprep.subr.bf16.mxu0 0
        %1784 = vmatpush2.bf16.msra.mxu0 0
        %1785 = vmatprep.subr.bf16.mxu0 0
        %1786 = vmatpush2.bf16.msra.mxu0 0
        %1787 = vmatprep.subr.bf16.mxu0 0
        %1788 = vmatpush2.bf16.msra.mxu0 0
        %1789 = vmatprep.mubr.bf16.mxu0 0
        %1790 = vmatmul.mubr.bf16.gmra.mxu0 %v1384
        %v1791 = vpop.f32.mrf.mxu0
        %v1792 = vadd.f32 %v1743, %v1791
        %v1793 = vpop.f32.mrf.mxu0
        %v1794 = vpop.f32.mrf.mxu0
        %v1795 = vpop.f32.mrf.mxu0
        %1796 = vdwg.mxu0
        %s1797 = scalar_lea.vmem %s2, 176
        %v1798 = vld [vmem:[%s1797] sm:$0xf]
        %v1799 = vld [vmem:[%s1797 + $0x4] sm:$0xf]
        %v1800 = vld [vmem:[%s1797 + $0x8] sm:$0xf]
        %v1801 = vld [vmem:[%s1797 + $0xc] sm:$0xf]
        %s1802 = scalar_lea.vmem %s3, 11
        %v1803 = vld [vmem:[%s1802] sm:$0x1]
        %v1805 = vlaneseq
        %v1806 = vshrl.u32 %v1805, 7
        %v1807 = vsub.s32 0, %v1806
        %v1808 = vrot.slane %v1803, %v1807
        %v1814 = vunpack.c.l.b16 %v1798
        %v1815 = vunpack.c.l.b16 %v1799
        %v1816 = vunpack.c.l.b16 %v1800
        %v1817 = vunpack.c.l.b16 %v1801
        %v1818 = vpack.c.b16 %v1815, %v1814
        %v1819 = vpack.c.b16 %v1817, %v1816
        %1822 = vmatprep.subr.bf16.mxu0 0
        %1823 = vmatpush1.bf16.msra.mxu0 0
        %1824 = vmatprep.subr.bf16.mxu0 0
        %1825 = vmatpush1.bf16.msra.mxu0 0
        %1826 = vmatprep.subr.bf16.mxu0 0
        %1827 = vmatpush1.bf16.msra.mxu0 0
        %1828 = vmatprep.subr.bf16.mxu0 0
        %1829 = vmatpush1.bf16.msra.mxu0 0
        %1830 = vmatprep.subr.bf16.mxu0 0
        %1831 = vmatpush1.bf16.msra.mxu0 0
        %1832 = vmatprep.subr.bf16.mxu0 0
        %1833 = vmatpush1.bf16.msra.mxu0 0
        %1834 = vmatprep.subr.bf16.mxu0 0
        %1835 = vmatpush1.bf16.msra.mxu0 %v1819
        %1836 = vmatprep.subr.bf16.mxu0 0
        %1837 = vmatpush1.bf16.msra.mxu0 %v1818
        %1838 = vmatprep.subr.bf16.mxu0 0
        %1839 = vmatpush2.bf16.msra.mxu0 0
        %1840 = vmatprep.subr.bf16.mxu0 0
        %1841 = vmatpush2.bf16.msra.mxu0 0
        %1842 = vmatprep.subr.bf16.mxu0 0
        %1843 = vmatpush2.bf16.msra.mxu0 0
        %1844 = vmatprep.subr.bf16.mxu0 0
        %1845 = vmatpush2.bf16.msra.mxu0 0
        %1846 = vmatprep.subr.bf16.mxu0 0
        %1847 = vmatpush2.bf16.msra.mxu0 0
        %1848 = vmatprep.subr.bf16.mxu0 0
        %1849 = vmatpush2.bf16.msra.mxu0 0
        %1850 = vmatprep.subr.bf16.mxu0 0
        %1851 = vmatpush2.bf16.msra.mxu0 0
        %1852 = vmatprep.subr.bf16.mxu0 0
        %1853 = vmatpush2.bf16.msra.mxu0 0
        %1854 = vmatprep.mubr.bf16.mxu0 0
        %1855 = vmatmul.mubr.bf16.gmra.mxu0 %v1384
        %v1856 = vpop.f32.mrf.mxu0
        %v1857 = vadd.f32 %v1808, %v1856
        %v1858 = vpop.f32.mrf.mxu0
        %v1859 = vpop.f32.mrf.mxu0
        %v1860 = vpop.f32.mrf.mxu0
        %1861 = vdwg.mxu0
        %v1862 = vpack.c.bf16 %v1727, %v1727
        %v1863 = vpack.c.bf16 %v1792, %v1792
        %v1865 = vsel %vm633, %v1862, 0
        %v1868 = vsel %vm633, %v1863, 0
        %1870 = vmatprep.subr.bf16.mxu0 0
        %1871 = vmatpush1.bf16.xpose.msra.mxu0 0
        %1872 = vmatprep.subr.bf16.mxu0 0
        %1873 = vmatpush1.bf16.xpose.msra.mxu0 0
        %1874 = vmatprep.subr.bf16.mxu0 0
        %1875 = vmatpush1.bf16.xpose.msra.mxu0 0
        %1876 = vmatprep.subr.bf16.mxu0 0
        %1877 = vmatpush1.bf16.xpose.msra.mxu0 0
        %1878 = vmatprep.subr.bf16.mxu0 0
        %1879 = vmatpush1.bf16.xpose.msra.mxu0 0
        %1880 = vmatprep.subr.bf16.mxu0 0
        %1881 = vmatpush1.bf16.xpose.msra.mxu0 0
        %1882 = vmatprep.subr.bf16.mxu0 0
        %1883 = vmatpush1.bf16.xpose.msra.mxu0 0
        %1884 = vmatprep.subr.bf16.mxu0 0
        %1885 = vmatpush1.bf16.xpose.msra.mxu0 %v1868
        %1886 = vmatprep.subr.bf16.mxu0 0
        %1887 = vmatpush2.bf16.xpose.msra.mxu0 0
        %1888 = vmatprep.subr.bf16.mxu0 0
        %1889 = vmatpush2.bf16.xpose.msra.mxu0 0
        %1890 = vmatprep.subr.bf16.mxu0 0
        %1891 = vmatpush2.bf16.xpose.msra.mxu0 0
        %1892 = vmatprep.subr.bf16.mxu0 0
        %1893 = vmatpush2.bf16.xpose.msra.mxu0 0
        %1894 = vmatprep.subr.bf16.mxu0 0
        %1895 = vmatpush2.bf16.xpose.msra.mxu0 0
        %1896 = vmatprep.subr.bf16.mxu0 0
        %1897 = vmatpush2.bf16.xpose.msra.mxu0 0
        %1898 = vmatprep.subr.bf16.mxu0 0
        %1899 = vmatpush2.bf16.xpose.msra.mxu0 0
        %1900 = vmatprep.subr.bf16.mxu0 0
        %1901 = vmatpush2.bf16.xpose.msra.mxu0 0
        %1902 = vmatprep.mubr.bf16.mxu0 0
        %1903 = vmatmul.mubr.bf16.gmra.mxu0 %v1865
        %v1904 = vpop.f32.mrf.mxu0
        %v1905 = vadd.f32 %v631, %v1904
        %v1906 = vpop.f32.mrf.mxu0
        %v1907 = vpop.f32.mrf.mxu0
        %v1908 = vpop.f32.mrf.mxu0
        %1909 = vdwg.mxu0
        %v1910 = vsel %vm680, %v1905, -inf
        %1911 = vmax.xlane.f32.xlu0 %v1910
        %v1912 = vpop.xlane.xlu0 %1911
        %v1913 = vsub.f32 %v1905, %v1912
        %v1914 = vmul.f32 %v1913, 1.442695
        %v1915 = vpow.pop %v1914
        %v1916 = vsel %vm680, %v1915, 0.0
        %1917 = vadd.xlane.f32.xlu0 %v1916
        %v1918 = vpop.xlane.xlu0 %1917
        %v1919 = vrcp.pop %v1918
        %v1920 = vmul.f32 %v1915, %v1919
        %v1921 = vpack.c.bf16 %v1920, %v1920
        %v1922 = vpack.c.bf16 %v1857, %v1857
        %v1924 = vsel %vm680, %v1921, 0
        %v1927 = vsel %vm697, %v1922, 0
        %1929 = vmatprep.subr.bf16.mxu0 0
        %1930 = vmatpush1.bf16.msra.mxu0 0
        %1931 = vmatprep.subr.bf16.mxu0 0
        %1932 = vmatpush1.bf16.msra.mxu0 0
        %1933 = vmatprep.subr.bf16.mxu0 0
        %1934 = vmatpush1.bf16.msra.mxu0 0
        %1935 = vmatprep.subr.bf16.mxu0 0
        %1936 = vmatpush1.bf16.msra.mxu0 0
        %1937 = vmatprep.subr.bf16.mxu0 0
        %1938 = vmatpush1.bf16.msra.mxu0 0
        %1939 = vmatprep.subr.bf16.mxu0 0
        %1940 = vmatpush1.bf16.msra.mxu0 0
        %1941 = vmatprep.subr.bf16.mxu0 0
        %1942 = vmatpush1.bf16.msra.mxu0 0
        %1943 = vmatprep.subr.bf16.mxu0 0
        %1944 = vmatpush1.bf16.msra.mxu0 %v1927
        %1945 = vmatprep.subr.bf16.mxu0 0
        %1946 = vmatpush2.bf16.msra.mxu0 0
        %1947 = vmatprep.subr.bf16.mxu0 0
        %1948 = vmatpush2.bf16.msra.mxu0 0
        %1949 = vmatprep.subr.bf16.mxu0 0
        %1950 = vmatpush2.bf16.msra.mxu0 0
        %1951 = vmatprep.subr.bf16.mxu0 0
        %1952 = vmatpush2.bf16.msra.mxu0 0
        %1953 = vmatprep.subr.bf16.mxu0 0
        %1954 = vmatpush2.bf16.msra.mxu0 0
        %1955 = vmatprep.subr.bf16.mxu0 0
        %1956 = vmatpush2.bf16.msra.mxu0 0
        %1957 = vmatprep.subr.bf16.mxu0 0
        %1958 = vmatpush2.bf16.msra.mxu0 0
        %1959 = vmatprep.subr.bf16.mxu0 0
        %1960 = vmatpush2.bf16.msra.mxu0 0
        %1961 = vmatprep.mubr.bf16.mxu0 0
        %1962 = vmatmul.mubr.bf16.gmra.mxu0 %v1924
        %v1963 = vpop.f32.mrf.mxu0
        %v1964 = vadd.f32 0.0, %v1963
        %v1965 = vpop.f32.mrf.mxu0
        %v1966 = vpop.f32.mrf.mxu0
        %v1967 = vpop.f32.mrf.mxu0
        %1968 = vdwg.mxu0
        %v1969 = vpack.c.bf16 %v1964, %v1964
        %s1970 = scalar_lea.vmem %s4, 24
        %v1971 = vld [vmem:[%s1970] sm:$0xf]
        %v1972 = vld [vmem:[%s1970 + $0x4] sm:$0xf]
        %v1975 = vunpack.c.l.b16 %v1971
        %v1976 = vunpack.c.l.b16 %v1972
        %v1977 = vpack.c.b16 %v1976, %v1975
        %v1980 = vsel %vm633, %v1969, 0
        %1982 = vmatprep.subr.bf16.mxu0 0
        %1983 = vmatpush1.bf16.msra.mxu0 0
        %1984 = vmatprep.subr.bf16.mxu0 0
        %1985 = vmatpush1.bf16.msra.mxu0 0
        %1986 = vmatprep.subr.bf16.mxu0 0
        %1987 = vmatpush1.bf16.msra.mxu0 0
        %1988 = vmatprep.subr.bf16.mxu0 0
        %1989 = vmatpush1.bf16.msra.mxu0 0
        %1990 = vmatprep.subr.bf16.mxu0 0
        %1991 = vmatpush1.bf16.msra.mxu0 0
        %1992 = vmatprep.subr.bf16.mxu0 0
        %1993 = vmatpush1.bf16.msra.mxu0 0
        %1994 = vmatprep.subr.bf16.mxu0 0
        %1995 = vmatpush1.bf16.msra.mxu0 0
        %1996 = vmatprep.subr.bf16.mxu0 0
        %1997 = vmatpush1.bf16.msra.mxu0 %v1977
        %1998 = vmatprep.subr.bf16.mxu0 0
        %1999 = vmatpush2.bf16.msra.mxu0 0
        %2000 = vmatprep.subr.bf16.mxu0 0
        %2001 = vmatpush2.bf16.msra.mxu0 0
        %2002 = vmatprep.subr.bf16.mxu0 0
        %2003 = vmatpush2.bf16.msra.mxu0 0
        %2004 = vmatprep.subr.bf16.mxu0 0
        %2005 = vmatpush2.bf16.msra.mxu0 0
        %2006 = vmatprep.subr.bf16.mxu0 0
        %2007 = vmatpush2.bf16.msra.mxu0 0
        %2008 = vmatprep.subr.bf16.mxu0 0
        %2009 = vmatpush2.bf16.msra.mxu0 0
        %2010 = vmatprep.subr.bf16.mxu0 0
        %2011 = vmatpush2.bf16.msra.mxu0 0
        %2012 = vmatprep.subr.bf16.mxu0 0
        %2013 = vmatpush2.bf16.msra.mxu0 0
        %2014 = vmatprep.mubr.bf16.mxu0 0
        %2015 = vmatmul.mubr.bf16.gmra.mxu0 %v1980
        %v2016 = vpop.f32.mrf.mxu0
        %v2017 = vadd.f32 0.0, %v2016
        %v2018 = vpop.f32.mrf.mxu0
        %v2019 = vpop.f32.mrf.mxu0
        %v2020 = vpop.f32.mrf.mxu0
        %2021 = vdwg.mxu0
        %v2024 = vunpack.c.l.b16 %v1665
        %v2025 = vunpack.c.l.b16 %v1666
        %v2026 = vpack.c.b16 %v2025, %v2024
        %v2029 = vsel %vm633, %v1663, 0
        %2031 = vmatprep.subr.bf16.mxu0 0
        %2032 = vmatpush1.bf16.msra.mxu0 0
        %2033 = vmatprep.subr.bf16.mxu0 0
        %2034 = vmatpush1.bf16.msra.mxu0 0
        %2035 = vmatprep.subr.bf16.mxu0 0
        %2036 = vmatpush1.bf16.msra.mxu0 0
        %2037 = vmatprep.subr.bf16.mxu0 0
        %2038 = vmatpush1.bf16.msra.mxu0 0
        %2039 = vmatprep.subr.bf16.mxu0 0
        %2040 = vmatpush1.bf16.msra.mxu0 0
        %2041 = vmatprep.subr.bf16.mxu0 0
        %2042 = vmatpush1.bf16.msra.mxu0 0
        %2043 = vmatprep.subr.bf16.mxu0 0
        %2044 = vmatpush1.bf16.msra.mxu0 0
        %2045 = vmatprep.subr.bf16.mxu0 0
        %2046 = vmatpush1.bf16.msra.mxu0 %v2026
        %2047 = vmatprep.subr.bf16.mxu0 0
        %2048 = vmatpush2.bf16.msra.mxu0 0
        %2049 = vmatprep.subr.bf16.mxu0 0
        %2050 = vmatpush2.bf16.msra.mxu0 0
        %2051 = vmatprep.subr.bf16.mxu0 0
        %2052 = vmatpush2.bf16.msra.mxu0 0
        %2053 = vmatprep.subr.bf16.mxu0 0
        %2054 = vmatpush2.bf16.msra.mxu0 0
        %2055 = vmatprep.subr.bf16.mxu0 0
        %2056 = vmatpush2.bf16.msra.mxu0 0
        %2057 = vmatprep.subr.bf16.mxu0 0
        %2058 = vmatpush2.bf16.msra.mxu0 0
        %2059 = vmatprep.subr.bf16.mxu0 0
        %2060 = vmatpush2.bf16.msra.mxu0 0
        %2061 = vmatprep.subr.bf16.mxu0 0
        %2062 = vmatpush2.bf16.msra.mxu0 0
        %2063 = vmatprep.mubr.bf16.mxu0 0
        %2064 = vmatmul.mubr.bf16.gmra.mxu0 %v2029
        %v2065 = vpop.f32.mrf.mxu0
        %v2066 = vadd.f32 %v2017, %v2065
        %v2067 = vpop.f32.mrf.mxu0
        %v2068 = vpop.f32.mrf.mxu0
        %v2069 = vpop.f32.mrf.mxu0
        %2070 = vdwg.mxu0
        %v2071 = vlaneseq
        %v2072 = vshrl.u32 %v2071, 7
        %v2073 = vsub.s32 0, %v2072
        %v2074 = vrot.slane %v1356, %v2073
        %v2075 = vadd.f32 %v2066, %v2074
        %v2076 = vadd.f32 %v2075, %v1354
        %v2077 = vsel %vm399, %v2076, 0.0
        %2078 = vadd.xlane.f32.xlu0 %v2077
        %v2079 = vpop.xlane.xlu0 %2078
        %v2080 = vmul.f32 %v2079, %v403
        %v2081 = vsub.f32 %v2076, %v2080
        %v2082 = vmul.f32 %v2081, %v2081
        %v2083 = vsel %vm399, %v2082, 0.0
        %2084 = vadd.xlane.f32.xlu0 %v2083
        %v2085 = vpop.xlane.xlu0 %2084
        %v2086 = vmul.f32 %v2085, %v403
        %v2087 = vadd.f32 %v2086, 1e-12
        %v2088 = vrsqrt.pop %v2087
        %v2089 = vmul.f32 %v2081, %v2088
        %v2090 = vlaneseq
        %v2091 = vshrl.u32 %v2090, 7
        %v2092 = vsub.s32 1, %v2091
        %v2093 = vrot.slane %v1356, %v2092
        %v2094 = vmul.f32 %v2089, %v2093
        %v2095 = vlaneseq
        %v2096 = vshrl.u32 %v2095, 7
        %v2097 = vsub.s32 2, %v2096
        %v2098 = vrot.slane %v1356, %v2097
        %v2099 = vadd.f32 %v2094, %v2098
        %v2100 = vpack.c.bf16 %v2099, %v2099
        %s2101 = scalar_lea.vmem %s5, 16
        %v2102 = vld [vmem:[%s2101] sm:$0xf]
        %v2103 = vld [vmem:[%s2101 + $0x4] sm:$0xf]
        %v2104 = vld [vmem:[%s2101 + $0x8] sm:$0xf]
        %v2105 = vld [vmem:[%s2101 + $0xc] sm:$0xf]
        %v2106 = vlaneseq
        %v2107 = vshrl.u32 %v2106, 7
        %v2108 = vsub.s32 3, %v2107
        %v2109 = vrot.slane %v1356, %v2108
        %v2114 = vunpack.c.l.b16 %v2102
        %v2115 = vunpack.c.l.b16 %v2103
        %v2116 = vunpack.c.l.b16 %v2104
        %v2117 = vunpack.c.l.b16 %v2105
        %v2118 = vpack.c.b16 %v2115, %v2114
        %v2119 = vpack.c.b16 %v2117, %v2116
        %v2123 = vsel %vm399, %v2100, 0
        %2125 = vmatprep.subr.bf16.mxu0 0
        %2126 = vmatpush1.bf16.msra.mxu0 0
        %2127 = vmatprep.subr.bf16.mxu0 0
        %2128 = vmatpush1.bf16.msra.mxu0 0
        %2129 = vmatprep.subr.bf16.mxu0 0
        %2130 = vmatpush1.bf16.msra.mxu0 0
        %2131 = vmatprep.subr.bf16.mxu0 0
        %2132 = vmatpush1.bf16.msra.mxu0 0
        %2133 = vmatprep.subr.bf16.mxu0 0
        %2134 = vmatpush1.bf16.msra.mxu0 0
        %2135 = vmatprep.subr.bf16.mxu0 0
        %2136 = vmatpush1.bf16.msra.mxu0 0
        %2137 = vmatprep.subr.bf16.mxu0 0
        %2138 = vmatpush1.bf16.msra.mxu0 %v2119
        %2139 = vmatprep.subr.bf16.mxu0 0
        %2140 = vmatpush1.bf16.msra.mxu0 %v2118
        %2141 = vmatprep.subr.bf16.mxu0 0
        %2142 = vmatpush2.bf16.msra.mxu0 0
        %2143 = vmatprep.subr.bf16.mxu0 0
        %2144 = vmatpush2.bf16.msra.mxu0 0
        %2145 = vmatprep.subr.bf16.mxu0 0
        %2146 = vmatpush2.bf16.msra.mxu0 0
        %2147 = vmatprep.subr.bf16.mxu0 0
        %2148 = vmatpush2.bf16.msra.mxu0 0
        %2149 = vmatprep.subr.bf16.mxu0 0
        %2150 = vmatpush2.bf16.msra.mxu0 0
        %2151 = vmatprep.subr.bf16.mxu0 0
        %2152 = vmatpush2.bf16.msra.mxu0 0
        %2153 = vmatprep.subr.bf16.mxu0 0
        %2154 = vmatpush2.bf16.msra.mxu0 0
        %2155 = vmatprep.subr.bf16.mxu0 0
        %2156 = vmatpush2.bf16.msra.mxu0 0
        %2157 = vmatprep.mubr.bf16.mxu0 0
        %2158 = vmatmul.mubr.bf16.gmra.mxu0 %v2123
        %v2159 = vpop.f32.mrf.mxu0
        %v2160 = vadd.f32 %v2109, %v2159
        %v2161 = vpop.f32.mrf.mxu0
        %v2162 = vpop.f32.mrf.mxu0
        %v2163 = vpop.f32.mrf.mxu0
        %2164 = vdwg.mxu0
        %v2165 = vmul.f32 %v2160, 0.5
        %v2166 = vmul.f32 %v2160, 0.044715
        %v2167 = vmul.f32 %v2166, %v2160
        %v2168 = vmul.f32 %v2167, %v2160
        %v2169 = vadd.f32 %v2160, %v2168
        %v2170 = vmul.f32 %v2169, 0.7978846
        %v2171 = vtanh.pop %v2170
        %v2172 = vadd.f32 %v2171, 1.0
        %v2173 = vmul.f32 %v2165, %v2172
        %v2174 = vpack.c.bf16 %v2173, %v2173
        %s2175 = scalar_lea.vmem %s6, 32
        %v2176 = vld [vmem:[%s2175] sm:$0xf]
        %v2177 = vld [vmem:[%s2175 + $0x4] sm:$0xf]
        %v2178 = vld [vmem:[%s2175 + $0x8] sm:$0xf]
        %v2179 = vld [vmem:[%s2175 + $0xc] sm:$0xf]
        %v2180 = vld [vmem:[%s2175 + $0x10] sm:$0xf]
        %v2181 = vld [vmem:[%s2175 + $0x14] sm:$0xf]
        %v2182 = vld [vmem:[%s2175 + $0x18] sm:$0xf]
        %v2183 = vld [vmem:[%s2175 + $0x1c] sm:$0xf]
        %v2184 = vlaneseq
        %v2185 = vshrl.u32 %v2184, 7
        %v2186 = vsub.s32 4, %v2185
        %v2187 = vrot.slane %v1356, %v2186
        %v2196 = vunpack.c.l.b16 %v2176
        %v2197 = vunpack.c.l.b16 %v2177
        %v2198 = vunpack.c.l.b16 %v2178
        %v2199 = vunpack.c.l.b16 %v2179
        %v2200 = vunpack.c.l.b16 %v2180
        %v2201 = vunpack.c.l.b16 %v2181
        %v2202 = vunpack.c.l.b16 %v2182
        %v2203 = vunpack.c.l.b16 %v2183
        %v2204 = vpack.c.b16 %v2197, %v2196
        %v2205 = vpack.c.b16 %v2199, %v2198
        %v2206 = vpack.c.b16 %v2201, %v2200
        %v2207 = vpack.c.b16 %v2203, %v2202
        %v2213 = vsel %vm1287, %v2174, 0
        %2215 = vmatprep.subr.bf16.mxu0 0
        %2216 = vmatpush1.bf16.msra.mxu0 0
        %2217 = vmatprep.subr.bf16.mxu0 0
        %2218 = vmatpush1.bf16.msra.mxu0 0
        %2219 = vmatprep.subr.bf16.mxu0 0
        %2220 = vmatpush1.bf16.msra.mxu0 0
        %2221 = vmatprep.subr.bf16.mxu0 0
        %2222 = vmatpush1.bf16.msra.mxu0 0
        %2223 = vmatprep.subr.bf16.mxu0 0
        %2224 = vmatpush1.bf16.msra.mxu0 %v2207
        %2225 = vmatprep.subr.bf16.mxu0 0
        %2226 = vmatpush1.bf16.msra.mxu0 %v2206
        %2227 = vmatprep.subr.bf16.mxu0 0
        %2228 = vmatpush1.bf16.msra.mxu0 %v2205
        %2229 = vmatprep.subr.bf16.mxu0 0
        %2230 = vmatpush1.bf16.msra.mxu0 %v2204
        %2231 = vmatprep.subr.bf16.mxu0 0
        %2232 = vmatpush2.bf16.msra.mxu0 0
        %2233 = vmatprep.subr.bf16.mxu0 0
        %2234 = vmatpush2.bf16.msra.mxu0 0
        %2235 = vmatprep.subr.bf16.mxu0 0
        %2236 = vmatpush2.bf16.msra.mxu0 0
        %2237 = vmatprep.subr.bf16.mxu0 0
        %2238 = vmatpush2.bf16.msra.mxu0 0
        %2239 = vmatprep.subr.bf16.mxu0 0
        %2240 = vmatpush2.bf16.msra.mxu0 0
        %2241 = vmatprep.subr.bf16.mxu0 0
        %2242 = vmatpush2.bf16.msra.mxu0 0
        %2243 = vmatprep.subr.bf16.mxu0 0
        %2244 = vmatpush2.bf16.msra.mxu0 0
        %2245 = vmatprep.subr.bf16.mxu0 0
        %2246 = vmatpush2.bf16.msra.mxu0 0
        %2247 = vmatprep.mubr.bf16.mxu0 0
        %2248 = vmatmul.mubr.bf16.gmra.mxu0 %v2213
        %v2249 = vpop.f32.mrf.mxu0
        %v2250 = vadd.f32 %v2187, %v2249
        %v2251 = vpop.f32.mrf.mxu0
        %v2252 = vpop.f32.mrf.mxu0
        %v2253 = vpop.f32.mrf.mxu0
        %2254 = vdwg.mxu0
        %v2255 = vadd.f32 %v2250, %v2099
        %v2256 = vsel %vm399, %v2255, 0.0
        %2257 = vadd.xlane.f32.xlu0 %v2256
        %v2258 = vpop.xlane.xlu0 %2257
        %v2259 = vmul.f32 %v2258, %v403
        %v2260 = vsub.f32 %v2255, %v2259
        %v2261 = vmul.f32 %v2260, %v2260
        %v2262 = vsel %vm399, %v2261, 0.0
        %2263 = vadd.xlane.f32.xlu0 %v2262
        %v2264 = vpop.xlane.xlu0 %2263
        %v2265 = vmul.f32 %v2264, %v403
        %v2266 = vadd.f32 %v2265, 1e-12
        %v2267 = vrsqrt.pop %v2266
        %v2268 = vmul.f32 %v2260, %v2267
        %v2269 = vlaneseq
        %v2270 = vshrl.u32 %v2269, 7
        %v2271 = vsub.s32 5, %v2270
        %v2272 = vrot.slane %v1356, %v2271
        %v2273 = vmul.f32 %v2268, %v2272
        %v2274 = vlaneseq
        %v2275 = vshrl.u32 %v2274, 7
        %v2276 = vsub.s32 6, %v2275
        %v2277 = vrot.slane %v1356, %v2276
        %v2278 = vadd.f32 %v2273, %v2277
        %v2279 = vpack.c.bf16 %v2278, %v2278
        %v2280 = vld [vmem:[%s8] sm:$0xf]
        %v2281 = vld [vmem:[%s8 + $0x4] sm:$0xf]
        %v2282 = vld [vmem:[%s8 + $0x8] sm:$0xf]
        %v2283 = vld [vmem:[%s8 + $0xc] sm:$0xf]
        %v2284 = vlaneseq
        %v2285 = vshrl.u32 %v2284, 7
        %v2286 = vsub.s32 2, %v2285
        %v2287 = vrot.slane %v397, %v2286
        %v2292 = vunpack.c.l.b16 %v2280
        %v2293 = vunpack.c.l.b16 %v2281
        %v2294 = vunpack.c.l.b16 %v2282
        %v2295 = vunpack.c.l.b16 %v2283
        %v2296 = vpack.c.b16 %v2293, %v2292
        %v2297 = vpack.c.b16 %v2295, %v2294
        %v2301 = vsel %vm399, %v2279, 0
        %2303 = vmatprep.subr.bf16.mxu0 0
        %2304 = vmatpush1.bf16.msra.mxu0 0
        %2305 = vmatprep.subr.bf16.mxu0 0
        %2306 = vmatpush1.bf16.msra.mxu0 0
        %2307 = vmatprep.subr.bf16.mxu0 0
        %2308 = vmatpush1.bf16.msra.mxu0 0
        %2309 = vmatprep.subr.bf16.mxu0 0
        %2310 = vmatpush1.bf16.msra.mxu0 0
        %2311 = vmatprep.subr.bf16.mxu0 0
        %2312 = vmatpush1.bf16.msra.mxu0 0
        %2313 = vmatprep.subr.bf16.mxu0 0
        %2314 = vmatpush1.bf16.msra.mxu0 0
        %2315 = vmatprep.subr.bf16.mxu0 0
        %2316 = vmatpush1.bf16.msra.mxu0 %v2297
        %2317 = vmatprep.subr.bf16.mxu0 0
        %2318 = vmatpush1.bf16.msra.mxu0 %v2296
        %2319 = vmatprep.subr.bf16.mxu0 0
        %2320 = vmatpush2.bf16.msra.mxu0 0
        %2321 = vmatprep.subr.bf16.mxu0 0
        %2322 = vmatpush2.bf16.msra.mxu0 0
        %2323 = vmatprep.subr.bf16.mxu0 0
        %2324 = vmatpush2.bf16.msra.mxu0 0
        %2325 = vmatprep.subr.bf16.mxu0 0
        %2326 = vmatpush2.bf16.msra.mxu0 0
        %2327 = vmatprep.subr.bf16.mxu0 0
        %2328 = vmatpush2.bf16.msra.mxu0 0
        %2329 = vmatprep.subr.bf16.mxu0 0
        %2330 = vmatpush2.bf16.msra.mxu0 0
        %2331 = vmatprep.subr.bf16.mxu0 0
        %2332 = vmatpush2.bf16.msra.mxu0 0
        %2333 = vmatprep.subr.bf16.mxu0 0
        %2334 = vmatpush2.bf16.msra.mxu0 0
        %2335 = vmatprep.mubr.bf16.mxu0 0
        %2336 = vmatmul.mubr.bf16.gmra.mxu0 %v2301
        %v2337 = vpop.f32.mrf.mxu0
        %v2338 = vadd.f32 %v2287, %v2337
        %v2339 = vpop.f32.mrf.mxu0
        %v2340 = vpop.f32.mrf.mxu0
        %v2341 = vpop.f32.mrf.mxu0
        %2342 = vdwg.mxu0
        %v2343 = vtanh.pop %v2338
        %v2344 = vpack.c.bf16 %v2343, %v2343
        %v2345 = vld [vmem:[%s9] sm:$0xf]
        %v2346 = vld [vmem:[%s9 + $0x4] sm:$0xf]
        %v2347 = vld [vmem:[%s9 + $0x8] sm:$0xf]
        %v2348 = vld [vmem:[%s9 + $0xc] sm:$0xf]
        %v2349 = vlaneseq
        %v2350 = vshrl.u32 %v2349, 7
        %v2351 = vsub.s32 3, %v2350
        %v2352 = vrot.slane %v397, %v2351
        %v2357 = vunpack.c.l.b16 %v2345
        %v2358 = vunpack.c.l.b16 %v2346
        %v2359 = vunpack.c.l.b16 %v2347
        %v2360 = vunpack.c.l.b16 %v2348
        %v2361 = vpack.c.b16 %v2358, %v2357
        %v2362 = vpack.c.b16 %v2360, %v2359
        %v2366 = vsel %vm399, %v2344, 0
        %2368 = vmatprep.subr.bf16.mxu0 0
        %2369 = vmatpush1.bf16.msra.mxu0 0
        %2370 = vmatprep.subr.bf16.mxu0 0
        %2371 = vmatpush1.bf16.msra.mxu0 0
        %2372 = vmatprep.subr.bf16.mxu0 0
        %2373 = vmatpush1.bf16.msra.mxu0 0
        %2374 = vmatprep.subr.bf16.mxu0 0
        %2375 = vmatpush1.bf16.msra.mxu0 0
        %2376 = vmatprep.subr.bf16.mxu0 0
        %2377 = vmatpush1.bf16.msra.mxu0 0
        %2378 = vmatprep.subr.bf16.mxu0 0
        %2379 = vmatpush1.bf16.msra.mxu0 0
        %2380 = vmatprep.subr.bf16.mxu0 0
        %2381 = vmatpush1.bf16.msra.mxu0 %v2362
        %2382 = vmatprep.subr.bf16.mxu0 0
        %2383 = vmatpush1.bf16.msra.mxu0 %v2361
        %2384 = vmatprep.subr.bf16.mxu0 0
        %2385 = vmatpush2.bf16.msra.mxu0 0
        %2386 = vmatprep.subr.bf16.mxu0 0
        %2387 = vmatpush2.bf16.msra.mxu0 0
        %2388 = vmatprep.subr.bf16.mxu0 0
        %2389 = vmatpush2.bf16.msra.mxu0 0
        %2390 = vmatprep.subr.bf16.mxu0 0
        %2391 = vmatpush2.bf16.msra.mxu0 0
        %2392 = vmatprep.subr.bf16.mxu0 0
        %2393 = vmatpush2.bf16.msra.mxu0 0
        %2394 = vmatprep.subr.bf16.mxu0 0
        %2395 = vmatpush2.bf16.msra.mxu0 0
        %2396 = vmatprep.subr.bf16.mxu0 0
        %2397 = vmatpush2.bf16.msra.mxu0 0
        %2398 = vmatprep.subr.bf16.mxu0 0
        %2399 = vmatpush2.bf16.msra.mxu0 0
        %2400 = vmatprep.mubr.bf16.mxu0 0
        %2401 = vmatmul.mubr.bf16.gmra.mxu0 %v2366
        %v2402 = vpop.f32.mrf.mxu0
        %v2403 = vadd.f32 %v2352, %v2402
        %v2404 = vpop.f32.mrf.mxu0
        %v2405 = vpop.f32.mrf.mxu0
        %v2406 = vpop.f32.mrf.mxu0
        %2407 = vdwg.mxu0
        %2408 = vst [vmem:[%s388] sm:$0xff] %v2403
        %s2409 = sand.u32 %s274, 1
        %s2410 = scalar_lea.sflag [#allocation3], %s2409
        %s2411 = sand.u32 %s274, 1
        %s2412 = smul.addr %s2411, 8
        %s2413 = scalar_lea.vmem [#allocation2], %s2412
        // Predicated region
        $region65: #{tpu_custom_call.1} parent=63 // pred_check
          %p2414 = pneg %p284
        $region66: #{tpu_custom_call.1} parent=63 // pred_check_branch
          %2416 = sbr.rel (%p2414) target = $region68
        $region67: #{tpu_custom_call.1} parent=63 // pred_region
          %s2418 = ssub.s32 128, 128
          %2419 = vsyncadd %s2410, %s2418
          %s2420 = smul.addr %s25, 128
          %s2421 = scalar_lea.hbm %s11, %s2420
          %s2423 = sshll.u32 %s2413, 4
          %s2424 = int_to_ptr.vmem [resolvable:$true] %s2423
          %2426 = dma.vmem_to_hbm [thread:$0]  %s2424, 128, %s2421, %s2410
        $region68: #{tpu_custom_call.1} parent=63 // pred_fallthru
          _
      $region64: #{tpu_custom_call.1} parent=5 // pred_fallthru
        _
      %p2427 = scmp.le.s32.totalorder 2, %s20
      // Predicated region
      $region69: #{tpu_custom_call.1} parent=5 // pred_check
        %p2428 = pneg %p2427
      $region70: #{tpu_custom_call.1} parent=5 // pred_check_branch
        %2430 = sbr.rel (%p2428) target = $region72
      $region71: #{tpu_custom_call.1} parent=5 // pred_region
        %s2431 = ssub.s32 %s20, 2
        // Predicated region
        $region73: #{tpu_custom_call.1} parent=71 // pred_check
          %p2432 = pneg %p290
        $region74: #{tpu_custom_call.1} parent=71 // pred_check_branch
          %2434 = sbr.rel (%p2432) target = $region76
        $region75: #{tpu_custom_call.1} parent=71 // pred_region
          %s2435 = sand.u32 %s275, 1
          %s2436 = scalar_lea.sflag [#allocation3], %s2435
          %s2437 = sand.u32 %s275, 1
          %s2438 = smul.addr %s2437, 8
          %s2439 = scalar_lea.vmem [#allocation2], %s2438
          %2440 = dma.done %s2436, 128
        $region76: #{tpu_custom_call.1} parent=71 // pred_fallthru
          _
      $region72: #{tpu_custom_call.1} parent=5 // pred_fallthru
        _
    $region6: #{tpu_custom_call.1} parent=1 // loop_footer
      %s24 = sadd.s32 1, %s20
    $region7: #{tpu_custom_call.1} parent=1 // loop_footer_branch
      %19 = sbr.rel target = $region3
    $region8: #{tpu_custom_call.1} parent=1 // loop_exit
      _
    %2441 = vsyncpa [#allocation3], 1
    %s2442 = scalar_lea.sflag [#allocation3], 1
    %2443 = vsyncpa %s2442, 1

</llo_original>
